<compile_context>
chip_gen: v6e
topology: v6e:2x2x1
jax: 0.10.0
libtpu: 0.0.40
codegen_flags: <defaults>
</compile_context>

<pallas_src>
import functools

import jax
import jax.numpy as jnp
from jax.experimental import pallas as pl
from jax.experimental.pallas import tpu as pltpu

_TB = 8  # images per grid step (batch tile); second-to-last block dim, 8-aligned


# ----------------------------------------------------------------------------
# Fused network kernel
# ----------------------------------------------------------------------------
def _fused_net_kernel(x_ref,
                      m1_ref, b1_ref,
                      m2_ref, b2_ref,
                      m3_ref, b3_ref,
                      wfc_ref, bfc_ref,
                      wcls_ref, bcls_ref,
                      o_ref, *, use_bf16):
    f32 = jnp.float32

    def mm(a, b):
        if use_bf16:  # v6e/v7x fast path; accumulate in f32 either way
            a = a.astype(jnp.bfloat16)
            b = b.astype(jnp.bfloat16)
        return jnp.dot(a, b, preferred_element_type=f32)

    def conv_block(a, m_ref, b_ref):
        # a: (H, TB, W*Cin) with column index = w*Cin + ci.
        # Returns relu(conv(a)): (H//2, TB, (W//2)*Cout), column = j*Cout + co.
        H, TB, L = a.shape
        Lo = m_ref.shape[-1]
        Ho = H // 2
        ar = a.reshape(Ho, 2, TB, L)            # free: split of the major dim
        even = ar[:, 0]                         # rows 2i    -> kh = 1
        odd = ar[:, 1]                          # rows 2i+1  -> kh = 2
        up = jnp.concatenate(                   # rows 2i-1  -> kh = 0 (top pad)
            [jnp.zeros((1, TB, L), f32), odd[:-1]], axis=0)
        acc = mm(up.reshape(Ho * TB, L), m_ref[0])
        acc = acc + mm(even.reshape(Ho * TB, L), m_ref[1])
        acc = acc + mm(odd.reshape(Ho * TB, L), m_ref[2])
        out = jnp.maximum(acc + b_ref[...], 0.0)
        return out.reshape(Ho, TB, Lo)

    x = x_ref[...].astype(f32)                  # (64, TB, 64*3)
    a1 = conv_block(x, m1_ref, b1_ref)          # (32, TB, 32*6)
    a2 = conv_block(a1, m2_ref, b2_ref)         # (16, TB, 16*12)
    a3 = conv_block(a2, m3_ref, b3_ref)         # (8,  TB, 8*24)

    # fc: sum over the 8 H-slabs; activations never leave VMEM.
    tb = a3.shape[1]
    acc = jnp.zeros((tb, wfc_ref.shape[-1]), f32)
    for h in range(a3.shape[0]):
        acc = acc + mm(a3[h], wfc_ref[h])
    fc_out = jnp.maximum(acc + bfc_ref[...], 0.0)

    # cls, padded to 128 output lanes (lane-dense store); sliced in glue.
    o_ref[...] = mm(fc_out, wcls_ref[...]) + bcls_ref[...]


# ----------------------------------------------------------------------------
# One-time parameter preparation (PyTorch layouts -> kernel operands)
# ----------------------------------------------------------------------------
def prepare_params(params):
    f32 = jnp.float32

    def conv_mats(w, b, H, W):
        # w: (Cout, Cin, 3, 3) PyTorch OIHW; builds per-kh structured matrices
        # M[kh, wcol*Cin+ci, j*Cout+co] = w[co, ci, kh, wcol-2j+1] (if valid).
        Cout, Cin, K, _ = w.shape
        Wo = W // 2
        kw = jnp.arange(K)[:, None, None]            # (K,1,1)
        col = jnp.arange(W)[None, :, None]           # (1,W,1)
        j = jnp.arange(Wo)[None, None, :]            # (1,1,Wo)
        sel = (col == 2 * j - 1 + kw).astype(f32)    # (K, W, Wo)
        m = jnp.einsum('kwj,oihk->hwijo', sel, w.astype(f32))
        m = m.reshape(K, W * Cin, Wo * Cout)
        brow = jnp.tile(b.astype(f32), Wo).reshape(1, Wo * Cout)
        return m, brow

    m1, b1 = conv_mats(params["conv1_w"], params["conv1_b"], 64, 64)
    m2, b2 = conv_mats(params["conv2_w"], params["conv2_b"], 32, 32)
    m3, b3 = conv_mats(params["conv3_w"], params["conv3_b"], 16, 16)

    # fc: permute input dim from PyTorch's (C,H,W) flatten to (H, W, C).
    fc_w = params["fc_w"].astype(f32).reshape(128, 24, 8, 8)          # (o,c,h,w)
    wfc = jnp.transpose(fc_w, (2, 3, 1, 0)).reshape(8, 8 * 24, 128)   # (h, w*24+c, o)
    bfc = params["fc_b"].astype(f32).reshape(1, 128)

    ncls = params["cls_w"].shape[0]
    wcls = jnp.zeros((128, 128), f32).at[:, :ncls].set(params["cls_w"].astype(f32).T)
    bcls = jnp.zeros((1, 128), f32).at[0, :ncls].set(params["cls_b"].astype(f32))

    kp = dict(m1=m1, b1=b1, m2=m2, b2=b2, m3=m3, b3=b3,
              wfc=wfc, bfc=bfc, wcls=wcls, bcls=bcls)
    return kp, ncls


# ----------------------------------------------------------------------------
# Forward pass (mirrors AnimalBaselineNet.forward)
# ----------------------------------------------------------------------------
def animal_baseline_forward(x, kp, num_classes=16, *, batch_tile=_TB,
                            use_bf16=False):
    # x.contiguous().view(-1, 3, 64, 64).float()
    x = x.reshape(-1, 3, 64, 64).astype(jnp.float32)
    B = x.shape[0]
    TB = batch_tile
    B_pad = ((B + TB - 1) // TB) * TB
    if B_pad != B:
        x = jnp.pad(x, ((0, B_pad - B), (0, 0), (0, 0), (0, 0)))

    # (B,C,H,W) -> (H, B, W*C): H-major rows, lane dim = W*C (w-major, c-minor).
    xk = jnp.transpose(x, (2, 0, 3, 1)).reshape(64, B_pad, 64 * 3)

    kernel = functools.partial(_fused_net_kernel, use_bf16=use_bf16)

    def resident3(i):
        return (0, 0, 0)

    def resident2(i):
        return (0, 0)

    flops_per_img = 2 * (3 * 192 * 192 * (32 + 16 + 8) + 8 * 192 * 128 + 128 * 128)
    weight_bytes = sum(int(kp[k].size) * 4 for k in
                       ("m1", "m2", "m3", "b1", "b2", "b3",
                        "wfc", "bfc", "wcls", "bcls"))
    cost = pl.CostEstimate(
        flops=flops_per_img * B_pad,
        transcendentals=0,
        bytes_accessed=int(xk.size) * 4 + weight_bytes + B_pad * 128 * 4)

    out = pl.pallas_call(
        kernel,
        out_shape=jax.ShapeDtypeStruct((B_pad, 128), jnp.float32),
        grid=(B_pad // TB,),
        in_specs=[
            pl.BlockSpec((64, TB, 64 * 3), lambda i: (0, i, 0)),
            pl.BlockSpec(kp["m1"].shape, resident3),
            pl.BlockSpec(kp["b1"].shape, resident2),
            pl.BlockSpec(kp["m2"].shape, resident3),
            pl.BlockSpec(kp["b2"].shape, resident2),
            pl.BlockSpec(kp["m3"].shape, resident3),
            pl.BlockSpec(kp["b3"].shape, resident2),
            pl.BlockSpec(kp["wfc"].shape, resident3),
            pl.BlockSpec(kp["bfc"].shape, resident2),
            pl.BlockSpec(kp["wcls"].shape, resident2),
            pl.BlockSpec(kp["bcls"].shape, resident2),
        ],
        out_specs=pl.BlockSpec((TB, 128), lambda i: (i, 0)),
        compiler_params=pltpu.CompilerParams(
            dimension_semantics=("parallel",)),
        cost_estimate=cost,
    )(xk, kp["m1"], kp["b1"], kp["m2"], kp["b2"], kp["m3"], kp["b3"],
      kp["wfc"], kp["bfc"], kp["wcls"], kp["bcls"])

    return out[:B, :num_classes]


# ----------------------------------------------------------------------------
# Deterministic parameters (PyTorch shapes)
# ----------------------------------------------------------------------------
def init_params(key, num_classes=16):
    ks = jax.random.split(key, 10)

    def w(k, shape, scale):
        return (scale * jax.random.normal(k, shape)).astype(jnp.float32)

    return {
        "conv1_w": w(ks[0], (6, 3, 3, 3), 0.1),
        "conv1_b": w(ks[1], (6,), 0.1),
        "conv2_w": w(ks[2], (12, 6, 3, 3), 0.1),
        "conv2_b": w(ks[3], (12,), 0.1),
        "conv3_w": w(ks[4], (24, 12, 3, 3), 0.1),
        "conv3_b": w(ks[5], (24,), 0.1),
        "fc_w":    w(ks[6], (128, 8 * 8 * 24), 0.02),   # PyTorch Linear: (out, in)
        "fc_b":    w(ks[7], (128,), 0.02),
        "cls_w":   w(ks[8], (num_classes, 128), 0.02),
        "cls_b":   w(ks[9], (num_classes,), 0.02),
    }


if __name__ == "__main__":
    key = jax.random.PRNGKey(0)
    k_params, k_x = jax.random.split(key)

    params = init_params(k_params)
    kparams, num_classes = prepare_params(params)     # one-time weight prep

    x = jax.random.normal(k_x, (2, 3, 64, 64), dtype=jnp.float32)

    out = animal_baseline_forward(x, kparams, num_classes)
    out = jax.block_until_ready(out)
    assert out.shape == (2, 16), out.shape
    assert out.dtype == jnp.float32
    print("KERNEL_OK")
</pallas_src>

<mosaic_0001>
module attributes {stable_mosaic.version = 11 : i64} {
  func.func @_fused_net_kernel(%arg0: i32, %arg1: memref<64x8x192xf32, #tpu.memory_space<vmem>>, %arg2: memref<3x192x192xf32, #tpu.memory_space<vmem>>, %arg3: memref<1x192xf32, #tpu.memory_space<vmem>>, %arg4: memref<3x192x192xf32, #tpu.memory_space<vmem>>, %arg5: memref<1x192xf32, #tpu.memory_space<vmem>>, %arg6: memref<3x192x192xf32, #tpu.memory_space<vmem>>, %arg7: memref<1x192xf32, #tpu.memory_space<vmem>>, %arg8: memref<8x192x128xf32, #tpu.memory_space<vmem>>, %arg9: memref<1x128xf32, #tpu.memory_space<vmem>>, %arg10: memref<128x128xf32, #tpu.memory_space<vmem>>, %arg11: memref<1x128xf32, #tpu.memory_space<vmem>>, %arg12: memref<8x128xf32, #tpu.memory_space<vmem>>) attributes {dimension_semantics = [#tpu.dimension_semantics<parallel>], iteration_bounds = array<i64: 1>, scalar_prefetch = 0 : i64, scratch_operands = 0 : i64, tpu.core_type = #tpu.core_type<tc>, window_params = [{transform_indices = @transform_0, window_bounds = array<i64: 64, 8, 192>}, {pipeline_mode = #tpu.pipeline_mode<synchronous>, transform_indices = @transform_1, window_bounds = array<i64: 3, 192, 192>}, {pipeline_mode = #tpu.pipeline_mode<synchronous>, transform_indices = @transform_2, window_bounds = array<i64: 1, 192>}, {pipeline_mode = #tpu.pipeline_mode<synchronous>, transform_indices = @transform_3, window_bounds = array<i64: 3, 192, 192>}, {pipeline_mode = #tpu.pipeline_mode<synchronous>, transform_indices = @transform_4, window_bounds = array<i64: 1, 192>}, {pipeline_mode = #tpu.pipeline_mode<synchronous>, transform_indices = @transform_5, window_bounds = array<i64: 3, 192, 192>}, {pipeline_mode = #tpu.pipeline_mode<synchronous>, transform_indices = @transform_6, window_bounds = array<i64: 1, 192>}, {pipeline_mode = #tpu.pipeline_mode<synchronous>, transform_indices = @transform_7, window_bounds = array<i64: 8, 192, 128>}, {pipeline_mode = #tpu.pipeline_mode<synchronous>, transform_indices = @transform_8, window_bounds = array<i64: 1, 128>}, {pipeline_mode = #tpu.pipeline_mode<synchronous>, transform_indices = @transform_9, window_bounds = array<i64: 128, 128>}, {pipeline_mode = #tpu.pipeline_mode<synchronous>, transform_indices = @transform_10, window_bounds = array<i64: 1, 128>}, {transform_indices = @transform_11, window_bounds = array<i64: 8, 128>}]} {
    %c0 = arith.constant 0 : index
    %c0_0 = arith.constant 0 : index
    %c0_1 = arith.constant 0 : index
    %0 = vector.load %arg1[%c0, %c0_0, %c0_1] : memref<64x8x192xf32, #tpu.memory_space<vmem>>, vector<64x8x192xf32>
    %1 = vector.shape_cast %0 : vector<64x8x192xf32> to vector<32x2x8x192xf32>
    %2 = vector.extract_strided_slice %1 {offsets = [0, 0, 0, 0], sizes = [32, 1, 8, 192], strides = [1, 1, 1, 1]} : vector<32x2x8x192xf32> to vector<32x1x8x192xf32>
    %3 = vector.shape_cast %2 : vector<32x1x8x192xf32> to vector<32x8x192xf32>
    %4 = vector.extract_strided_slice %1 {offsets = [0, 1, 0, 0], sizes = [32, 1, 8, 192], strides = [1, 1, 1, 1]} : vector<32x2x8x192xf32> to vector<32x1x8x192xf32>
    %5 = vector.shape_cast %4 : vector<32x1x8x192xf32> to vector<32x8x192xf32>
    %cst = arith.constant 0.000000e+00 : f32
    %6 = vector.broadcast %cst : f32 to vector<1x8x192xf32>
    %7 = vector.extract_strided_slice %5 {offsets = [0, 0, 0], sizes = [31, 8, 192], strides = [1, 1, 1]} : vector<32x8x192xf32> to vector<31x8x192xf32>
    %8 = tpu.concatenate %6, %7 in 0 : vector<1x8x192xf32>, vector<31x8x192xf32> -> vector<32x8x192xf32>
    %9 = vector.shape_cast %8 : vector<32x8x192xf32> to vector<256x192xf32>
    %c0_2 = arith.constant 0 : index
    %c0_3 = arith.constant 0 : index
    %c0_4 = arith.constant 0 : index
    %10 = vector.load %arg2[%c0_2, %c0_3, %c0_4] : memref<3x192x192xf32, #tpu.memory_space<vmem>>, vector<1x192x192xf32>
    %11 = vector.shape_cast %10 : vector<1x192x192xf32> to vector<192x192xf32>
    %cst_5 = arith.constant dense<0.000000e+00> : vector<256x192xf32>
    %12 = tpu.matmul %9, %11, %cst_5 {dimension_numbers = #tpu.dot_dimension_numbers<[1], [0], [0], [1], [0, 0, 1, 1], [], []>} : vector<256x192xf32>, vector<192x192xf32>, vector<256x192xf32> -> vector<256x192xf32>
    %13 = vector.shape_cast %3 : vector<32x8x192xf32> to vector<256x192xf32>
    %c1 = arith.constant 1 : index
    %c0_6 = arith.constant 0 : index
    %c0_7 = arith.constant 0 : index
    %14 = vector.load %arg2[%c1, %c0_6, %c0_7] : memref<3x192x192xf32, #tpu.memory_space<vmem>>, vector<1x192x192xf32>
    %15 = vector.shape_cast %14 : vector<1x192x192xf32> to vector<192x192xf32>
    %cst_8 = arith.constant dense<0.000000e+00> : vector<256x192xf32>
    %16 = tpu.matmul %13, %15, %cst_8 {dimension_numbers = #tpu.dot_dimension_numbers<[1], [0], [0], [1], [0, 0, 1, 1], [], []>} : vector<256x192xf32>, vector<192x192xf32>, vector<256x192xf32> -> vector<256x192xf32>
    %17 = arith.addf %12, %16 : vector<256x192xf32>
    %18 = vector.shape_cast %5 : vector<32x8x192xf32> to vector<256x192xf32>
    %c2 = arith.constant 2 : index
    %c0_9 = arith.constant 0 : index
    %c0_10 = arith.constant 0 : index
    %19 = vector.load %arg2[%c2, %c0_9, %c0_10] : memref<3x192x192xf32, #tpu.memory_space<vmem>>, vector<1x192x192xf32>
    %20 = vector.shape_cast %19 : vector<1x192x192xf32> to vector<192x192xf32>
    %cst_11 = arith.constant dense<0.000000e+00> : vector<256x192xf32>
    %21 = tpu.matmul %18, %20, %cst_11 {dimension_numbers = #tpu.dot_dimension_numbers<[1], [0], [0], [1], [0, 0, 1, 1], [], []>} : vector<256x192xf32>, vector<192x192xf32>, vector<256x192xf32> -> vector<256x192xf32>
    %22 = arith.addf %17, %21 : vector<256x192xf32>
    %c0_12 = arith.constant 0 : index
    %c0_13 = arith.constant 0 : index
    %23 = vector.load %arg3[%c0_12, %c0_13] : memref<1x192xf32, #tpu.memory_space<vmem>>, vector<1x192xf32>
    %24 = vector.broadcast %23 : vector<1x192xf32> to vector<256x192xf32>
    %25 = arith.addf %22, %24 : vector<256x192xf32>
    %cst_14 = arith.constant 0.000000e+00 : f32
    %26 = vector.broadcast %cst_14 : f32 to vector<256x192xf32>
    %27 = arith.maximumf %25, %26 : vector<256x192xf32>
    %28 = vector.shape_cast %27 : vector<256x192xf32> to vector<32x8x192xf32>
    %29 = vector.shape_cast %28 : vector<32x8x192xf32> to vector<16x2x8x192xf32>
    %30 = vector.extract_strided_slice %29 {offsets = [0, 0, 0, 0], sizes = [16, 1, 8, 192], strides = [1, 1, 1, 1]} : vector<16x2x8x192xf32> to vector<16x1x8x192xf32>
    %31 = vector.shape_cast %30 : vector<16x1x8x192xf32> to vector<16x8x192xf32>
    %32 = vector.extract_strided_slice %29 {offsets = [0, 1, 0, 0], sizes = [16, 1, 8, 192], strides = [1, 1, 1, 1]} : vector<16x2x8x192xf32> to vector<16x1x8x192xf32>
    %33 = vector.shape_cast %32 : vector<16x1x8x192xf32> to vector<16x8x192xf32>
    %cst_15 = arith.constant 0.000000e+00 : f32
    %34 = vector.broadcast %cst_15 : f32 to vector<1x8x192xf32>
    %35 = vector.extract_strided_slice %33 {offsets = [0, 0, 0], sizes = [15, 8, 192], strides = [1, 1, 1]} : vector<16x8x192xf32> to vector<15x8x192xf32>
    %36 = tpu.concatenate %34, %35 in 0 : vector<1x8x192xf32>, vector<15x8x192xf32> -> vector<16x8x192xf32>
    %37 = vector.shape_cast %36 : vector<16x8x192xf32> to vector<128x192xf32>
    %c0_16 = arith.constant 0 : index
    %c0_17 = arith.constant 0 : index
    %c0_18 = arith.constant 0 : index
    %38 = vector.load %arg4[%c0_16, %c0_17, %c0_18] : memref<3x192x192xf32, #tpu.memory_space<vmem>>, vector<1x192x192xf32>
    %39 = vector.shape_cast %38 : vector<1x192x192xf32> to vector<192x192xf32>
    %cst_19 = arith.constant dense<0.000000e+00> : vector<128x192xf32>
    %40 = tpu.matmul %37, %39, %cst_19 {dimension_numbers = #tpu.dot_dimension_numbers<[1], [0], [0], [1], [0, 0, 1, 1], [], []>} : vector<128x192xf32>, vector<192x192xf32>, vector<128x192xf32> -> vector<128x192xf32>
    %41 = vector.shape_cast %31 : vector<16x8x192xf32> to vector<128x192xf32>
    %c1_20 = arith.constant 1 : index
    %c0_21 = arith.constant 0 : index
    %c0_22 = arith.constant 0 : index
    %42 = vector.load %arg4[%c1_20, %c0_21, %c0_22] : memref<3x192x192xf32, #tpu.memory_space<vmem>>, vector<1x192x192xf32>
    %43 = vector.shape_cast %42 : vector<1x192x192xf32> to vector<192x192xf32>
    %cst_23 = arith.constant dense<0.000000e+00> : vector<128x192xf32>
    %44 = tpu.matmul %41, %43, %cst_23 {dimension_numbers = #tpu.dot_dimension_numbers<[1], [0], [0], [1], [0, 0, 1, 1], [], []>} : vector<128x192xf32>, vector<192x192xf32>, vector<128x192xf32> -> vector<128x192xf32>
    %45 = arith.addf %40, %44 : vector<128x192xf32>
    %46 = vector.shape_cast %33 : vector<16x8x192xf32> to vector<128x192xf32>
    %c2_24 = arith.constant 2 : index
    %c0_25 = arith.constant 0 : index
    %c0_26 = arith.constant 0 : index
    %47 = vector.load %arg4[%c2_24, %c0_25, %c0_26] : memref<3x192x192xf32, #tpu.memory_space<vmem>>, vector<1x192x192xf32>
    %48 = vector.shape_cast %47 : vector<1x192x192xf32> to vector<192x192xf32>
    %cst_27 = arith.constant dense<0.000000e+00> : vector<128x192xf32>
    %49 = tpu.matmul %46, %48, %cst_27 {dimension_numbers = #tpu.dot_dimension_numbers<[1], [0], [0], [1], [0, 0, 1, 1], [], []>} : vector<128x192xf32>, vector<192x192xf32>, vector<128x192xf32> -> vector<128x192xf32>
    %50 = arith.addf %45, %49 : vector<128x192xf32>
    %c0_28 = arith.constant 0 : index
    %c0_29 = arith.constant 0 : index
    %51 = vector.load %arg5[%c0_28, %c0_29] : memref<1x192xf32, #tpu.memory_space<vmem>>, vector<1x192xf32>
    %52 = vector.broadcast %51 : vector<1x192xf32> to vector<128x192xf32>
    %53 = arith.addf %50, %52 : vector<128x192xf32>
    %cst_30 = arith.constant 0.000000e+00 : f32
    %54 = vector.broadcast %cst_30 : f32 to vector<128x192xf32>
    %55 = arith.maximumf %53, %54 : vector<128x192xf32>
    %56 = vector.shape_cast %55 : vector<128x192xf32> to vector<16x8x192xf32>
    %57 = vector.shape_cast %56 : vector<16x8x192xf32> to vector<8x2x8x192xf32>
    %58 = vector.extract_strided_slice %57 {offsets = [0, 0, 0, 0], sizes = [8, 1, 8, 192], strides = [1, 1, 1, 1]} : vector<8x2x8x192xf32> to vector<8x1x8x192xf32>
    %59 = vector.shape_cast %58 : vector<8x1x8x192xf32> to vector<8x8x192xf32>
    %60 = vector.extract_strided_slice %57 {offsets = [0, 1, 0, 0], sizes = [8, 1, 8, 192], strides = [1, 1, 1, 1]} : vector<8x2x8x192xf32> to vector<8x1x8x192xf32>
    %61 = vector.shape_cast %60 : vector<8x1x8x192xf32> to vector<8x8x192xf32>
    %cst_31 = arith.constant 0.000000e+00 : f32
    %62 = vector.broadcast %cst_31 : f32 to vector<1x8x192xf32>
    %63 = vector.extract_strided_slice %61 {offsets = [0, 0, 0], sizes = [7, 8, 192], strides = [1, 1, 1]} : vector<8x8x192xf32> to vector<7x8x192xf32>
    %64 = tpu.concatenate %62, %63 in 0 : vector<1x8x192xf32>, vector<7x8x192xf32> -> vector<8x8x192xf32>
    %65 = vector.shape_cast %64 : vector<8x8x192xf32> to vector<64x192xf32>
    %c0_32 = arith.constant 0 : index
    %c0_33 = arith.constant 0 : index
    %c0_34 = arith.constant 0 : index
    %66 = vector.load %arg6[%c0_32, %c0_33, %c0_34] : memref<3x192x192xf32, #tpu.memory_space<vmem>>, vector<1x192x192xf32>
    %67 = vector.shape_cast %66 : vector<1x192x192xf32> to vector<192x192xf32>
    %cst_35 = arith.constant dense<0.000000e+00> : vector<64x192xf32>
    %68 = tpu.matmul %65, %67, %cst_35 {dimension_numbers = #tpu.dot_dimension_numbers<[1], [0], [0], [1], [0, 0, 1, 1], [], []>} : vector<64x192xf32>, vector<192x192xf32>, vector<64x192xf32> -> vector<64x192xf32>
    %69 = vector.shape_cast %59 : vector<8x8x192xf32> to vector<64x192xf32>
    %c1_36 = arith.constant 1 : index
    %c0_37 = arith.constant 0 : index
    %c0_38 = arith.constant 0 : index
    %70 = vector.load %arg6[%c1_36, %c0_37, %c0_38] : memref<3x192x192xf32, #tpu.memory_space<vmem>>, vector<1x192x192xf32>
    %71 = vector.shape_cast %70 : vector<1x192x192xf32> to vector<192x192xf32>
    %cst_39 = arith.constant dense<0.000000e+00> : vector<64x192xf32>
    %72 = tpu.matmul %69, %71, %cst_39 {dimension_numbers = #tpu.dot_dimension_numbers<[1], [0], [0], [1], [0, 0, 1, 1], [], []>} : vector<64x192xf32>, vector<192x192xf32>, vector<64x192xf32> -> vector<64x192xf32>
    %73 = arith.addf %68, %72 : vector<64x192xf32>
    %74 = vector.shape_cast %61 : vector<8x8x192xf32> to vector<64x192xf32>
    %c2_40 = arith.constant 2 : index
    %c0_41 = arith.constant 0 : index
    %c0_42 = arith.constant 0 : index
    %75 = vector.load %arg6[%c2_40, %c0_41, %c0_42] : memref<3x192x192xf32, #tpu.memory_space<vmem>>, vector<1x192x192xf32>
    %76 = vector.shape_cast %75 : vector<1x192x192xf32> to vector<192x192xf32>
    %cst_43 = arith.constant dense<0.000000e+00> : vector<64x192xf32>
    %77 = tpu.matmul %74, %76, %cst_43 {dimension_numbers = #tpu.dot_dimension_numbers<[1], [0], [0], [1], [0, 0, 1, 1], [], []>} : vector<64x192xf32>, vector<192x192xf32>, vector<64x192xf32> -> vector<64x192xf32>
    %78 = arith.addf %73, %77 : vector<64x192xf32>
    %c0_44 = arith.constant 0 : index
    %c0_45 = arith.constant 0 : index
    %79 = vector.load %arg7[%c0_44, %c0_45] : memref<1x192xf32, #tpu.memory_space<vmem>>, vector<1x192xf32>
    %80 = vector.broadcast %79 : vector<1x192xf32> to vector<64x192xf32>
    %81 = arith.addf %78, %80 : vector<64x192xf32>
    %cst_46 = arith.constant 0.000000e+00 : f32
    %82 = vector.broadcast %cst_46 : f32 to vector<64x192xf32>
    %83 = arith.maximumf %81, %82 : vector<64x192xf32>
    %84 = vector.shape_cast %83 : vector<64x192xf32> to vector<8x8x192xf32>
    %cst_47 = arith.constant 0.000000e+00 : f32
    %85 = vector.broadcast %cst_47 : f32 to vector<8x128xf32>
    %86 = vector.extract_strided_slice %84 {offsets = [0, 0, 0], sizes = [1, 8, 192], strides = [1, 1, 1]} : vector<8x8x192xf32> to vector<1x8x192xf32>
    %87 = vector.shape_cast %86 : vector<1x8x192xf32> to vector<8x192xf32>
    %c0_48 = arith.constant 0 : index
    %c0_49 = arith.constant 0 : index
    %c0_50 = arith.constant 0 : index
    %88 = vector.load %arg8[%c0_48, %c0_49, %c0_50] : memref<8x192x128xf32, #tpu.memory_space<vmem>>, vector<1x192x128xf32>
    %89 = vector.shape_cast %88 : vector<1x192x128xf32> to vector<192x128xf32>
    %cst_51 = arith.constant dense<0.000000e+00> : vector<8x128xf32>
    %90 = tpu.matmul %87, %89, %cst_51 {dimension_numbers = #tpu.dot_dimension_numbers<[1], [0], [0], [1], [0, 0, 1, 1], [], []>} : vector<8x192xf32>, vector<192x128xf32>, vector<8x128xf32> -> vector<8x128xf32>
    %91 = arith.addf %85, %90 : vector<8x128xf32>
    %92 = vector.extract_strided_slice %84 {offsets = [1, 0, 0], sizes = [1, 8, 192], strides = [1, 1, 1]} : vector<8x8x192xf32> to vector<1x8x192xf32>
    %93 = vector.shape_cast %92 : vector<1x8x192xf32> to vector<8x192xf32>
    %c1_52 = arith.constant 1 : index
    %c0_53 = arith.constant 0 : index
    %c0_54 = arith.constant 0 : index
    %94 = vector.load %arg8[%c1_52, %c0_53, %c0_54] : memref<8x192x128xf32, #tpu.memory_space<vmem>>, vector<1x192x128xf32>
    %95 = vector.shape_cast %94 : vector<1x192x128xf32> to vector<192x128xf32>
    %cst_55 = arith.constant dense<0.000000e+00> : vector<8x128xf32>
    %96 = tpu.matmul %93, %95, %cst_55 {dimension_numbers = #tpu.dot_dimension_numbers<[1], [0], [0], [1], [0, 0, 1, 1], [], []>} : vector<8x192xf32>, vector<192x128xf32>, vector<8x128xf32> -> vector<8x128xf32>
    %97 = arith.addf %91, %96 : vector<8x128xf32>
    %98 = vector.extract_strided_slice %84 {offsets = [2, 0, 0], sizes = [1, 8, 192], strides = [1, 1, 1]} : vector<8x8x192xf32> to vector<1x8x192xf32>
    %99 = vector.shape_cast %98 : vector<1x8x192xf32> to vector<8x192xf32>
    %c2_56 = arith.constant 2 : index
    %c0_57 = arith.constant 0 : index
    %c0_58 = arith.constant 0 : index
    %100 = vector.load %arg8[%c2_56, %c0_57, %c0_58] : memref<8x192x128xf32, #tpu.memory_space<vmem>>, vector<1x192x128xf32>
    %101 = vector.shape_cast %100 : vector<1x192x128xf32> to vector<192x128xf32>
    %cst_59 = arith.constant dense<0.000000e+00> : vector<8x128xf32>
    %102 = tpu.matmul %99, %101, %cst_59 {dimension_numbers = #tpu.dot_dimension_numbers<[1], [0], [0], [1], [0, 0, 1, 1], [], []>} : vector<8x192xf32>, vector<192x128xf32>, vector<8x128xf32> -> vector<8x128xf32>
    %103 = arith.addf %97, %102 : vector<8x128xf32>
    %104 = vector.extract_strided_slice %84 {offsets = [3, 0, 0], sizes = [1, 8, 192], strides = [1, 1, 1]} : vector<8x8x192xf32> to vector<1x8x192xf32>
    %105 = vector.shape_cast %104 : vector<1x8x192xf32> to vector<8x192xf32>
    %c3 = arith.constant 3 : index
    %c0_60 = arith.constant 0 : index
    %c0_61 = arith.constant 0 : index
    %106 = vector.load %arg8[%c3, %c0_60, %c0_61] : memref<8x192x128xf32, #tpu.memory_space<vmem>>, vector<1x192x128xf32>
    %107 = vector.shape_cast %106 : vector<1x192x128xf32> to vector<192x128xf32>
    %cst_62 = arith.constant dense<0.000000e+00> : vector<8x128xf32>
    %108 = tpu.matmul %105, %107, %cst_62 {dimension_numbers = #tpu.dot_dimension_numbers<[1], [0], [0], [1], [0, 0, 1, 1], [], []>} : vector<8x192xf32>, vector<192x128xf32>, vector<8x128xf32> -> vector<8x128xf32>
    %109 = arith.addf %103, %108 : vector<8x128xf32>
    %110 = vector.extract_strided_slice %84 {offsets = [4, 0, 0], sizes = [1, 8, 192], strides = [1, 1, 1]} : vector<8x8x192xf32> to vector<1x8x192xf32>
    %111 = vector.shape_cast %110 : vector<1x8x192xf32> to vector<8x192xf32>
    %c4 = arith.constant 4 : index
    %c0_63 = arith.constant 0 : index
    %c0_64 = arith.constant 0 : index
    %112 = vector.load %arg8[%c4, %c0_63, %c0_64] : memref<8x192x128xf32, #tpu.memory_space<vmem>>, vector<1x192x128xf32>
    %113 = vector.shape_cast %112 : vector<1x192x128xf32> to vector<192x128xf32>
    %cst_65 = arith.constant dense<0.000000e+00> : vector<8x128xf32>
    %114 = tpu.matmul %111, %113, %cst_65 {dimension_numbers = #tpu.dot_dimension_numbers<[1], [0], [0], [1], [0, 0, 1, 1], [], []>} : vector<8x192xf32>, vector<192x128xf32>, vector<8x128xf32> -> vector<8x128xf32>
    %115 = arith.addf %109, %114 : vector<8x128xf32>
    %116 = vector.extract_strided_slice %84 {offsets = [5, 0, 0], sizes = [1, 8, 192], strides = [1, 1, 1]} : vector<8x8x192xf32> to vector<1x8x192xf32>
    %117 = vector.shape_cast %116 : vector<1x8x192xf32> to vector<8x192xf32>
    %c5 = arith.constant 5 : index
    %c0_66 = arith.constant 0 : index
    %c0_67 = arith.constant 0 : index
    %118 = vector.load %arg8[%c5, %c0_66, %c0_67] : memref<8x192x128xf32, #tpu.memory_space<vmem>>, vector<1x192x128xf32>
    %119 = vector.shape_cast %118 : vector<1x192x128xf32> to vector<192x128xf32>
    %cst_68 = arith.constant dense<0.000000e+00> : vector<8x128xf32>
    %120 = tpu.matmul %117, %119, %cst_68 {dimension_numbers = #tpu.dot_dimension_numbers<[1], [0], [0], [1], [0, 0, 1, 1], [], []>} : vector<8x192xf32>, vector<192x128xf32>, vector<8x128xf32> -> vector<8x128xf32>
    %121 = arith.addf %115, %120 : vector<8x128xf32>
    %122 = vector.extract_strided_slice %84 {offsets = [6, 0, 0], sizes = [1, 8, 192], strides = [1, 1, 1]} : vector<8x8x192xf32> to vector<1x8x192xf32>
    %123 = vector.shape_cast %122 : vector<1x8x192xf32> to vector<8x192xf32>
    %c6 = arith.constant 6 : index
    %c0_69 = arith.constant 0 : index
    %c0_70 = arith.constant 0 : index
    %124 = vector.load %arg8[%c6, %c0_69, %c0_70] : memref<8x192x128xf32, #tpu.memory_space<vmem>>, vector<1x192x128xf32>
    %125 = vector.shape_cast %124 : vector<1x192x128xf32> to vector<192x128xf32>
    %cst_71 = arith.constant dense<0.000000e+00> : vector<8x128xf32>
    %126 = tpu.matmul %123, %125, %cst_71 {dimension_numbers = #tpu.dot_dimension_numbers<[1], [0], [0], [1], [0, 0, 1, 1], [], []>} : vector<8x192xf32>, vector<192x128xf32>, vector<8x128xf32> -> vector<8x128xf32>
    %127 = arith.addf %121, %126 : vector<8x128xf32>
    %128 = vector.extract_strided_slice %84 {offsets = [7, 0, 0], sizes = [1, 8, 192], strides = [1, 1, 1]} : vector<8x8x192xf32> to vector<1x8x192xf32>
    %129 = vector.shape_cast %128 : vector<1x8x192xf32> to vector<8x192xf32>
    %c7 = arith.constant 7 : index
    %c0_72 = arith.constant 0 : index
    %c0_73 = arith.constant 0 : index
    %130 = vector.load %arg8[%c7, %c0_72, %c0_73] : memref<8x192x128xf32, #tpu.memory_space<vmem>>, vector<1x192x128xf32>
    %131 = vector.shape_cast %130 : vector<1x192x128xf32> to vector<192x128xf32>
    %cst_74 = arith.constant dense<0.000000e+00> : vector<8x128xf32>
    %132 = tpu.matmul %129, %131, %cst_74 {dimension_numbers = #tpu.dot_dimension_numbers<[1], [0], [0], [1], [0, 0, 1, 1], [], []>} : vector<8x192xf32>, vector<192x128xf32>, vector<8x128xf32> -> vector<8x128xf32>
    %133 = arith.addf %127, %132 : vector<8x128xf32>
    %c0_75 = arith.constant 0 : index
    %c0_76 = arith.constant 0 : index
    %134 = vector.load %arg9[%c0_75, %c0_76] : memref<1x128xf32, #tpu.memory_space<vmem>>, vector<1x128xf32>
    %135 = vector.broadcast %134 : vector<1x128xf32> to vector<8x128xf32>
    %136 = arith.addf %133, %135 : vector<8x128xf32>
    %cst_77 = arith.constant 0.000000e+00 : f32
    %137 = vector.broadcast %cst_77 : f32 to vector<8x128xf32>
    %138 = arith.maximumf %136, %137 : vector<8x128xf32>
    %c0_78 = arith.constant 0 : index
    %c0_79 = arith.constant 0 : index
    %139 = vector.load %arg10[%c0_78, %c0_79] : memref<128x128xf32, #tpu.memory_space<vmem>>, vector<128x128xf32>
    %cst_80 = arith.constant dense<0.000000e+00> : vector<8x128xf32>
    %140 = tpu.matmul %138, %139, %cst_80 {dimension_numbers = #tpu.dot_dimension_numbers<[1], [0], [0], [1], [0, 0, 1, 1], [], []>} : vector<8x128xf32>, vector<128x128xf32>, vector<8x128xf32> -> vector<8x128xf32>
    %c0_81 = arith.constant 0 : index
    %c0_82 = arith.constant 0 : index
    %141 = vector.load %arg11[%c0_81, %c0_82] : memref<1x128xf32, #tpu.memory_space<vmem>>, vector<1x128xf32>
    %142 = vector.broadcast %141 : vector<1x128xf32> to vector<8x128xf32>
    %143 = arith.addf %140, %142 : vector<8x128xf32>
    %c0_83 = arith.constant 0 : index
    %c0_84 = arith.constant 0 : index
    %144 = vector.load %arg12[%c0_83, %c0_84] : memref<8x128xf32, #tpu.memory_space<vmem>>, vector<8x128xf32>
    tpu.vector_store %arg12[%c0_83, %c0_84], %143 {strides = array<i32>} : memref<8x128xf32, #tpu.memory_space<vmem>>, vector<8x128xf32>,
    return
  }
  func.func @transform_0(%arg0: i32) -> (i32, i32, i32) {
    %c0_i32 = arith.constant 0 : i32
    %c0_i32_0 = arith.constant 0 : i32
    %c0_i32_1 = arith.constant 0 : i32
    return %c0_i32, %arg0, %c0_i32_0 : i32, i32, i32
  }
  func.func @transform_1(%arg0: i32) -> (i32, i32, i32) {
    %c0_i32 = arith.constant 0 : i32
    %c0_i32_0 = arith.constant 0 : i32
    %c0_i32_1 = arith.constant 0 : i32
    %c0_i32_2 = arith.constant 0 : i32
    return %c0_i32, %c0_i32_0, %c0_i32_1 : i32, i32, i32
  }
  func.func @transform_2(%arg0: i32) -> (i32, i32) {
    %c0_i32 = arith.constant 0 : i32
    %c0_i32_0 = arith.constant 0 : i32
    %c0_i32_1 = arith.constant 0 : i32
    return %c0_i32, %c0_i32_0 : i32, i32
  }
  func.func @transform_3(%arg0: i32) -> (i32, i32, i32) {
    %c0_i32 = arith.constant 0 : i32
    %c0_i32_0 = arith.constant 0 : i32
    %c0_i32_1 = arith.constant 0 : i32
    %c0_i32_2 = arith.constant 0 : i32
    return %c0_i32, %c0_i32_0, %c0_i32_1 : i32, i32, i32
  }
  func.func @transform_4(%arg0: i32) -> (i32, i32) {
    %c0_i32 = arith.constant 0 : i32
    %c0_i32_0 = arith.constant 0 : i32
    %c0_i32_1 = arith.constant 0 : i32
    return %c0_i32, %c0_i32_0 : i32, i32
  }
  func.func @transform_5(%arg0: i32) -> (i32, i32, i32) {
    %c0_i32 = arith.constant 0 : i32
    %c0_i32_0 = arith.constant 0 : i32
    %c0_i32_1 = arith.constant 0 : i32
    %c0_i32_2 = arith.constant 0 : i32
    return %c0_i32, %c0_i32_0, %c0_i32_1 : i32, i32, i32
  }
  func.func @transform_6(%arg0: i32) -> (i32, i32) {
    %c0_i32 = arith.constant 0 : i32
    %c0_i32_0 = arith.constant 0 : i32
    %c0_i32_1 = arith.constant 0 : i32
    return %c0_i32, %c0_i32_0 : i32, i32
  }
  func.func @transform_7(%arg0: i32) -> (i32, i32, i32) {
    %c0_i32 = arith.constant 0 : i32
    %c0_i32_0 = arith.constant 0 : i32
    %c0_i32_1 = arith.constant 0 : i32
    %c0_i32_2 = arith.constant 0 : i32
    return %c0_i32, %c0_i32_0, %c0_i32_1 : i32, i32, i32
  }
  func.func @transform_8(%arg0: i32) -> (i32, i32) {
    %c0_i32 = arith.constant 0 : i32
    %c0_i32_0 = arith.constant 0 : i32
    %c0_i32_1 = arith.constant 0 : i32
    return %c0_i32, %c0_i32_0 : i32, i32
  }
  func.func @transform_9(%arg0: i32) -> (i32, i32) {
    %c0_i32 = arith.constant 0 : i32
    %c0_i32_0 = arith.constant 0 : i32
    %c0_i32_1 = arith.constant 0 : i32
    return %c0_i32, %c0_i32_0 : i32, i32
  }
  func.func @transform_10(%arg0: i32) -> (i32, i32) {
    %c0_i32 = arith.constant 0 : i32
    %c0_i32_0 = arith.constant 0 : i32
    %c0_i32_1 = arith.constant 0 : i32
    return %c0_i32, %c0_i32_0 : i32, i32
  }
  func.func @transform_11(%arg0: i32) -> (i32, i32) {
    %c0_i32 = arith.constant 0 : i32
    %c0_i32_0 = arith.constant 0 : i32
    return %arg0, %c0_i32 : i32, i32
  }
}

</mosaic_0001>

<llo_original>
// kernel: tpu_custom_call.1
$region0: #{tpu_custom_call.1}
  #allocation0 [shape = 'u32[]', space=smem, size = 0x4, offset = 0x4, fixed_abs, tag = 'smem constant byte address 0x4 - core index']
  #allocation1 [shape = 'u32[144,128]{1,0:T(1,128)}', space=vmem, size = 0x12000, scoped, tag = 'internal scratch']
  %s0 = inlined_call_operand.hbm [shape: f32[64,8,192], index: 0, kind: input, shape index: {}]
  %s1 = inlined_call_operand.hbm [shape: f32[3,192,192], index: 1, kind: input, shape index: {}]
  %s2 = inlined_call_operand.vmem [shape: f32[1,192], index: 2, kind: input, shape index: {}]
  %s3 = inlined_call_operand.hbm [shape: f32[3,192,192], index: 3, kind: input, shape index: {}]
  %s4 = inlined_call_operand.vmem [shape: f32[1,192], index: 4, kind: input, shape index: {}]
  %s5 = inlined_call_operand.hbm [shape: f32[3,192,192], index: 5, kind: input, shape index: {}]
  %s6 = inlined_call_operand.vmem [shape: f32[1,192], index: 6, kind: input, shape index: {}]
  %s7 = inlined_call_operand.hbm [shape: f32[8,192,128], index: 7, kind: input, shape index: {}]
  %s8 = inlined_call_operand.vmem [shape: f32[1,128], index: 8, kind: input, shape index: {}]
  %s9 = inlined_call_operand.hbm [shape: f32[128,128], index: 9, kind: input, shape index: {}]
  %s10 = inlined_call_operand.vmem [shape: f32[1,128], index: 10, kind: input, shape index: {}]
  %s11 = inlined_call_operand.hbm [shape: f32[8,128], index: 11, kind: output, shape index: {}]
  %s12 = sld [smem:[#allocation0]]
  $region78: #{tpu_custom_call.1} parent=0
    _
  %s14 = ssub.s32 1, %s12
  %s15 = scalar_select 0, %s14, %s12
  $region1: #{tpu_custom_call.1} parent=0
    #allocation2 [shape = 'u8[524288]{0}', space=vmem, size = 0x80000, scoped, tag = 'input window, operand 0, single buffered']
    #allocation3 [shape = 's32[1]{0}', space=sflag, size = 0x4, scoped, tag = 'scoped memory for tpu_custom_call.1']
    #allocation4 [shape = 's32[1]{0}', space=sflag, size = 0x4, scoped, tag = 'scoped memory for tpu_custom_call.1']
    #allocation5 [shape = 'u8[589824]{0}', space=vmem, size = 0x90000, scoped, tag = 'input window, operand 1, single buffered']
    #allocation6 [shape = 's32[1]{0}', space=sflag, size = 0x4, scoped, tag = 'scoped memory for tpu_custom_call.1']
    #allocation7 [shape = 'u8[589824]{0}', space=vmem, size = 0x90000, scoped, tag = 'input window, operand 3, single buffered']
    #allocation8 [shape = 'u8[589824]{0}', space=vmem, size = 0x90000, scoped, tag = 'input window, operand 5, single buffered']
    #allocation9 [shape = 's32[1]{0}', space=sflag, size = 0x4, scoped, tag = 'scoped memory for tpu_custom_call.1']
    #allocation10 [shape = 'u8[786432]{0}', space=vmem, size = 0xc0000, scoped, tag = 'input window, operand 7, single buffered']
    #allocation11 [shape = 'u8[65536]{0}', space=vmem, size = 0x10000, scoped, tag = 'input window, operand 9, single buffered']
    #allocation12 [shape = 's32[1]{0}', space=sflag, size = 0x4, scoped, tag = 'scoped memory for tpu_custom_call.1']
    #allocation13 [shape = 'u8[4096]{0}', space=vmem, size = 0x1000, scoped, tag = 'output window, operand 0, single buffered']
    %16 = vsyncpa [#allocation3], 0
    %17 = vsyncpa [#allocation6], 0
    %18 = vsyncpa [#allocation9], 0
    %19 = vsyncpa [#allocation12], 0
    %20 = vsyncpa [#allocation4], 0
    // Predicated region
    $region2: #{tpu_custom_call.1} parent=1 // pred_check
      _
    $region3: #{tpu_custom_call.1} parent=1 // pred_check_branch
      %22 = sbr.rel (0) target = $region5
    $region4: #{tpu_custom_call.1} parent=1 // pred_region
      %s24 = ssub.s32 16384, 16384
      %25 = vsyncadd [#allocation3], %s24
      %s26 = sshll.u32 [#allocation2], 4
      %s27 = int_to_ptr.vmem [resolvable:$true] %s26
      %32 = dma.hbm_to_vmem [thread:$0]  %s0, 16384, %s27, [#allocation3], 256, 256, 16
    $region5: #{tpu_custom_call.1} parent=1 // pred_fallthru
      _
    // Predicated region
    $region6: #{tpu_custom_call.1} parent=1 // pred_check
      _
    $region7: #{tpu_custom_call.1} parent=1 // pred_check_branch
      %34 = sbr.rel (0) target = $region9
    $region8: #{tpu_custom_call.1} parent=1 // pred_region
      %s36 = ssub.s32 18432, 18432
      %37 = vsyncadd [#allocation6], %s36
      %s38 = sshll.u32 [#allocation5], 4
      %s39 = int_to_ptr.vmem [resolvable:$true] %s38
      %44 = dma.hbm_to_vmem [thread:$0]  %s1, 18432, %s39, [#allocation6], 256, 256, 16
    $region9: #{tpu_custom_call.1} parent=1 // pred_fallthru
      _
    // Predicated region
    $region10: #{tpu_custom_call.1} parent=1 // pred_check
      _
    $region11: #{tpu_custom_call.1} parent=1 // pred_check_branch
      %46 = sbr.rel (0) target = $region13
    $region12: #{tpu_custom_call.1} parent=1 // pred_region
      _
    $region13: #{tpu_custom_call.1} parent=1 // pred_fallthru
      _
    // Predicated region
    $region14: #{tpu_custom_call.1} parent=1 // pred_check
      _
    $region15: #{tpu_custom_call.1} parent=1 // pred_check_branch
      %48 = sbr.rel (0) target = $region17
    $region16: #{tpu_custom_call.1} parent=1 // pred_region
      %s50 = ssub.s32 18432, 18432
      %51 = vsyncadd [#allocation6], %s50
      %s52 = sshll.u32 [#allocation7], 4
      %s53 = int_to_ptr.vmem [resolvable:$true] %s52
      %58 = dma.hbm_to_vmem [thread:$0]  %s3, 18432, %s53, [#allocation6], 256, 256, 16
    $region17: #{tpu_custom_call.1} parent=1 // pred_fallthru
      _
    // Predicated region
    $region18: #{tpu_custom_call.1} parent=1 // pred_check
      _
    $region19: #{tpu_custom_call.1} parent=1 // pred_check_branch
      %60 = sbr.rel (0) target = $region21
    $region20: #{tpu_custom_call.1} parent=1 // pred_region
      _
    $region21: #{tpu_custom_call.1} parent=1 // pred_fallthru
      _
    // Predicated region
    $region22: #{tpu_custom_call.1} parent=1 // pred_check
      _
    $region23: #{tpu_custom_call.1} parent=1 // pred_check_branch
      %62 = sbr.rel (0) target = $region25
    $region24: #{tpu_custom_call.1} parent=1 // pred_region
      %s64 = ssub.s32 18432, 18432
      %65 = vsyncadd [#allocation9], %s64
      %s66 = sshll.u32 [#allocation8], 4
      %s67 = int_to_ptr.vmem [resolvable:$true] %s66
      %72 = dma.hbm_to_vmem [thread:$0]  %s5, 18432, %s67, [#allocation9], 256, 256, 16
    $region25: #{tpu_custom_call.1} parent=1 // pred_fallthru
      _
    // Predicated region
    $region26: #{tpu_custom_call.1} parent=1 // pred_check
      _
    $region27: #{tpu_custom_call.1} parent=1 // pred_check_branch
      %74 = sbr.rel (0) target = $region29
    $region28: #{tpu_custom_call.1} parent=1 // pred_region
      _
    $region29: #{tpu_custom_call.1} parent=1 // pred_fallthru
      _
    // Predicated region
    $region30: #{tpu_custom_call.1} parent=1 // pred_check
      _
    $region31: #{tpu_custom_call.1} parent=1 // pred_check_branch
      %76 = sbr.rel (0) target = $region33
    $region32: #{tpu_custom_call.1} parent=1 // pred_region
      %s78 = ssub.s32 24576, 24576
      %79 = vsyncadd [#allocation9], %s78
      %s80 = sshll.u32 [#allocation10], 4
      %s81 = int_to_ptr.vmem [resolvable:$true] %s80
      %86 = dma.hbm_to_vmem [thread:$0]  %s7, 24576, %s81, [#allocation9], 128, 128, 8
    $region33: #{tpu_custom_call.1} parent=1 // pred_fallthru
      _
    // Predicated region
    $region34: #{tpu_custom_call.1} parent=1 // pred_check
      _
    $region35: #{tpu_custom_call.1} parent=1 // pred_check_branch
      %88 = sbr.rel (0) target = $region37
    $region36: #{tpu_custom_call.1} parent=1 // pred_region
      _
    $region37: #{tpu_custom_call.1} parent=1 // pred_fallthru
      _
    // Predicated region
    $region38: #{tpu_custom_call.1} parent=1 // pred_check
      _
    $region39: #{tpu_custom_call.1} parent=1 // pred_check_branch
      %90 = sbr.rel (0) target = $region41
    $region40: #{tpu_custom_call.1} parent=1 // pred_region
      %s92 = ssub.s32 2048, 2048
      %93 = vsyncadd [#allocation12], %s92
      %s94 = sshll.u32 [#allocation11], 4
      %s95 = int_to_ptr.vmem [resolvable:$true] %s94
      %100 = dma.hbm_to_vmem [thread:$0]  %s9, 2048, %s95, [#allocation12], 128, 128, 8
    $region41: #{tpu_custom_call.1} parent=1 // pred_fallthru
      _
    // Predicated region
    $region42: #{tpu_custom_call.1} parent=1 // pred_check
      _
    $region43: #{tpu_custom_call.1} parent=1 // pred_check_branch
      %102 = sbr.rel (0) target = $region45
    $region44: #{tpu_custom_call.1} parent=1 // pred_region
      _
    $region45: #{tpu_custom_call.1} parent=1 // pred_fallthru
      _
    // Predicated region
    $region46: #{tpu_custom_call.1} parent=1 // pred_check
      _
    $region47: #{tpu_custom_call.1} parent=1 // pred_check_branch
      %104 = sbr.rel (0) target = $region49
    $region48: #{tpu_custom_call.1} parent=1 // pred_region
      %105 = dma.done [#allocation3], 16384
    $region49: #{tpu_custom_call.1} parent=1 // pred_fallthru
      _
    // Predicated region
    $region50: #{tpu_custom_call.1} parent=1 // pred_check
      _
    $region51: #{tpu_custom_call.1} parent=1 // pred_check_branch
      %107 = sbr.rel (0) target = $region53
    $region52: #{tpu_custom_call.1} parent=1 // pred_region
      %108 = dma.done [#allocation6], 18432
    $region53: #{tpu_custom_call.1} parent=1 // pred_fallthru
      _
    // Predicated region
    $region54: #{tpu_custom_call.1} parent=1 // pred_check
      _
    $region55: #{tpu_custom_call.1} parent=1 // pred_check_branch
      %110 = sbr.rel (0) target = $region57
    $region56: #{tpu_custom_call.1} parent=1 // pred_region
      %111 = dma.done [#allocation6], 18432
    $region57: #{tpu_custom_call.1} parent=1 // pred_fallthru
      _
    // Predicated region
    $region58: #{tpu_custom_call.1} parent=1 // pred_check
      _
    $region59: #{tpu_custom_call.1} parent=1 // pred_check_branch
      %113 = sbr.rel (0) target = $region61
    $region60: #{tpu_custom_call.1} parent=1 // pred_region
      %114 = dma.done [#allocation9], 18432
    $region61: #{tpu_custom_call.1} parent=1 // pred_fallthru
      _
    // Predicated region
    $region62: #{tpu_custom_call.1} parent=1 // pred_check
      _
    $region63: #{tpu_custom_call.1} parent=1 // pred_check_branch
      %116 = sbr.rel (0) target = $region65
    $region64: #{tpu_custom_call.1} parent=1 // pred_region
      %117 = dma.done [#allocation9], 24576
    $region65: #{tpu_custom_call.1} parent=1 // pred_fallthru
      _
    // Predicated region
    $region66: #{tpu_custom_call.1} parent=1 // pred_check
      _
    $region67: #{tpu_custom_call.1} parent=1 // pred_check_branch
      %119 = sbr.rel (0) target = $region69
    $region68: #{tpu_custom_call.1} parent=1 // pred_region
      %120 = dma.done [#allocation12], 2048
    $region69: #{tpu_custom_call.1} parent=1 // pred_fallthru
      _
    %v121 = vld [vmem:[#allocation2] sm:$0xff]
    %v122 = vld [vmem:[#allocation2 + $0x8] sm:$0xff]
    %v123 = vld [vmem:[#allocation2 + $0x10] sm:$0xff]
    %v124 = vld [vmem:[#allocation2 + $0x18] sm:$0xff]
    %v125 = vld [vmem:[#allocation2 + $0x20] sm:$0xff]
    %v126 = vld [vmem:[#allocation2 + $0x28] sm:$0xff]
    %v127 = vld [vmem:[#allocation2 + $0x30] sm:$0xff]
    %v128 = vld [vmem:[#allocation2 + $0x38] sm:$0xff]
    %v129 = vld [vmem:[#allocation2 + $0x40] sm:$0xff]
    %v130 = vld [vmem:[#allocation2 + $0x48] sm:$0xff]
    %v131 = vld [vmem:[#allocation2 + $0x50] sm:$0xff]
    %v132 = vld [vmem:[#allocation2 + $0x58] sm:$0xff]
    %v133 = vld [vmem:[#allocation2 + $0x60] sm:$0xff]
    %v134 = vld [vmem:[#allocation2 + $0x68] sm:$0xff]
    %v135 = vld [vmem:[#allocation2 + $0x70] sm:$0xff]
    %v136 = vld [vmem:[#allocation2 + $0x78] sm:$0xff]
    %v137 = vld [vmem:[#allocation2 + $0x80] sm:$0xff]
    %v138 = vld [vmem:[#allocation2 + $0x88] sm:$0xff]
    %v139 = vld [vmem:[#allocation2 + $0x90] sm:$0xff]
    %v140 = vld [vmem:[#allocation2 + $0x98] sm:$0xff]
    %v141 = vld [vmem:[#allocation2 + $0xa0] sm:$0xff]
    %v142 = vld [vmem:[#allocation2 + $0xa8] sm:$0xff]
    %v143 = vld [vmem:[#allocation2 + $0xb0] sm:$0xff]
    %v144 = vld [vmem:[#allocation2 + $0xb8] sm:$0xff]
    %v145 = vld [vmem:[#allocation2 + $0xc0] sm:$0xff]
    %v146 = vld [vmem:[#allocation2 + $0xc8] sm:$0xff]
    %v147 = vld [vmem:[#allocation2 + $0xd0] sm:$0xff]
    %v148 = vld [vmem:[#allocation2 + $0xd8] sm:$0xff]
    %v149 = vld [vmem:[#allocation2 + $0xe0] sm:$0xff]
    %v150 = vld [vmem:[#allocation2 + $0xe8] sm:$0xff]
    %v151 = vld [vmem:[#allocation2 + $0xf0] sm:$0xff]
    %v152 = vld [vmem:[#allocation2 + $0xf8] sm:$0xff]
    %v153 = vld [vmem:[#allocation2 + $0x100] sm:$0xff]
    %v154 = vld [vmem:[#allocation2 + $0x108] sm:$0xff]
    %v155 = vld [vmem:[#allocation2 + $0x110] sm:$0xff]
    %v156 = vld [vmem:[#allocation2 + $0x118] sm:$0xff]
    %v157 = vld [vmem:[#allocation2 + $0x120] sm:$0xff]
    %v158 = vld [vmem:[#allocation2 + $0x128] sm:$0xff]
    %v159 = vld [vmem:[#allocation2 + $0x130] sm:$0xff]
    %v160 = vld [vmem:[#allocation2 + $0x138] sm:$0xff]
    %v161 = vld [vmem:[#allocation2 + $0x140] sm:$0xff]
    %v162 = vld [vmem:[#allocation2 + $0x148] sm:$0xff]
    %v163 = vld [vmem:[#allocation2 + $0x150] sm:$0xff]
    %v164 = vld [vmem:[#allocation2 + $0x158] sm:$0xff]
    %v165 = vld [vmem:[#allocation2 + $0x160] sm:$0xff]
    %v166 = vld [vmem:[#allocation2 + $0x168] sm:$0xff]
    %v167 = vld [vmem:[#allocation2 + $0x170] sm:$0xff]
    %v168 = vld [vmem:[#allocation2 + $0x178] sm:$0xff]
    %v169 = vld [vmem:[#allocation2 + $0x180] sm:$0xff]
    %v170 = vld [vmem:[#allocation2 + $0x188] sm:$0xff]
    %v171 = vld [vmem:[#allocation2 + $0x190] sm:$0xff]
    %v172 = vld [vmem:[#allocation2 + $0x198] sm:$0xff]
    %v173 = vld [vmem:[#allocation2 + $0x1a0] sm:$0xff]
    %v174 = vld [vmem:[#allocation2 + $0x1a8] sm:$0xff]
    %v175 = vld [vmem:[#allocation2 + $0x1b0] sm:$0xff]
    %v176 = vld [vmem:[#allocation2 + $0x1b8] sm:$0xff]
    %v177 = vld [vmem:[#allocation2 + $0x1c0] sm:$0xff]
    %v178 = vld [vmem:[#allocation2 + $0x1c8] sm:$0xff]
    %v179 = vld [vmem:[#allocation2 + $0x1d0] sm:$0xff]
    %v180 = vld [vmem:[#allocation2 + $0x1d8] sm:$0xff]
    %v181 = vld [vmem:[#allocation2 + $0x1e0] sm:$0xff]
    %v182 = vld [vmem:[#allocation2 + $0x1e8] sm:$0xff]
    %v183 = vld [vmem:[#allocation2 + $0x1f0] sm:$0xff]
    %v184 = vld [vmem:[#allocation2 + $0x1f8] sm:$0xff]
    %v185 = vld [vmem:[#allocation2 + $0x200] sm:$0xff]
    %v186 = vld [vmem:[#allocation2 + $0x208] sm:$0xff]
    %v187 = vld [vmem:[#allocation2 + $0x210] sm:$0xff]
    %v188 = vld [vmem:[#allocation2 + $0x218] sm:$0xff]
    %v189 = vld [vmem:[#allocation2 + $0x220] sm:$0xff]
    %v190 = vld [vmem:[#allocation2 + $0x228] sm:$0xff]
    %v191 = vld [vmem:[#allocation2 + $0x230] sm:$0xff]
    %v192 = vld [vmem:[#allocation2 + $0x238] sm:$0xff]
    %v193 = vld [vmem:[#allocation2 + $0x240] sm:$0xff]
    %v194 = vld [vmem:[#allocation2 + $0x248] sm:$0xff]
    %v195 = vld [vmem:[#allocation2 + $0x250] sm:$0xff]
    %v196 = vld [vmem:[#allocation2 + $0x258] sm:$0xff]
    %v197 = vld [vmem:[#allocation2 + $0x260] sm:$0xff]
    %v198 = vld [vmem:[#allocation2 + $0x268] sm:$0xff]
    %v199 = vld [vmem:[#allocation2 + $0x270] sm:$0xff]
    %v200 = vld [vmem:[#allocation2 + $0x278] sm:$0xff]
    %v201 = vld [vmem:[#allocation2 + $0x280] sm:$0xff]
    %v202 = vld [vmem:[#allocation2 + $0x288] sm:$0xff]
    %v203 = vld [vmem:[#allocation2 + $0x290] sm:$0xff]
    %v204 = vld [vmem:[#allocation2 + $0x298] sm:$0xff]
    %v205 = vld [vmem:[#allocation2 + $0x2a0] sm:$0xff]
    %v206 = vld [vmem:[#allocation2 + $0x2a8] sm:$0xff]
    %v207 = vld [vmem:[#allocation2 + $0x2b0] sm:$0xff]
    %v208 = vld [vmem:[#allocation2 + $0x2b8] sm:$0xff]
    %v209 = vld [vmem:[#allocation2 + $0x2c0] sm:$0xff]
    %v210 = vld [vmem:[#allocation2 + $0x2c8] sm:$0xff]
    %v211 = vld [vmem:[#allocation2 + $0x2d0] sm:$0xff]
    %v212 = vld [vmem:[#allocation2 + $0x2d8] sm:$0xff]
    %v213 = vld [vmem:[#allocation2 + $0x2e0] sm:$0xff]
    %v214 = vld [vmem:[#allocation2 + $0x2e8] sm:$0xff]
    %v215 = vld [vmem:[#allocation2 + $0x2f0] sm:$0xff]
    %v216 = vld [vmem:[#allocation2 + $0x2f8] sm:$0xff]
    %v217 = vld [vmem:[#allocation2 + $0x300] sm:$0xff]
    %v218 = vld [vmem:[#allocation2 + $0x308] sm:$0xff]
    %v219 = vld [vmem:[#allocation2 + $0x310] sm:$0xff]
    %v220 = vld [vmem:[#allocation2 + $0x318] sm:$0xff]
    %v221 = vld [vmem:[#allocation2 + $0x320] sm:$0xff]
    %v222 = vld [vmem:[#allocation2 + $0x328] sm:$0xff]
    %v223 = vld [vmem:[#allocation2 + $0x330] sm:$0xff]
    %v224 = vld [vmem:[#allocation2 + $0x338] sm:$0xff]
    %v225 = vld [vmem:[#allocation2 + $0x340] sm:$0xff]
    %v226 = vld [vmem:[#allocation2 + $0x348] sm:$0xff]
    %v227 = vld [vmem:[#allocation2 + $0x350] sm:$0xff]
    %v228 = vld [vmem:[#allocation2 + $0x358] sm:$0xff]
    %v229 = vld [vmem:[#allocation2 + $0x360] sm:$0xff]
    %v230 = vld [vmem:[#allocation2 + $0x368] sm:$0xff]
    %v231 = vld [vmem:[#allocation2 + $0x370] sm:$0xff]
    %v232 = vld [vmem:[#allocation2 + $0x378] sm:$0xff]
    %v233 = vld [vmem:[#allocation2 + $0x380] sm:$0xff]
    %v234 = vld [vmem:[#allocation2 + $0x388] sm:$0xff]
    %v235 = vld [vmem:[#allocation2 + $0x390] sm:$0xff]
    %v236 = vld [vmem:[#allocation2 + $0x398] sm:$0xff]
    %v237 = vld [vmem:[#allocation2 + $0x3a0] sm:$0xff]
    %v238 = vld [vmem:[#allocation2 + $0x3a8] sm:$0xff]
    %v239 = vld [vmem:[#allocation2 + $0x3b0] sm:$0xff]
    %v240 = vld [vmem:[#allocation2 + $0x3b8] sm:$0xff]
    %v241 = vld [vmem:[#allocation2 + $0x3c0] sm:$0xff]
    %v242 = vld [vmem:[#allocation2 + $0x3c8] sm:$0xff]
    %v243 = vld [vmem:[#allocation2 + $0x3d0] sm:$0xff]
    %v244 = vld [vmem:[#allocation2 + $0x3d8] sm:$0xff]
    %v245 = vld [vmem:[#allocation2 + $0x3e0] sm:$0xff]
    %v246 = vld [vmem:[#allocation2 + $0x3e8] sm:$0xff]
    %v247 = vld [vmem:[#allocation2 + $0x3f0] sm:$0xff]
    %v248 = vld [vmem:[#allocation2 + $0x3f8] sm:$0xff]
    %v249 = vld [vmem:[#allocation5] sm:$0xff]
    %v250 = vld [vmem:[#allocation5 + $0x8] sm:$0xff]
    %v251 = vld [vmem:[#allocation5 + $0x10] sm:$0xff]
    %v252 = vld [vmem:[#allocation5 + $0x18] sm:$0xff]
    %v253 = vld [vmem:[#allocation5 + $0x20] sm:$0xff]
    %v254 = vld [vmem:[#allocation5 + $0x28] sm:$0xff]
    %v255 = vld [vmem:[#allocation5 + $0x30] sm:$0xff]
    %v256 = vld [vmem:[#allocation5 + $0x38] sm:$0xff]
    %v257 = vld [vmem:[#allocation5 + $0x40] sm:$0xff]
    %v258 = vld [vmem:[#allocation5 + $0x48] sm:$0xff]
    %v259 = vld [vmem:[#allocation5 + $0x50] sm:$0xff]
    %v260 = vld [vmem:[#allocation5 + $0x58] sm:$0xff]
    %v261 = vld [vmem:[#allocation5 + $0x60] sm:$0xff]
    %v262 = vld [vmem:[#allocation5 + $0x68] sm:$0xff]
    %v263 = vld [vmem:[#allocation5 + $0x70] sm:$0xff]
    %v264 = vld [vmem:[#allocation5 + $0x78] sm:$0xff]
    %v265 = vld [vmem:[#allocation5 + $0x80] sm:$0xff]
    %v266 = vld [vmem:[#allocation5 + $0x88] sm:$0xff]
    %v267 = vld [vmem:[#allocation5 + $0x90] sm:$0xff]
    %v268 = vld [vmem:[#allocation5 + $0x98] sm:$0xff]
    %v269 = vld [vmem:[#allocation5 + $0xa0] sm:$0xff]
    %v270 = vld [vmem:[#allocation5 + $0xa8] sm:$0xff]
    %v271 = vld [vmem:[#allocation5 + $0xb0] sm:$0xff]
    %v272 = vld [vmem:[#allocation5 + $0xb8] sm:$0xff]
    %v273 = vld [vmem:[#allocation5 + $0xc0] sm:$0xff]
    %v274 = vld [vmem:[#allocation5 + $0xc8] sm:$0xff]
    %v275 = vld [vmem:[#allocation5 + $0xd0] sm:$0xff]
    %v276 = vld [vmem:[#allocation5 + $0xd8] sm:$0xff]
    %v277 = vld [vmem:[#allocation5 + $0xe0] sm:$0xff]
    %v278 = vld [vmem:[#allocation5 + $0xe8] sm:$0xff]
    %v279 = vld [vmem:[#allocation5 + $0xf0] sm:$0xff]
    %v280 = vld [vmem:[#allocation5 + $0xf8] sm:$0xff]
    %v281 = vld [vmem:[#allocation5 + $0x100] sm:$0xff]
    %v282 = vld [vmem:[#allocation5 + $0x108] sm:$0xff]
    %v283 = vld [vmem:[#allocation5 + $0x110] sm:$0xff]
    %v284 = vld [vmem:[#allocation5 + $0x118] sm:$0xff]
    %v285 = vld [vmem:[#allocation5 + $0x120] sm:$0xff]
    %v286 = vld [vmem:[#allocation5 + $0x128] sm:$0xff]
    %v287 = vld [vmem:[#allocation5 + $0x130] sm:$0xff]
    %v288 = vld [vmem:[#allocation5 + $0x138] sm:$0xff]
    %v289 = vld [vmem:[#allocation5 + $0x140] sm:$0xff]
    %v290 = vld [vmem:[#allocation5 + $0x148] sm:$0xff]
    %v291 = vld [vmem:[#allocation5 + $0x150] sm:$0xff]
    %v292 = vld [vmem:[#allocation5 + $0x158] sm:$0xff]
    %v293 = vld [vmem:[#allocation5 + $0x160] sm:$0xff]
    %v294 = vld [vmem:[#allocation5 + $0x168] sm:$0xff]
    %v295 = vld [vmem:[#allocation5 + $0x170] sm:$0xff]
    %v296 = vld [vmem:[#allocation5 + $0x178] sm:$0xff]
    %s297 = scalar_lea.vmem [#allocation5], 384
    %v298 = vld [vmem:[%s297] sm:$0xff]
    %v299 = vld [vmem:[%s297 + $0x8] sm:$0xff]
    %v300 = vld [vmem:[%s297 + $0x10] sm:$0xff]
    %v301 = vld [vmem:[%s297 + $0x18] sm:$0xff]
    %v302 = vld [vmem:[%s297 + $0x20] sm:$0xff]
    %v303 = vld [vmem:[%s297 + $0x28] sm:$0xff]
    %v304 = vld [vmem:[%s297 + $0x30] sm:$0xff]
    %v305 = vld [vmem:[%s297 + $0x38] sm:$0xff]
    %v306 = vld [vmem:[%s297 + $0x40] sm:$0xff]
    %v307 = vld [vmem:[%s297 + $0x48] sm:$0xff]
    %v308 = vld [vmem:[%s297 + $0x50] sm:$0xff]
    %v309 = vld [vmem:[%s297 + $0x58] sm:$0xff]
    %v310 = vld [vmem:[%s297 + $0x60] sm:$0xff]
    %v311 = vld [vmem:[%s297 + $0x68] sm:$0xff]
    %v312 = vld [vmem:[%s297 + $0x70] sm:$0xff]
    %v313 = vld [vmem:[%s297 + $0x78] sm:$0xff]
    %v314 = vld [vmem:[%s297 + $0x80] sm:$0xff]
    %v315 = vld [vmem:[%s297 + $0x88] sm:$0xff]
    %v316 = vld [vmem:[%s297 + $0x90] sm:$0xff]
    %v317 = vld [vmem:[%s297 + $0x98] sm:$0xff]
    %v318 = vld [vmem:[%s297 + $0xa0] sm:$0xff]
    %v319 = vld [vmem:[%s297 + $0xa8] sm:$0xff]
    %v320 = vld [vmem:[%s297 + $0xb0] sm:$0xff]
    %v321 = vld [vmem:[%s297 + $0xb8] sm:$0xff]
    %v322 = vld [vmem:[%s297 + $0xc0] sm:$0xff]
    %v323 = vld [vmem:[%s297 + $0xc8] sm:$0xff]
    %v324 = vld [vmem:[%s297 + $0xd0] sm:$0xff]
    %v325 = vld [vmem:[%s297 + $0xd8] sm:$0xff]
    %v326 = vld [vmem:[%s297 + $0xe0] sm:$0xff]
    %v327 = vld [vmem:[%s297 + $0xe8] sm:$0xff]
    %v328 = vld [vmem:[%s297 + $0xf0] sm:$0xff]
    %v329 = vld [vmem:[%s297 + $0xf8] sm:$0xff]
    %v330 = vld [vmem:[%s297 + $0x100] sm:$0xff]
    %v331 = vld [vmem:[%s297 + $0x108] sm:$0xff]
    %v332 = vld [vmem:[%s297 + $0x110] sm:$0xff]
    %v333 = vld [vmem:[%s297 + $0x118] sm:$0xff]
    %v334 = vld [vmem:[%s297 + $0x120] sm:$0xff]
    %v335 = vld [vmem:[%s297 + $0x128] sm:$0xff]
    %v336 = vld [vmem:[%s297 + $0x130] sm:$0xff]
    %v337 = vld [vmem:[%s297 + $0x138] sm:$0xff]
    %v338 = vld [vmem:[%s297 + $0x140] sm:$0xff]
    %v339 = vld [vmem:[%s297 + $0x148] sm:$0xff]
    %v340 = vld [vmem:[%s297 + $0x150] sm:$0xff]
    %v341 = vld [vmem:[%s297 + $0x158] sm:$0xff]
    %v342 = vld [vmem:[%s297 + $0x160] sm:$0xff]
    %v343 = vld [vmem:[%s297 + $0x168] sm:$0xff]
    %v344 = vld [vmem:[%s297 + $0x170] sm:$0xff]
    %v345 = vld [vmem:[%s297 + $0x178] sm:$0xff]
    %vm346 = vcmask 523264
    %v348 = vsel %vm346, %v122, 0
    %v351 = vsel %vm346, %v126, 0
    %v354 = vsel %vm346, %v130, 0
    %v357 = vsel %vm346, %v134, 0
    %v360 = vsel %vm346, %v138, 0
    %v363 = vsel %vm346, %v142, 0
    %v366 = vsel %vm346, %v146, 0
    %v369 = vsel %vm346, %v150, 0
    %v372 = vsel %vm346, %v154, 0
    %v375 = vsel %vm346, %v158, 0
    %v378 = vsel %vm346, %v162, 0
    %v381 = vsel %vm346, %v166, 0
    %v384 = vsel %vm346, %v170, 0
    %v387 = vsel %vm346, %v174, 0
    %v390 = vsel %vm346, %v178, 0
    %v393 = vsel %vm346, %v182, 0
    %v396 = vsel %vm346, %v186, 0
    %v399 = vsel %vm346, %v190, 0
    %v402 = vsel %vm346, %v194, 0
    %v405 = vsel %vm346, %v198, 0
    %v408 = vsel %vm346, %v202, 0
    %v411 = vsel %vm346, %v206, 0
    %v414 = vsel %vm346, %v210, 0
    %v417 = vsel %vm346, %v214, 0
    %v420 = vsel %vm346, %v218, 0
    %v423 = vsel %vm346, %v222, 0
    %v426 = vsel %vm346, %v226, 0
    %v429 = vsel %vm346, %v230, 0
    %v432 = vsel %vm346, %v234, 0
    %v435 = vsel %vm346, %v238, 0
    %v438 = vsel %vm346, %v242, 0
    %v441 = vsel %vm346, %v246, 0
    %443 = vmatprep.subr.mxu0 %v329
    %444 = vmatpush1.msra.mxu0 %v328
    %445 = vmatprep.subr.mxu0 %v327
    %446 = vmatpush1.msra.mxu0 %v326
    %447 = vmatprep.subr.mxu0 %v325
    %448 = vmatpush1.msra.mxu0 %v324
    %449 = vmatprep.subr.mxu0 %v323
    %450 = vmatpush1.msra.mxu0 %v322
    %451 = vmatprep.subr.mxu0 %v321
    %452 = vmatpush1.msra.mxu0 %v320
    %453 = vmatprep.subr.mxu0 %v319
    %454 = vmatpush1.msra.mxu0 %v318
    %455 = vmatprep.subr.mxu0 %v317
    %456 = vmatpush1.msra.mxu0 %v316
    %457 = vmatprep.subr.mxu0 %v315
    %458 = vmatpush1.msra.mxu0 %v314
    %459 = vmatprep.subr.mxu0 %v313
    %460 = vmatpush1.msra.mxu0 %v312
    %461 = vmatprep.subr.mxu0 %v311
    %462 = vmatpush1.msra.mxu0 %v310
    %463 = vmatprep.subr.mxu0 %v309
    %464 = vmatpush1.msra.mxu0 %v308
    %465 = vmatprep.subr.mxu0 %v307
    %466 = vmatpush1.msra.mxu0 %v306
    %467 = vmatprep.subr.mxu0 %v305
    %468 = vmatpush1.msra.mxu0 %v304
    %469 = vmatprep.subr.mxu0 %v303
    %470 = vmatpush1.msra.mxu0 %v302
    %471 = vmatprep.subr.mxu0 %v301
    %472 = vmatpush1.msra.mxu0 %v300
    %473 = vmatprep.subr.mxu0 %v299
    %474 = vmatpush1.msra.mxu0 %v298
    %475 = vmatprep.subr.mxu0 0.0
    %476 = vmatpush2.msra.mxu0 0.0
    %477 = vmatprep.subr.mxu0 0.0
    %478 = vmatpush2.msra.mxu0 0.0
    %479 = vmatprep.subr.mxu0 0.0
    %480 = vmatpush2.msra.mxu0 0.0
    %481 = vmatprep.subr.mxu0 0.0
    %482 = vmatpush2.msra.mxu0 0.0
    %483 = vmatprep.subr.mxu0 0.0
    %484 = vmatpush2.msra.mxu0 0.0
    %485 = vmatprep.subr.mxu0 0.0
    %486 = vmatpush2.msra.mxu0 0.0
    %487 = vmatprep.subr.mxu0 0.0
    %488 = vmatpush2.msra.mxu0 0.0
    %489 = vmatprep.subr.mxu0 0.0
    %490 = vmatpush2.msra.mxu0 0.0
    %491 = vmatprep.subr.mxu0 %v345
    %492 = vmatpush2.msra.mxu0 %v344
    %493 = vmatprep.subr.mxu0 %v343
    %494 = vmatpush2.msra.mxu0 %v342
    %495 = vmatprep.subr.mxu0 %v341
    %496 = vmatpush2.msra.mxu0 %v340
    %497 = vmatprep.subr.mxu0 %v339
    %498 = vmatpush2.msra.mxu0 %v338
    %499 = vmatprep.subr.mxu0 %v337
    %500 = vmatpush2.msra.mxu0 %v336
    %501 = vmatprep.subr.mxu0 %v335
    %502 = vmatpush2.msra.mxu0 %v334
    %503 = vmatprep.subr.mxu0 %v333
    %504 = vmatpush2.msra.mxu0 %v332
    %505 = vmatprep.subr.mxu0 %v331
    %506 = vmatpush2.msra.mxu0 %v330
    %507 = vmatprep.mubr.f32.mxu0 %v348
    %508 = vmatmul.mubr.f32.gmra.mxu0 %v121
    %v509 = vpop.f32.mrf.mxu0
    %v510 = vadd.f32 0.0, %v509
    %v511 = vpop.f32.mrf.mxu0
    %v512 = vadd.f32 0.0, %v511
    %513 = vmatprep.mubr.f32.mxu0 %v351
    %514 = vmatmul.mubr.f32.gmra.mxu0 %v125
    %v515 = vpop.f32.mrf.mxu0
    %v516 = vadd.f32 0.0, %v515
    %v517 = vpop.f32.mrf.mxu0
    %v518 = vadd.f32 0.0, %v517
    %519 = vmatprep.mubr.f32.mxu0 %v354
    %520 = vmatmul.mubr.f32.gmra.mxu0 %v129
    %v521 = vpop.f32.mrf.mxu0
    %v522 = vadd.f32 0.0, %v521
    %v523 = vpop.f32.mrf.mxu0
    %v524 = vadd.f32 0.0, %v523
    %525 = vmatprep.mubr.f32.mxu0 %v357
    %526 = vmatmul.mubr.f32.gmra.mxu0 %v133
    %v527 = vpop.f32.mrf.mxu0
    %v528 = vadd.f32 0.0, %v527
    %v529 = vpop.f32.mrf.mxu0
    %v530 = vadd.f32 0.0, %v529
    %531 = vmatprep.mubr.f32.mxu0 %v360
    %532 = vmatmul.mubr.f32.gmra.mxu0 %v137
    %v533 = vpop.f32.mrf.mxu0
    %v534 = vadd.f32 0.0, %v533
    %v535 = vpop.f32.mrf.mxu0
    %v536 = vadd.f32 0.0, %v535
    %537 = vmatprep.mubr.f32.mxu0 %v363
    %538 = vmatmul.mubr.f32.gmra.mxu0 %v141
    %v539 = vpop.f32.mrf.mxu0
    %v540 = vadd.f32 0.0, %v539
    %v541 = vpop.f32.mrf.mxu0
    %v542 = vadd.f32 0.0, %v541
    %543 = vmatprep.mubr.f32.mxu0 %v366
    %544 = vmatmul.mubr.f32.gmra.mxu0 %v145
    %v545 = vpop.f32.mrf.mxu0
    %v546 = vadd.f32 0.0, %v545
    %v547 = vpop.f32.mrf.mxu0
    %v548 = vadd.f32 0.0, %v547
    %549 = vmatprep.mubr.f32.mxu0 %v369
    %550 = vmatmul.mubr.f32.gmra.mxu0 %v149
    %v551 = vpop.f32.mrf.mxu0
    %v552 = vadd.f32 0.0, %v551
    %v553 = vpop.f32.mrf.mxu0
    %v554 = vadd.f32 0.0, %v553
    %555 = vmatprep.mubr.f32.mxu0 %v372
    %556 = vmatmul.mubr.f32.gmra.mxu0 %v153
    %v557 = vpop.f32.mrf.mxu0
    %v558 = vadd.f32 0.0, %v557
    %v559 = vpop.f32.mrf.mxu0
    %v560 = vadd.f32 0.0, %v559
    %561 = vmatprep.mubr.f32.mxu0 %v375
    %562 = vmatmul.mubr.f32.gmra.mxu0 %v157
    %v563 = vpop.f32.mrf.mxu0
    %v564 = vadd.f32 0.0, %v563
    %v565 = vpop.f32.mrf.mxu0
    %v566 = vadd.f32 0.0, %v565
    %567 = vmatprep.mubr.f32.mxu0 %v378
    %568 = vmatmul.mubr.f32.gmra.mxu0 %v161
    %v569 = vpop.f32.mrf.mxu0
    %v570 = vadd.f32 0.0, %v569
    %v571 = vpop.f32.mrf.mxu0
    %v572 = vadd.f32 0.0, %v571
    %573 = vmatprep.mubr.f32.mxu0 %v381
    %574 = vmatmul.mubr.f32.gmra.mxu0 %v165
    %v575 = vpop.f32.mrf.mxu0
    %v576 = vadd.f32 0.0, %v575
    %v577 = vpop.f32.mrf.mxu0
    %v578 = vadd.f32 0.0, %v577
    %579 = vmatprep.mubr.f32.mxu0 %v384
    %580 = vmatmul.mubr.f32.gmra.mxu0 %v169
    %v581 = vpop.f32.mrf.mxu0
    %v582 = vadd.f32 0.0, %v581
    %v583 = vpop.f32.mrf.mxu0
    %v584 = vadd.f32 0.0, %v583
    %585 = vmatprep.mubr.f32.mxu0 %v387
    %586 = vmatmul.mubr.f32.gmra.mxu0 %v173
    %v587 = vpop.f32.mrf.mxu0
    %v588 = vadd.f32 0.0, %v587
    %v589 = vpop.f32.mrf.mxu0
    %v590 = vadd.f32 0.0, %v589
    %591 = vmatprep.mubr.f32.mxu0 %v390
    %592 = vmatmul.mubr.f32.gmra.mxu0 %v177
    %v593 = vpop.f32.mrf.mxu0
    %v594 = vadd.f32 0.0, %v593
    %v595 = vpop.f32.mrf.mxu0
    %v596 = vadd.f32 0.0, %v595
    %597 = vmatprep.mubr.f32.mxu0 %v393
    %598 = vmatmul.mubr.f32.gmra.mxu0 %v181
    %v599 = vpop.f32.mrf.mxu0
    %v600 = vadd.f32 0.0, %v599
    %v601 = vpop.f32.mrf.mxu0
    %v602 = vadd.f32 0.0, %v601
    %603 = vmatprep.mubr.f32.mxu0 %v396
    %604 = vmatmul.mubr.f32.gmra.mxu0 %v185
    %v605 = vpop.f32.mrf.mxu0
    %v606 = vadd.f32 0.0, %v605
    %v607 = vpop.f32.mrf.mxu0
    %v608 = vadd.f32 0.0, %v607
    %609 = vmatprep.mubr.f32.mxu0 %v399
    %610 = vmatmul.mubr.f32.gmra.mxu0 %v189
    %v611 = vpop.f32.mrf.mxu0
    %v612 = vadd.f32 0.0, %v611
    %v613 = vpop.f32.mrf.mxu0
    %v614 = vadd.f32 0.0, %v613
    %615 = vmatprep.mubr.f32.mxu0 %v402
    %616 = vmatmul.mubr.f32.gmra.mxu0 %v193
    %v617 = vpop.f32.mrf.mxu0
    %v618 = vadd.f32 0.0, %v617
    %v619 = vpop.f32.mrf.mxu0
    %v620 = vadd.f32 0.0, %v619
    %621 = vmatprep.mubr.f32.mxu0 %v405
    %622 = vmatmul.mubr.f32.gmra.mxu0 %v197
    %v623 = vpop.f32.mrf.mxu0
    %v624 = vadd.f32 0.0, %v623
    %v625 = vpop.f32.mrf.mxu0
    %v626 = vadd.f32 0.0, %v625
    %627 = vmatprep.mubr.f32.mxu0 %v408
    %628 = vmatmul.mubr.f32.gmra.mxu0 %v201
    %v629 = vpop.f32.mrf.mxu0
    %v630 = vadd.f32 0.0, %v629
    %v631 = vpop.f32.mrf.mxu0
    %v632 = vadd.f32 0.0, %v631
    %633 = vmatprep.mubr.f32.mxu0 %v411
    %634 = vmatmul.mubr.f32.gmra.mxu0 %v205
    %v635 = vpop.f32.mrf.mxu0
    %v636 = vadd.f32 0.0, %v635
    %v637 = vpop.f32.mrf.mxu0
    %v638 = vadd.f32 0.0, %v637
    %639 = vmatprep.mubr.f32.mxu0 %v414
    %640 = vmatmul.mubr.f32.gmra.mxu0 %v209
    %v641 = vpop.f32.mrf.mxu0
    %v642 = vadd.f32 0.0, %v641
    %v643 = vpop.f32.mrf.mxu0
    %v644 = vadd.f32 0.0, %v643
    %645 = vmatprep.mubr.f32.mxu0 %v417
    %646 = vmatmul.mubr.f32.gmra.mxu0 %v213
    %v647 = vpop.f32.mrf.mxu0
    %v648 = vadd.f32 0.0, %v647
    %v649 = vpop.f32.mrf.mxu0
    %v650 = vadd.f32 0.0, %v649
    %651 = vmatprep.mubr.f32.mxu0 %v420
    %652 = vmatmul.mubr.f32.gmra.mxu0 %v217
    %v653 = vpop.f32.mrf.mxu0
    %v654 = vadd.f32 0.0, %v653
    %v655 = vpop.f32.mrf.mxu0
    %v656 = vadd.f32 0.0, %v655
    %657 = vmatprep.mubr.f32.mxu0 %v423
    %658 = vmatmul.mubr.f32.gmra.mxu0 %v221
    %v659 = vpop.f32.mrf.mxu0
    %v660 = vadd.f32 0.0, %v659
    %v661 = vpop.f32.mrf.mxu0
    %v662 = vadd.f32 0.0, %v661
    %663 = vmatprep.mubr.f32.mxu0 %v426
    %664 = vmatmul.mubr.f32.gmra.mxu0 %v225
    %v665 = vpop.f32.mrf.mxu0
    %v666 = vadd.f32 0.0, %v665
    %v667 = vpop.f32.mrf.mxu0
    %v668 = vadd.f32 0.0, %v667
    %669 = vmatprep.mubr.f32.mxu0 %v429
    %670 = vmatmul.mubr.f32.gmra.mxu0 %v229
    %v671 = vpop.f32.mrf.mxu0
    %v672 = vadd.f32 0.0, %v671
    %v673 = vpop.f32.mrf.mxu0
    %v674 = vadd.f32 0.0, %v673
    %675 = vmatprep.mubr.f32.mxu0 %v432
    %676 = vmatmul.mubr.f32.gmra.mxu0 %v233
    %v677 = vpop.f32.mrf.mxu0
    %v678 = vadd.f32 0.0, %v677
    %v679 = vpop.f32.mrf.mxu0
    %v680 = vadd.f32 0.0, %v679
    %681 = vmatprep.mubr.f32.mxu0 %v435
    %682 = vmatmul.mubr.f32.gmra.mxu0 %v237
    %v683 = vpop.f32.mrf.mxu0
    %v684 = vadd.f32 0.0, %v683
    %v685 = vpop.f32.mrf.mxu0
    %v686 = vadd.f32 0.0, %v685
    %687 = vmatprep.mubr.f32.mxu0 %v438
    %688 = vmatmul.mubr.f32.gmra.mxu0 %v241
    %v689 = vpop.f32.mrf.mxu0
    %v690 = vadd.f32 0.0, %v689
    %v691 = vpop.f32.mrf.mxu0
    %v692 = vadd.f32 0.0, %v691
    %693 = vmatprep.mubr.f32.mxu0 %v441
    %694 = vmatmul.mubr.f32.gmra.mxu0 %v245
    %v695 = vpop.f32.mrf.mxu0
    %v696 = vadd.f32 0.0, %v695
    %v697 = vpop.f32.mrf.mxu0
    %v698 = vadd.f32 0.0, %v697
    %699 = vdwg.mxu0
    %v701 = vsel %vm346, 0.0, 0
    %v704 = vsel %vm346, %v124, 0
    %v707 = vsel %vm346, %v128, 0
    %v710 = vsel %vm346, %v132, 0
    %v713 = vsel %vm346, %v136, 0
    %v716 = vsel %vm346, %v140, 0
    %v719 = vsel %vm346, %v144, 0
    %v722 = vsel %vm346, %v148, 0
    %v725 = vsel %vm346, %v152, 0
    %v728 = vsel %vm346, %v156, 0
    %v731 = vsel %vm346, %v160, 0
    %v734 = vsel %vm346, %v164, 0
    %v737 = vsel %vm346, %v168, 0
    %v740 = vsel %vm346, %v172, 0
    %v743 = vsel %vm346, %v176, 0
    %v746 = vsel %vm346, %v180, 0
    %v749 = vsel %vm346, %v184, 0
    %v752 = vsel %vm346, %v188, 0
    %v755 = vsel %vm346, %v192, 0
    %v758 = vsel %vm346, %v196, 0
    %v761 = vsel %vm346, %v200, 0
    %v764 = vsel %vm346, %v204, 0
    %v767 = vsel %vm346, %v208, 0
    %v770 = vsel %vm346, %v212, 0
    %v773 = vsel %vm346, %v216, 0
    %v776 = vsel %vm346, %v220, 0
    %v779 = vsel %vm346, %v224, 0
    %v782 = vsel %vm346, %v228, 0
    %v785 = vsel %vm346, %v232, 0
    %v788 = vsel %vm346, %v236, 0
    %v791 = vsel %vm346, %v240, 0
    %v794 = vsel %vm346, %v244, 0
    %796 = vmatprep.subr.mxu0 %v280
    %797 = vmatpush1.msra.mxu0 %v279
    %798 = vmatprep.subr.mxu0 %v278
    %799 = vmatpush1.msra.mxu0 %v277
    %800 = vmatprep.subr.mxu0 %v276
    %801 = vmatpush1.msra.mxu0 %v275
    %802 = vmatprep.subr.mxu0 %v274
    %803 = vmatpush1.msra.mxu0 %v273
    %804 = vmatprep.subr.mxu0 %v272
    %805 = vmatpush1.msra.mxu0 %v271
    %806 = vmatprep.subr.mxu0 %v270
    %807 = vmatpush1.msra.mxu0 %v269
    %808 = vmatprep.subr.mxu0 %v268
    %809 = vmatpush1.msra.mxu0 %v267
    %810 = vmatprep.subr.mxu0 %v266
    %811 = vmatpush1.msra.mxu0 %v265
    %812 = vmatprep.subr.mxu0 %v264
    %813 = vmatpush1.msra.mxu0 %v263
    %814 = vmatprep.subr.mxu0 %v262
    %815 = vmatpush1.msra.mxu0 %v261
    %816 = vmatprep.subr.mxu0 %v260
    %817 = vmatpush1.msra.mxu0 %v259
    %818 = vmatprep.subr.mxu0 %v258
    %819 = vmatpush1.msra.mxu0 %v257
    %820 = vmatprep.subr.mxu0 %v256
    %821 = vmatpush1.msra.mxu0 %v255
    %822 = vmatprep.subr.mxu0 %v254
    %823 = vmatpush1.msra.mxu0 %v253
    %824 = vmatprep.subr.mxu0 %v252
    %825 = vmatpush1.msra.mxu0 %v251
    %826 = vmatprep.subr.mxu0 %v250
    %827 = vmatpush1.msra.mxu0 %v249
    %828 = vmatprep.subr.mxu0 0.0
    %829 = vmatpush2.msra.mxu0 0.0
    %830 = vmatprep.subr.mxu0 0.0
    %831 = vmatpush2.msra.mxu0 0.0
    %832 = vmatprep.subr.mxu0 0.0
    %833 = vmatpush2.msra.mxu0 0.0
    %834 = vmatprep.subr.mxu0 0.0
    %835 = vmatpush2.msra.mxu0 0.0
    %836 = vmatprep.subr.mxu0 0.0
    %837 = vmatpush2.msra.mxu0 0.0
    %838 = vmatprep.subr.mxu0 0.0
    %839 = vmatpush2.msra.mxu0 0.0
    %840 = vmatprep.subr.mxu0 0.0
    %841 = vmatpush2.msra.mxu0 0.0
    %842 = vmatprep.subr.mxu0 0.0
    %843 = vmatpush2.msra.mxu0 0.0
    %844 = vmatprep.subr.mxu0 %v296
    %845 = vmatpush2.msra.mxu0 %v295
    %846 = vmatprep.subr.mxu0 %v294
    %847 = vmatpush2.msra.mxu0 %v293
    %848 = vmatprep.subr.mxu0 %v292
    %849 = vmatpush2.msra.mxu0 %v291
    %850 = vmatprep.subr.mxu0 %v290
    %851 = vmatpush2.msra.mxu0 %v289
    %852 = vmatprep.subr.mxu0 %v288
    %853 = vmatpush2.msra.mxu0 %v287
    %854 = vmatprep.subr.mxu0 %v286
    %855 = vmatpush2.msra.mxu0 %v285
    %856 = vmatprep.subr.mxu0 %v284
    %857 = vmatpush2.msra.mxu0 %v283
    %858 = vmatprep.subr.mxu0 %v282
    %859 = vmatpush2.msra.mxu0 %v281
    %860 = vmatprep.mubr.f32.mxu0 %v701
    %861 = vmatmul.mubr.f32.gmra.mxu0 0.0
    %v862 = vpop.f32.mrf.mxu0
    %v863 = vadd.f32 %v510, %v862
    %v864 = vpop.f32.mrf.mxu0
    %v865 = vadd.f32 %v512, %v864
    %866 = vmatprep.mubr.f32.mxu0 %v704
    %867 = vmatmul.mubr.f32.gmra.mxu0 %v123
    %v868 = vpop.f32.mrf.mxu0
    %v869 = vadd.f32 %v516, %v868
    %v870 = vpop.f32.mrf.mxu0
    %v871 = vadd.f32 %v518, %v870
    %872 = vmatprep.mubr.f32.mxu0 %v707
    %873 = vmatmul.mubr.f32.gmra.mxu0 %v127
    %v874 = vpop.f32.mrf.mxu0
    %v875 = vadd.f32 %v522, %v874
    %v876 = vpop.f32.mrf.mxu0
    %v877 = vadd.f32 %v524, %v876
    %878 = vmatprep.mubr.f32.mxu0 %v710
    %879 = vmatmul.mubr.f32.gmra.mxu0 %v131
    %v880 = vpop.f32.mrf.mxu0
    %v881 = vadd.f32 %v528, %v880
    %v882 = vpop.f32.mrf.mxu0
    %v883 = vadd.f32 %v530, %v882
    %884 = vmatprep.mubr.f32.mxu0 %v713
    %885 = vmatmul.mubr.f32.gmra.mxu0 %v135
    %v886 = vpop.f32.mrf.mxu0
    %v887 = vadd.f32 %v534, %v886
    %v888 = vpop.f32.mrf.mxu0
    %v889 = vadd.f32 %v536, %v888
    %890 = vmatprep.mubr.f32.mxu0 %v716
    %891 = vmatmul.mubr.f32.gmra.mxu0 %v139
    %v892 = vpop.f32.mrf.mxu0
    %v893 = vadd.f32 %v540, %v892
    %v894 = vpop.f32.mrf.mxu0
    %v895 = vadd.f32 %v542, %v894
    %896 = vmatprep.mubr.f32.mxu0 %v719
    %897 = vmatmul.mubr.f32.gmra.mxu0 %v143
    %v898 = vpop.f32.mrf.mxu0
    %v899 = vadd.f32 %v546, %v898
    %v900 = vpop.f32.mrf.mxu0
    %v901 = vadd.f32 %v548, %v900
    %902 = vmatprep.mubr.f32.mxu0 %v722
    %903 = vmatmul.mubr.f32.gmra.mxu0 %v147
    %v904 = vpop.f32.mrf.mxu0
    %v905 = vadd.f32 %v552, %v904
    %v906 = vpop.f32.mrf.mxu0
    %v907 = vadd.f32 %v554, %v906
    %908 = vmatprep.mubr.f32.mxu0 %v725
    %909 = vmatmul.mubr.f32.gmra.mxu0 %v151
    %v910 = vpop.f32.mrf.mxu0
    %v911 = vadd.f32 %v558, %v910
    %v912 = vpop.f32.mrf.mxu0
    %v913 = vadd.f32 %v560, %v912
    %914 = vmatprep.mubr.f32.mxu0 %v728
    %915 = vmatmul.mubr.f32.gmra.mxu0 %v155
    %v916 = vpop.f32.mrf.mxu0
    %v917 = vadd.f32 %v564, %v916
    %v918 = vpop.f32.mrf.mxu0
    %v919 = vadd.f32 %v566, %v918
    %920 = vmatprep.mubr.f32.mxu0 %v731
    %921 = vmatmul.mubr.f32.gmra.mxu0 %v159
    %v922 = vpop.f32.mrf.mxu0
    %v923 = vadd.f32 %v570, %v922
    %v924 = vpop.f32.mrf.mxu0
    %v925 = vadd.f32 %v572, %v924
    %926 = vmatprep.mubr.f32.mxu0 %v734
    %927 = vmatmul.mubr.f32.gmra.mxu0 %v163
    %v928 = vpop.f32.mrf.mxu0
    %v929 = vadd.f32 %v576, %v928
    %v930 = vpop.f32.mrf.mxu0
    %v931 = vadd.f32 %v578, %v930
    %932 = vmatprep.mubr.f32.mxu0 %v737
    %933 = vmatmul.mubr.f32.gmra.mxu0 %v167
    %v934 = vpop.f32.mrf.mxu0
    %v935 = vadd.f32 %v582, %v934
    %v936 = vpop.f32.mrf.mxu0
    %v937 = vadd.f32 %v584, %v936
    %938 = vmatprep.mubr.f32.mxu0 %v740
    %939 = vmatmul.mubr.f32.gmra.mxu0 %v171
    %v940 = vpop.f32.mrf.mxu0
    %v941 = vadd.f32 %v588, %v940
    %v942 = vpop.f32.mrf.mxu0
    %v943 = vadd.f32 %v590, %v942
    %944 = vmatprep.mubr.f32.mxu0 %v743
    %945 = vmatmul.mubr.f32.gmra.mxu0 %v175
    %v946 = vpop.f32.mrf.mxu0
    %v947 = vadd.f32 %v594, %v946
    %v948 = vpop.f32.mrf.mxu0
    %v949 = vadd.f32 %v596, %v948
    %950 = vmatprep.mubr.f32.mxu0 %v746
    %951 = vmatmul.mubr.f32.gmra.mxu0 %v179
    %v952 = vpop.f32.mrf.mxu0
    %v953 = vadd.f32 %v600, %v952
    %v954 = vpop.f32.mrf.mxu0
    %v955 = vadd.f32 %v602, %v954
    %956 = vmatprep.mubr.f32.mxu0 %v749
    %957 = vmatmul.mubr.f32.gmra.mxu0 %v183
    %v958 = vpop.f32.mrf.mxu0
    %v959 = vadd.f32 %v606, %v958
    %v960 = vpop.f32.mrf.mxu0
    %v961 = vadd.f32 %v608, %v960
    %962 = vmatprep.mubr.f32.mxu0 %v752
    %963 = vmatmul.mubr.f32.gmra.mxu0 %v187
    %v964 = vpop.f32.mrf.mxu0
    %v965 = vadd.f32 %v612, %v964
    %v966 = vpop.f32.mrf.mxu0
    %v967 = vadd.f32 %v614, %v966
    %968 = vmatprep.mubr.f32.mxu0 %v755
    %969 = vmatmul.mubr.f32.gmra.mxu0 %v191
    %v970 = vpop.f32.mrf.mxu0
    %v971 = vadd.f32 %v618, %v970
    %v972 = vpop.f32.mrf.mxu0
    %v973 = vadd.f32 %v620, %v972
    %974 = vmatprep.mubr.f32.mxu0 %v758
    %975 = vmatmul.mubr.f32.gmra.mxu0 %v195
    %v976 = vpop.f32.mrf.mxu0
    %v977 = vadd.f32 %v624, %v976
    %v978 = vpop.f32.mrf.mxu0
    %v979 = vadd.f32 %v626, %v978
    %980 = vmatprep.mubr.f32.mxu0 %v761
    %981 = vmatmul.mubr.f32.gmra.mxu0 %v199
    %v982 = vpop.f32.mrf.mxu0
    %v983 = vadd.f32 %v630, %v982
    %v984 = vpop.f32.mrf.mxu0
    %v985 = vadd.f32 %v632, %v984
    %986 = vmatprep.mubr.f32.mxu0 %v764
    %987 = vmatmul.mubr.f32.gmra.mxu0 %v203
    %v988 = vpop.f32.mrf.mxu0
    %v989 = vadd.f32 %v636, %v988
    %v990 = vpop.f32.mrf.mxu0
    %v991 = vadd.f32 %v638, %v990
    %992 = vmatprep.mubr.f32.mxu0 %v767
    %993 = vmatmul.mubr.f32.gmra.mxu0 %v207
    %v994 = vpop.f32.mrf.mxu0
    %v995 = vadd.f32 %v642, %v994
    %v996 = vpop.f32.mrf.mxu0
    %v997 = vadd.f32 %v644, %v996
    %998 = vmatprep.mubr.f32.mxu0 %v770
    %999 = vmatmul.mubr.f32.gmra.mxu0 %v211
    %v1000 = vpop.f32.mrf.mxu0
    %v1001 = vadd.f32 %v648, %v1000
    %v1002 = vpop.f32.mrf.mxu0
    %v1003 = vadd.f32 %v650, %v1002
    %1004 = vmatprep.mubr.f32.mxu0 %v773
    %1005 = vmatmul.mubr.f32.gmra.mxu0 %v215
    %v1006 = vpop.f32.mrf.mxu0
    %v1007 = vadd.f32 %v654, %v1006
    %v1008 = vpop.f32.mrf.mxu0
    %v1009 = vadd.f32 %v656, %v1008
    %1010 = vmatprep.mubr.f32.mxu0 %v776
    %1011 = vmatmul.mubr.f32.gmra.mxu0 %v219
    %v1012 = vpop.f32.mrf.mxu0
    %v1013 = vadd.f32 %v660, %v1012
    %v1014 = vpop.f32.mrf.mxu0
    %v1015 = vadd.f32 %v662, %v1014
    %1016 = vmatprep.mubr.f32.mxu0 %v779
    %1017 = vmatmul.mubr.f32.gmra.mxu0 %v223
    %v1018 = vpop.f32.mrf.mxu0
    %v1019 = vadd.f32 %v666, %v1018
    %v1020 = vpop.f32.mrf.mxu0
    %v1021 = vadd.f32 %v668, %v1020
    %1022 = vmatprep.mubr.f32.mxu0 %v782
    %1023 = vmatmul.mubr.f32.gmra.mxu0 %v227
    %v1024 = vpop.f32.mrf.mxu0
    %v1025 = vadd.f32 %v672, %v1024
    %v1026 = vpop.f32.mrf.mxu0
    %v1027 = vadd.f32 %v674, %v1026
    %1028 = vmatprep.mubr.f32.mxu0 %v785
    %1029 = vmatmul.mubr.f32.gmra.mxu0 %v231
    %v1030 = vpop.f32.mrf.mxu0
    %v1031 = vadd.f32 %v678, %v1030
    %v1032 = vpop.f32.mrf.mxu0
    %v1033 = vadd.f32 %v680, %v1032
    %1034 = vmatprep.mubr.f32.mxu0 %v788
    %1035 = vmatmul.mubr.f32.gmra.mxu0 %v235
    %v1036 = vpop.f32.mrf.mxu0
    %v1037 = vadd.f32 %v684, %v1036
    %v1038 = vpop.f32.mrf.mxu0
    %v1039 = vadd.f32 %v686, %v1038
    %1040 = vmatprep.mubr.f32.mxu0 %v791
    %1041 = vmatmul.mubr.f32.gmra.mxu0 %v239
    %v1042 = vpop.f32.mrf.mxu0
    %v1043 = vadd.f32 %v690, %v1042
    %v1044 = vpop.f32.mrf.mxu0
    %v1045 = vadd.f32 %v692, %v1044
    %1046 = vmatprep.mubr.f32.mxu0 %v794
    %1047 = vmatmul.mubr.f32.gmra.mxu0 %v243
    %v1048 = vpop.f32.mrf.mxu0
    %v1049 = vadd.f32 %v696, %v1048
    %v1050 = vpop.f32.mrf.mxu0
    %v1051 = vadd.f32 %v698, %v1050
    %1052 = vdwg.mxu0
    %s1053 = scalar_lea.vmem [#allocation5], 768
    %v1054 = vld [vmem:[%s1053] sm:$0xff]
    %v1055 = vld [vmem:[%s1053 + $0x8] sm:$0xff]
    %v1056 = vld [vmem:[%s1053 + $0x10] sm:$0xff]
    %v1057 = vld [vmem:[%s1053 + $0x18] sm:$0xff]
    %v1058 = vld [vmem:[%s1053 + $0x20] sm:$0xff]
    %v1059 = vld [vmem:[%s1053 + $0x28] sm:$0xff]
    %v1060 = vld [vmem:[%s1053 + $0x30] sm:$0xff]
    %v1061 = vld [vmem:[%s1053 + $0x38] sm:$0xff]
    %v1062 = vld [vmem:[%s1053 + $0x40] sm:$0xff]
    %v1063 = vld [vmem:[%s1053 + $0x48] sm:$0xff]
    %v1064 = vld [vmem:[%s1053 + $0x50] sm:$0xff]
    %v1065 = vld [vmem:[%s1053 + $0x58] sm:$0xff]
    %v1066 = vld [vmem:[%s1053 + $0x60] sm:$0xff]
    %v1067 = vld [vmem:[%s1053 + $0x68] sm:$0xff]
    %v1068 = vld [vmem:[%s1053 + $0x70] sm:$0xff]
    %v1069 = vld [vmem:[%s1053 + $0x78] sm:$0xff]
    %v1070 = vld [vmem:[%s1053 + $0x80] sm:$0xff]
    %v1071 = vld [vmem:[%s1053 + $0x88] sm:$0xff]
    %v1072 = vld [vmem:[%s1053 + $0x90] sm:$0xff]
    %v1073 = vld [vmem:[%s1053 + $0x98] sm:$0xff]
    %v1074 = vld [vmem:[%s1053 + $0xa0] sm:$0xff]
    %v1075 = vld [vmem:[%s1053 + $0xa8] sm:$0xff]
    %v1076 = vld [vmem:[%s1053 + $0xb0] sm:$0xff]
    %v1077 = vld [vmem:[%s1053 + $0xb8] sm:$0xff]
    %v1078 = vld [vmem:[%s1053 + $0xc0] sm:$0xff]
    %v1079 = vld [vmem:[%s1053 + $0xc8] sm:$0xff]
    %v1080 = vld [vmem:[%s1053 + $0xd0] sm:$0xff]
    %v1081 = vld [vmem:[%s1053 + $0xd8] sm:$0xff]
    %v1082 = vld [vmem:[%s1053 + $0xe0] sm:$0xff]
    %v1083 = vld [vmem:[%s1053 + $0xe8] sm:$0xff]
    %v1084 = vld [vmem:[%s1053 + $0xf0] sm:$0xff]
    %v1085 = vld [vmem:[%s1053 + $0xf8] sm:$0xff]
    %v1086 = vld [vmem:[%s1053 + $0x100] sm:$0xff]
    %v1087 = vld [vmem:[%s1053 + $0x108] sm:$0xff]
    %v1088 = vld [vmem:[%s1053 + $0x110] sm:$0xff]
    %v1089 = vld [vmem:[%s1053 + $0x118] sm:$0xff]
    %v1090 = vld [vmem:[%s1053 + $0x120] sm:$0xff]
    %v1091 = vld [vmem:[%s1053 + $0x128] sm:$0xff]
    %v1092 = vld [vmem:[%s1053 + $0x130] sm:$0xff]
    %v1093 = vld [vmem:[%s1053 + $0x138] sm:$0xff]
    %v1094 = vld [vmem:[%s1053 + $0x140] sm:$0xff]
    %v1095 = vld [vmem:[%s1053 + $0x148] sm:$0xff]
    %v1096 = vld [vmem:[%s1053 + $0x150] sm:$0xff]
    %v1097 = vld [vmem:[%s1053 + $0x158] sm:$0xff]
    %v1098 = vld [vmem:[%s1053 + $0x160] sm:$0xff]
    %v1099 = vld [vmem:[%s1053 + $0x168] sm:$0xff]
    %v1100 = vld [vmem:[%s1053 + $0x170] sm:$0xff]
    %v1101 = vld [vmem:[%s1053 + $0x178] sm:$0xff]
    %v1103 = vsel %vm346, %v248, 0
    %1105 = vmatprep.subr.mxu0 %v1085
    %1106 = vmatpush1.msra.mxu0 %v1084
    %1107 = vmatprep.subr.mxu0 %v1083
    %1108 = vmatpush1.msra.mxu0 %v1082
    %1109 = vmatprep.subr.mxu0 %v1081
    %1110 = vmatpush1.msra.mxu0 %v1080
    %1111 = vmatprep.subr.mxu0 %v1079
    %1112 = vmatpush1.msra.mxu0 %v1078
    %1113 = vmatprep.subr.mxu0 %v1077
    %1114 = vmatpush1.msra.mxu0 %v1076
    %1115 = vmatprep.subr.mxu0 %v1075
    %1116 = vmatpush1.msra.mxu0 %v1074
    %1117 = vmatprep.subr.mxu0 %v1073
    %1118 = vmatpush1.msra.mxu0 %v1072
    %1119 = vmatprep.subr.mxu0 %v1071
    %1120 = vmatpush1.msra.mxu0 %v1070
    %1121 = vmatprep.subr.mxu0 %v1069
    %1122 = vmatpush1.msra.mxu0 %v1068
    %1123 = vmatprep.subr.mxu0 %v1067
    %1124 = vmatpush1.msra.mxu0 %v1066
    %1125 = vmatprep.subr.mxu0 %v1065
    %1126 = vmatpush1.msra.mxu0 %v1064
    %1127 = vmatprep.subr.mxu0 %v1063
    %1128 = vmatpush1.msra.mxu0 %v1062
    %1129 = vmatprep.subr.mxu0 %v1061
    %1130 = vmatpush1.msra.mxu0 %v1060
    %1131 = vmatprep.subr.mxu0 %v1059
    %1132 = vmatpush1.msra.mxu0 %v1058
    %1133 = vmatprep.subr.mxu0 %v1057
    %1134 = vmatpush1.msra.mxu0 %v1056
    %1135 = vmatprep.subr.mxu0 %v1055
    %1136 = vmatpush1.msra.mxu0 %v1054
    %1137 = vmatprep.subr.mxu0 0.0
    %1138 = vmatpush2.msra.mxu0 0.0
    %1139 = vmatprep.subr.mxu0 0.0
    %1140 = vmatpush2.msra.mxu0 0.0
    %1141 = vmatprep.subr.mxu0 0.0
    %1142 = vmatpush2.msra.mxu0 0.0
    %1143 = vmatprep.subr.mxu0 0.0
    %1144 = vmatpush2.msra.mxu0 0.0
    %1145 = vmatprep.subr.mxu0 0.0
    %1146 = vmatpush2.msra.mxu0 0.0
    %1147 = vmatprep.subr.mxu0 0.0
    %1148 = vmatpush2.msra.mxu0 0.0
    %1149 = vmatprep.subr.mxu0 0.0
    %1150 = vmatpush2.msra.mxu0 0.0
    %1151 = vmatprep.subr.mxu0 0.0
    %1152 = vmatpush2.msra.mxu0 0.0
    %1153 = vmatprep.subr.mxu0 %v1101
    %1154 = vmatpush2.msra.mxu0 %v1100
    %1155 = vmatprep.subr.mxu0 %v1099
    %1156 = vmatpush2.msra.mxu0 %v1098
    %1157 = vmatprep.subr.mxu0 %v1097
    %1158 = vmatpush2.msra.mxu0 %v1096
    %1159 = vmatprep.subr.mxu0 %v1095
    %1160 = vmatpush2.msra.mxu0 %v1094
    %1161 = vmatprep.subr.mxu0 %v1093
    %1162 = vmatpush2.msra.mxu0 %v1092
    %1163 = vmatprep.subr.mxu0 %v1091
    %1164 = vmatpush2.msra.mxu0 %v1090
    %1165 = vmatprep.subr.mxu0 %v1089
    %1166 = vmatpush2.msra.mxu0 %v1088
    %1167 = vmatprep.subr.mxu0 %v1087
    %1168 = vmatpush2.msra.mxu0 %v1086
    %1169 = vmatprep.mubr.f32.mxu0 %v704
    %1170 = vmatmul.mubr.f32.gmra.mxu0 %v123
    %v1171 = vpop.f32.mrf.mxu0
    %v1172 = vadd.f32 0.0, %v1171
    %v1173 = vpop.f32.mrf.mxu0
    %v1174 = vadd.f32 0.0, %v1173
    %1175 = vmatprep.mubr.f32.mxu0 %v707
    %1176 = vmatmul.mubr.f32.gmra.mxu0 %v127
    %v1177 = vpop.f32.mrf.mxu0
    %v1178 = vadd.f32 0.0, %v1177
    %v1179 = vpop.f32.mrf.mxu0
    %v1180 = vadd.f32 0.0, %v1179
    %1181 = vmatprep.mubr.f32.mxu0 %v710
    %1182 = vmatmul.mubr.f32.gmra.mxu0 %v131
    %v1183 = vpop.f32.mrf.mxu0
    %v1184 = vadd.f32 0.0, %v1183
    %v1185 = vpop.f32.mrf.mxu0
    %v1186 = vadd.f32 0.0, %v1185
    %1187 = vmatprep.mubr.f32.mxu0 %v713
    %1188 = vmatmul.mubr.f32.gmra.mxu0 %v135
    %v1189 = vpop.f32.mrf.mxu0
    %v1190 = vadd.f32 0.0, %v1189
    %v1191 = vpop.f32.mrf.mxu0
    %v1192 = vadd.f32 0.0, %v1191
    %1193 = vmatprep.mubr.f32.mxu0 %v716
    %1194 = vmatmul.mubr.f32.gmra.mxu0 %v139
    %v1195 = vpop.f32.mrf.mxu0
    %v1196 = vadd.f32 0.0, %v1195
    %v1197 = vpop.f32.mrf.mxu0
    %v1198 = vadd.f32 0.0, %v1197
    %1199 = vmatprep.mubr.f32.mxu0 %v719
    %1200 = vmatmul.mubr.f32.gmra.mxu0 %v143
    %v1201 = vpop.f32.mrf.mxu0
    %v1202 = vadd.f32 0.0, %v1201
    %v1203 = vpop.f32.mrf.mxu0
    %v1204 = vadd.f32 0.0, %v1203
    %1205 = vmatprep.mubr.f32.mxu0 %v722
    %1206 = vmatmul.mubr.f32.gmra.mxu0 %v147
    %v1207 = vpop.f32.mrf.mxu0
    %v1208 = vadd.f32 0.0, %v1207
    %v1209 = vpop.f32.mrf.mxu0
    %v1210 = vadd.f32 0.0, %v1209
    %1211 = vmatprep.mubr.f32.mxu0 %v725
    %1212 = vmatmul.mubr.f32.gmra.mxu0 %v151
    %v1213 = vpop.f32.mrf.mxu0
    %v1214 = vadd.f32 0.0, %v1213
    %v1215 = vpop.f32.mrf.mxu0
    %v1216 = vadd.f32 0.0, %v1215
    %1217 = vmatprep.mubr.f32.mxu0 %v728
    %1218 = vmatmul.mubr.f32.gmra.mxu0 %v155
    %v1219 = vpop.f32.mrf.mxu0
    %v1220 = vadd.f32 0.0, %v1219
    %v1221 = vpop.f32.mrf.mxu0
    %v1222 = vadd.f32 0.0, %v1221
    %1223 = vmatprep.mubr.f32.mxu0 %v731
    %1224 = vmatmul.mubr.f32.gmra.mxu0 %v159
    %v1225 = vpop.f32.mrf.mxu0
    %v1226 = vadd.f32 0.0, %v1225
    %v1227 = vpop.f32.mrf.mxu0
    %v1228 = vadd.f32 0.0, %v1227
    %1229 = vmatprep.mubr.f32.mxu0 %v734
    %1230 = vmatmul.mubr.f32.gmra.mxu0 %v163
    %v1231 = vpop.f32.mrf.mxu0
    %v1232 = vadd.f32 0.0, %v1231
    %v1233 = vpop.f32.mrf.mxu0
    %v1234 = vadd.f32 0.0, %v1233
    %1235 = vmatprep.mubr.f32.mxu0 %v737
    %1236 = vmatmul.mubr.f32.gmra.mxu0 %v167
    %v1237 = vpop.f32.mrf.mxu0
    %v1238 = vadd.f32 0.0, %v1237
    %v1239 = vpop.f32.mrf.mxu0
    %v1240 = vadd.f32 0.0, %v1239
    %1241 = vmatprep.mubr.f32.mxu0 %v740
    %1242 = vmatmul.mubr.f32.gmra.mxu0 %v171
    %v1243 = vpop.f32.mrf.mxu0
    %v1244 = vadd.f32 0.0, %v1243
    %v1245 = vpop.f32.mrf.mxu0
    %v1246 = vadd.f32 0.0, %v1245
    %1247 = vmatprep.mubr.f32.mxu0 %v743
    %1248 = vmatmul.mubr.f32.gmra.mxu0 %v175
    %v1249 = vpop.f32.mrf.mxu0
    %v1250 = vadd.f32 0.0, %v1249
    %v1251 = vpop.f32.mrf.mxu0
    %v1252 = vadd.f32 0.0, %v1251
    %1253 = vmatprep.mubr.f32.mxu0 %v746
    %1254 = vmatmul.mubr.f32.gmra.mxu0 %v179
    %v1255 = vpop.f32.mrf.mxu0
    %v1256 = vadd.f32 0.0, %v1255
    %v1257 = vpop.f32.mrf.mxu0
    %v1258 = vadd.f32 0.0, %v1257
    %1259 = vmatprep.mubr.f32.mxu0 %v749
    %1260 = vmatmul.mubr.f32.gmra.mxu0 %v183
    %v1261 = vpop.f32.mrf.mxu0
    %v1262 = vadd.f32 0.0, %v1261
    %v1263 = vpop.f32.mrf.mxu0
    %v1264 = vadd.f32 0.0, %v1263
    %1265 = vmatprep.mubr.f32.mxu0 %v752
    %1266 = vmatmul.mubr.f32.gmra.mxu0 %v187
    %v1267 = vpop.f32.mrf.mxu0
    %v1268 = vadd.f32 0.0, %v1267
    %v1269 = vpop.f32.mrf.mxu0
    %v1270 = vadd.f32 0.0, %v1269
    %1271 = vmatprep.mubr.f32.mxu0 %v755
    %1272 = vmatmul.mubr.f32.gmra.mxu0 %v191
    %v1273 = vpop.f32.mrf.mxu0
    %v1274 = vadd.f32 0.0, %v1273
    %v1275 = vpop.f32.mrf.mxu0
    %v1276 = vadd.f32 0.0, %v1275
    %1277 = vmatprep.mubr.f32.mxu0 %v758
    %1278 = vmatmul.mubr.f32.gmra.mxu0 %v195
    %v1279 = vpop.f32.mrf.mxu0
    %v1280 = vadd.f32 0.0, %v1279
    %v1281 = vpop.f32.mrf.mxu0
    %v1282 = vadd.f32 0.0, %v1281
    %1283 = vmatprep.mubr.f32.mxu0 %v761
    %1284 = vmatmul.mubr.f32.gmra.mxu0 %v199
    %v1285 = vpop.f32.mrf.mxu0
    %v1286 = vadd.f32 0.0, %v1285
    %v1287 = vpop.f32.mrf.mxu0
    %v1288 = vadd.f32 0.0, %v1287
    %1289 = vmatprep.mubr.f32.mxu0 %v764
    %1290 = vmatmul.mubr.f32.gmra.mxu0 %v203
    %v1291 = vpop.f32.mrf.mxu0
    %v1292 = vadd.f32 0.0, %v1291
    %v1293 = vpop.f32.mrf.mxu0
    %v1294 = vadd.f32 0.0, %v1293
    %1295 = vmatprep.mubr.f32.mxu0 %v767
    %1296 = vmatmul.mubr.f32.gmra.mxu0 %v207
    %v1297 = vpop.f32.mrf.mxu0
    %v1298 = vadd.f32 0.0, %v1297
    %v1299 = vpop.f32.mrf.mxu0
    %v1300 = vadd.f32 0.0, %v1299
    %1301 = vmatprep.mubr.f32.mxu0 %v770
    %1302 = vmatmul.mubr.f32.gmra.mxu0 %v211
    %v1303 = vpop.f32.mrf.mxu0
    %v1304 = vadd.f32 0.0, %v1303
    %v1305 = vpop.f32.mrf.mxu0
    %v1306 = vadd.f32 0.0, %v1305
    %1307 = vmatprep.mubr.f32.mxu0 %v773
    %1308 = vmatmul.mubr.f32.gmra.mxu0 %v215
    %v1309 = vpop.f32.mrf.mxu0
    %v1310 = vadd.f32 0.0, %v1309
    %v1311 = vpop.f32.mrf.mxu0
    %v1312 = vadd.f32 0.0, %v1311
    %1313 = vmatprep.mubr.f32.mxu0 %v776
    %1314 = vmatmul.mubr.f32.gmra.mxu0 %v219
    %v1315 = vpop.f32.mrf.mxu0
    %v1316 = vadd.f32 0.0, %v1315
    %v1317 = vpop.f32.mrf.mxu0
    %v1318 = vadd.f32 0.0, %v1317
    %1319 = vmatprep.mubr.f32.mxu0 %v779
    %1320 = vmatmul.mubr.f32.gmra.mxu0 %v223
    %v1321 = vpop.f32.mrf.mxu0
    %v1322 = vadd.f32 0.0, %v1321
    %v1323 = vpop.f32.mrf.mxu0
    %v1324 = vadd.f32 0.0, %v1323
    %1325 = vmatprep.mubr.f32.mxu0 %v782
    %1326 = vmatmul.mubr.f32.gmra.mxu0 %v227
    %v1327 = vpop.f32.mrf.mxu0
    %v1328 = vadd.f32 0.0, %v1327
    %v1329 = vpop.f32.mrf.mxu0
    %v1330 = vadd.f32 0.0, %v1329
    %1331 = vmatprep.mubr.f32.mxu0 %v785
    %1332 = vmatmul.mubr.f32.gmra.mxu0 %v231
    %v1333 = vpop.f32.mrf.mxu0
    %v1334 = vadd.f32 0.0, %v1333
    %v1335 = vpop.f32.mrf.mxu0
    %v1336 = vadd.f32 0.0, %v1335
    %1337 = vmatprep.mubr.f32.mxu0 %v788
    %1338 = vmatmul.mubr.f32.gmra.mxu0 %v235
    %v1339 = vpop.f32.mrf.mxu0
    %v1340 = vadd.f32 0.0, %v1339
    %v1341 = vpop.f32.mrf.mxu0
    %v1342 = vadd.f32 0.0, %v1341
    %1343 = vmatprep.mubr.f32.mxu0 %v791
    %1344 = vmatmul.mubr.f32.gmra.mxu0 %v239
    %v1345 = vpop.f32.mrf.mxu0
    %v1346 = vadd.f32 0.0, %v1345
    %v1347 = vpop.f32.mrf.mxu0
    %v1348 = vadd.f32 0.0, %v1347
    %1349 = vmatprep.mubr.f32.mxu0 %v794
    %1350 = vmatmul.mubr.f32.gmra.mxu0 %v243
    %v1351 = vpop.f32.mrf.mxu0
    %v1352 = vadd.f32 0.0, %v1351
    %v1353 = vpop.f32.mrf.mxu0
    %v1354 = vadd.f32 0.0, %v1353
    %1355 = vmatprep.mubr.f32.mxu0 %v1103
    %1356 = vmatmul.mubr.f32.gmra.mxu0 %v247
    %v1357 = vpop.f32.mrf.mxu0
    %v1358 = vadd.f32 0.0, %v1357
    %v1359 = vpop.f32.mrf.mxu0
    %v1360 = vadd.f32 0.0, %v1359
    %1361 = vdwg.mxu0
    %v1362 = vadd.f32 %v863, %v1172
    %v1363 = vadd.f32 %v865, %v1174
    %v1364 = vadd.f32 %v869, %v1178
    %v1365 = vadd.f32 %v871, %v1180
    %v1366 = vadd.f32 %v875, %v1184
    %v1367 = vadd.f32 %v877, %v1186
    %v1368 = vadd.f32 %v881, %v1190
    %v1369 = vadd.f32 %v883, %v1192
    %v1370 = vadd.f32 %v887, %v1196
    %v1371 = vadd.f32 %v889, %v1198
    %v1372 = vadd.f32 %v893, %v1202
    %v1373 = vadd.f32 %v895, %v1204
    %v1374 = vadd.f32 %v899, %v1208
    %v1375 = vadd.f32 %v901, %v1210
    %v1376 = vadd.f32 %v905, %v1214
    %v1377 = vadd.f32 %v907, %v1216
    %v1378 = vadd.f32 %v911, %v1220
    %v1379 = vadd.f32 %v913, %v1222
    %v1380 = vadd.f32 %v917, %v1226
    %v1381 = vadd.f32 %v919, %v1228
    %v1382 = vadd.f32 %v923, %v1232
    %v1383 = vadd.f32 %v925, %v1234
    %v1384 = vadd.f32 %v929, %v1238
    %v1385 = vadd.f32 %v931, %v1240
    %v1386 = vadd.f32 %v935, %v1244
    %v1387 = vadd.f32 %v937, %v1246
    %v1388 = vadd.f32 %v941, %v1250
    %v1389 = vadd.f32 %v943, %v1252
    %v1390 = vadd.f32 %v947, %v1256
    %v1391 = vadd.f32 %v949, %v1258
    %v1392 = vadd.f32 %v953, %v1262
    %v1393 = vadd.f32 %v955, %v1264
    %v1394 = vadd.f32 %v959, %v1268
    %v1395 = vadd.f32 %v961, %v1270
    %v1396 = vadd.f32 %v965, %v1274
    %v1397 = vadd.f32 %v967, %v1276
    %v1398 = vadd.f32 %v971, %v1280
    %v1399 = vadd.f32 %v973, %v1282
    %v1400 = vadd.f32 %v977, %v1286
    %v1401 = vadd.f32 %v979, %v1288
    %v1402 = vadd.f32 %v983, %v1292
    %v1403 = vadd.f32 %v985, %v1294
    %v1404 = vadd.f32 %v989, %v1298
    %v1405 = vadd.f32 %v991, %v1300
    %v1406 = vadd.f32 %v995, %v1304
    %v1407 = vadd.f32 %v997, %v1306
    %v1408 = vadd.f32 %v1001, %v1310
    %v1409 = vadd.f32 %v1003, %v1312
    %v1410 = vadd.f32 %v1007, %v1316
    %v1411 = vadd.f32 %v1009, %v1318
    %v1412 = vadd.f32 %v1013, %v1322
    %v1413 = vadd.f32 %v1015, %v1324
    %v1414 = vadd.f32 %v1019, %v1328
    %v1415 = vadd.f32 %v1021, %v1330
    %v1416 = vadd.f32 %v1025, %v1334
    %v1417 = vadd.f32 %v1027, %v1336
    %v1418 = vadd.f32 %v1031, %v1340
    %v1419 = vadd.f32 %v1033, %v1342
    %v1420 = vadd.f32 %v1037, %v1346
    %v1421 = vadd.f32 %v1039, %v1348
    %v1422 = vadd.f32 %v1043, %v1352
    %v1423 = vadd.f32 %v1045, %v1354
    %v1424 = vadd.f32 %v1049, %v1358
    %v1425 = vadd.f32 %v1051, %v1360
    %v1426 = vld [vmem:[%s2] sm:$0x3]
    %v1428 = vlaneseq
    %v1429 = vshrl.u32 %v1428, 7
    %v1430 = vsub.s32 0, %v1429
    %v1431 = vrot.slane %v1426, %v1430
    %v1432 = vlaneseq
    %v1433 = vshrl.u32 %v1432, 7
    %v1434 = vsub.s32 1, %v1433
    %v1435 = vrot.slane %v1426, %v1434
    %v1438 = vadd.f32 %v1362, %v1431
    %v1439 = vadd.f32 %v1363, %v1435
    %v1440 = vadd.f32 %v1364, %v1431
    %v1441 = vadd.f32 %v1365, %v1435
    %v1442 = vadd.f32 %v1366, %v1431
    %v1443 = vadd.f32 %v1367, %v1435
    %v1444 = vadd.f32 %v1368, %v1431
    %v1445 = vadd.f32 %v1369, %v1435
    %v1446 = vadd.f32 %v1370, %v1431
    %v1447 = vadd.f32 %v1371, %v1435
    %v1448 = vadd.f32 %v1372, %v1431
    %v1449 = vadd.f32 %v1373, %v1435
    %v1450 = vadd.f32 %v1374, %v1431
    %v1451 = vadd.f32 %v1375, %v1435
    %v1452 = vadd.f32 %v1376, %v1431
    %v1453 = vadd.f32 %v1377, %v1435
    %v1454 = vadd.f32 %v1378, %v1431
    %v1455 = vadd.f32 %v1379, %v1435
    %v1456 = vadd.f32 %v1380, %v1431
    %v1457 = vadd.f32 %v1381, %v1435
    %v1458 = vadd.f32 %v1382, %v1431
    %v1459 = vadd.f32 %v1383, %v1435
    %v1460 = vadd.f32 %v1384, %v1431
    %v1461 = vadd.f32 %v1385, %v1435
    %v1462 = vadd.f32 %v1386, %v1431
    %v1463 = vadd.f32 %v1387, %v1435
    %v1464 = vadd.f32 %v1388, %v1431
    %v1465 = vadd.f32 %v1389, %v1435
    %v1466 = vadd.f32 %v1390, %v1431
    %v1467 = vadd.f32 %v1391, %v1435
    %v1468 = vadd.f32 %v1392, %v1431
    %v1469 = vadd.f32 %v1393, %v1435
    %v1470 = vadd.f32 %v1394, %v1431
    %v1471 = vadd.f32 %v1395, %v1435
    %v1472 = vadd.f32 %v1396, %v1431
    %v1473 = vadd.f32 %v1397, %v1435
    %v1474 = vadd.f32 %v1398, %v1431
    %v1475 = vadd.f32 %v1399, %v1435
    %v1476 = vadd.f32 %v1400, %v1431
    %v1477 = vadd.f32 %v1401, %v1435
    %v1478 = vadd.f32 %v1402, %v1431
    %v1479 = vadd.f32 %v1403, %v1435
    %v1480 = vadd.f32 %v1404, %v1431
    %v1481 = vadd.f32 %v1405, %v1435
    %v1482 = vadd.f32 %v1406, %v1431
    %v1483 = vadd.f32 %v1407, %v1435
    %v1484 = vadd.f32 %v1408, %v1431
    %v1485 = vadd.f32 %v1409, %v1435
    %v1486 = vadd.f32 %v1410, %v1431
    %v1487 = vadd.f32 %v1411, %v1435
    %v1488 = vadd.f32 %v1412, %v1431
    %v1489 = vadd.f32 %v1413, %v1435
    %v1490 = vadd.f32 %v1414, %v1431
    %v1491 = vadd.f32 %v1415, %v1435
    %v1492 = vadd.f32 %v1416, %v1431
    %v1493 = vadd.f32 %v1417, %v1435
    %v1494 = vadd.f32 %v1418, %v1431
    %v1495 = vadd.f32 %v1419, %v1435
    %v1496 = vadd.f32 %v1420, %v1431
    %v1497 = vadd.f32 %v1421, %v1435
    %v1498 = vadd.f32 %v1422, %v1431
    %v1499 = vadd.f32 %v1423, %v1435
    %v1500 = vadd.f32 %v1424, %v1431
    %v1501 = vadd.f32 %v1425, %v1435
    %v1502 = vmax.f32 %v1438, 0.0
    %v1503 = vmax.f32 %v1439, 0.0
    %v1504 = vmax.f32 %v1440, 0.0
    %v1505 = vmax.f32 %v1441, 0.0
    %v1506 = vmax.f32 %v1442, 0.0
    %v1507 = vmax.f32 %v1443, 0.0
    %v1508 = vmax.f32 %v1444, 0.0
    %v1509 = vmax.f32 %v1445, 0.0
    %v1510 = vmax.f32 %v1446, 0.0
    %v1511 = vmax.f32 %v1447, 0.0
    %v1512 = vmax.f32 %v1448, 0.0
    %v1513 = vmax.f32 %v1449, 0.0
    %v1514 = vmax.f32 %v1450, 0.0
    %v1515 = vmax.f32 %v1451, 0.0
    %v1516 = vmax.f32 %v1452, 0.0
    %v1517 = vmax.f32 %v1453, 0.0
    %v1518 = vmax.f32 %v1454, 0.0
    %v1519 = vmax.f32 %v1455, 0.0
    %v1520 = vmax.f32 %v1456, 0.0
    %v1521 = vmax.f32 %v1457, 0.0
    %v1522 = vmax.f32 %v1458, 0.0
    %v1523 = vmax.f32 %v1459, 0.0
    %v1524 = vmax.f32 %v1460, 0.0
    %v1525 = vmax.f32 %v1461, 0.0
    %v1526 = vmax.f32 %v1462, 0.0
    %v1527 = vmax.f32 %v1463, 0.0
    %v1528 = vmax.f32 %v1464, 0.0
    %v1529 = vmax.f32 %v1465, 0.0
    %v1530 = vmax.f32 %v1466, 0.0
    %v1531 = vmax.f32 %v1467, 0.0
    %v1532 = vmax.f32 %v1468, 0.0
    %v1533 = vmax.f32 %v1469, 0.0
    %v1534 = vmax.f32 %v1470, 0.0
    %v1535 = vmax.f32 %v1471, 0.0
    %v1536 = vmax.f32 %v1472, 0.0
    %v1537 = vmax.f32 %v1473, 0.0
    %v1538 = vmax.f32 %v1474, 0.0
    %v1539 = vmax.f32 %v1475, 0.0
    %v1540 = vmax.f32 %v1476, 0.0
    %v1541 = vmax.f32 %v1477, 0.0
    %v1542 = vmax.f32 %v1478, 0.0
    %v1543 = vmax.f32 %v1479, 0.0
    %v1544 = vmax.f32 %v1480, 0.0
    %v1545 = vmax.f32 %v1481, 0.0
    %v1546 = vmax.f32 %v1482, 0.0
    %v1547 = vmax.f32 %v1483, 0.0
    %v1548 = vmax.f32 %v1484, 0.0
    %v1549 = vmax.f32 %v1485, 0.0
    %v1550 = vmax.f32 %v1486, 0.0
    %v1551 = vmax.f32 %v1487, 0.0
    %v1552 = vmax.f32 %v1488, 0.0
    %v1553 = vmax.f32 %v1489, 0.0
    %v1554 = vmax.f32 %v1490, 0.0
    %v1555 = vmax.f32 %v1491, 0.0
    %v1556 = vmax.f32 %v1492, 0.0
    %v1557 = vmax.f32 %v1493, 0.0
    %v1558 = vmax.f32 %v1494, 0.0
    %v1559 = vmax.f32 %v1495, 0.0
    %v1560 = vmax.f32 %v1496, 0.0
    %v1561 = vmax.f32 %v1497, 0.0
    %v1562 = vmax.f32 %v1498, 0.0
    %v1563 = vmax.f32 %v1499, 0.0
    %v1564 = vmax.f32 %v1500, 0.0
    %v1565 = vmax.f32 %v1501, 0.0
    %v1566 = vld [vmem:[#allocation7] sm:$0xff]
    %v1567 = vld [vmem:[#allocation7 + $0x8] sm:$0xff]
    %v1568 = vld [vmem:[#allocation7 + $0x10] sm:$0xff]
    %v1569 = vld [vmem:[#allocation7 + $0x18] sm:$0xff]
    %v1570 = vld [vmem:[#allocation7 + $0x20] sm:$0xff]
    %v1571 = vld [vmem:[#allocation7 + $0x28] sm:$0xff]
    %v1572 = vld [vmem:[#allocation7 + $0x30] sm:$0xff]
    %v1573 = vld [vmem:[#allocation7 + $0x38] sm:$0xff]
    %v1574 = vld [vmem:[#allocation7 + $0x40] sm:$0xff]
    %v1575 = vld [vmem:[#allocation7 + $0x48] sm:$0xff]
    %v1576 = vld [vmem:[#allocation7 + $0x50] sm:$0xff]
    %v1577 = vld [vmem:[#allocation7 + $0x58] sm:$0xff]
    %v1578 = vld [vmem:[#allocation7 + $0x60] sm:$0xff]
    %v1579 = vld [vmem:[#allocation7 + $0x68] sm:$0xff]
    %v1580 = vld [vmem:[#allocation7 + $0x70] sm:$0xff]
    %v1581 = vld [vmem:[#allocation7 + $0x78] sm:$0xff]
    %v1582 = vld [vmem:[#allocation7 + $0x80] sm:$0xff]
    %v1583 = vld [vmem:[#allocation7 + $0x88] sm:$0xff]
    %v1584 = vld [vmem:[#allocation7 + $0x90] sm:$0xff]
    %v1585 = vld [vmem:[#allocation7 + $0x98] sm:$0xff]
    %v1586 = vld [vmem:[#allocation7 + $0xa0] sm:$0xff]
    %v1587 = vld [vmem:[#allocation7 + $0xa8] sm:$0xff]
    %v1588 = vld [vmem:[#allocation7 + $0xb0] sm:$0xff]
    %v1589 = vld [vmem:[#allocation7 + $0xb8] sm:$0xff]
    %v1590 = vld [vmem:[#allocation7 + $0xc0] sm:$0xff]
    %v1591 = vld [vmem:[#allocation7 + $0xc8] sm:$0xff]
    %v1592 = vld [vmem:[#allocation7 + $0xd0] sm:$0xff]
    %v1593 = vld [vmem:[#allocation7 + $0xd8] sm:$0xff]
    %v1594 = vld [vmem:[#allocation7 + $0xe0] sm:$0xff]
    %v1595 = vld [vmem:[#allocation7 + $0xe8] sm:$0xff]
    %v1596 = vld [vmem:[#allocation7 + $0xf0] sm:$0xff]
    %v1597 = vld [vmem:[#allocation7 + $0xf8] sm:$0xff]
    %v1598 = vld [vmem:[#allocation7 + $0x100] sm:$0xff]
    %v1599 = vld [vmem:[#allocation7 + $0x108] sm:$0xff]
    %v1600 = vld [vmem:[#allocation7 + $0x110] sm:$0xff]
    %v1601 = vld [vmem:[#allocation7 + $0x118] sm:$0xff]
    %v1602 = vld [vmem:[#allocation7 + $0x120] sm:$0xff]
    %v1603 = vld [vmem:[#allocation7 + $0x128] sm:$0xff]
    %v1604 = vld [vmem:[#allocation7 + $0x130] sm:$0xff]
    %v1605 = vld [vmem:[#allocation7 + $0x138] sm:$0xff]
    %v1606 = vld [vmem:[#allocation7 + $0x140] sm:$0xff]
    %v1607 = vld [vmem:[#allocation7 + $0x148] sm:$0xff]
    %v1608 = vld [vmem:[#allocation7 + $0x150] sm:$0xff]
    %v1609 = vld [vmem:[#allocation7 + $0x158] sm:$0xff]
    %v1610 = vld [vmem:[#allocation7 + $0x160] sm:$0xff]
    %v1611 = vld [vmem:[#allocation7 + $0x168] sm:$0xff]
    %v1612 = vld [vmem:[#allocation7 + $0x170] sm:$0xff]
    %v1613 = vld [vmem:[#allocation7 + $0x178] sm:$0xff]
    %s1614 = scalar_lea.vmem [#allocation7], 384
    %v1615 = vld [vmem:[%s1614] sm:$0xff]
    %v1616 = vld [vmem:[%s1614 + $0x8] sm:$0xff]
    %v1617 = vld [vmem:[%s1614 + $0x10] sm:$0xff]
    %v1618 = vld [vmem:[%s1614 + $0x18] sm:$0xff]
    %v1619 = vld [vmem:[%s1614 + $0x20] sm:$0xff]
    %v1620 = vld [vmem:[%s1614 + $0x28] sm:$0xff]
    %v1621 = vld [vmem:[%s1614 + $0x30] sm:$0xff]
    %v1622 = vld [vmem:[%s1614 + $0x38] sm:$0xff]
    %v1623 = vld [vmem:[%s1614 + $0x40] sm:$0xff]
    %v1624 = vld [vmem:[%s1614 + $0x48] sm:$0xff]
    %v1625 = vld [vmem:[%s1614 + $0x50] sm:$0xff]
    %v1626 = vld [vmem:[%s1614 + $0x58] sm:$0xff]
    %v1627 = vld [vmem:[%s1614 + $0x60] sm:$0xff]
    %v1628 = vld [vmem:[%s1614 + $0x68] sm:$0xff]
    %v1629 = vld [vmem:[%s1614 + $0x70] sm:$0xff]
    %v1630 = vld [vmem:[%s1614 + $0x78] sm:$0xff]
    %v1631 = vld [vmem:[%s1614 + $0x80] sm:$0xff]
    %v1632 = vld [vmem:[%s1614 + $0x88] sm:$0xff]
    %v1633 = vld [vmem:[%s1614 + $0x90] sm:$0xff]
    %v1634 = vld [vmem:[%s1614 + $0x98] sm:$0xff]
    %v1635 = vld [vmem:[%s1614 + $0xa0] sm:$0xff]
    %v1636 = vld [vmem:[%s1614 + $0xa8] sm:$0xff]
    %v1637 = vld [vmem:[%s1614 + $0xb0] sm:$0xff]
    %v1638 = vld [vmem:[%s1614 + $0xb8] sm:$0xff]
    %v1639 = vld [vmem:[%s1614 + $0xc0] sm:$0xff]
    %v1640 = vld [vmem:[%s1614 + $0xc8] sm:$0xff]
    %v1641 = vld [vmem:[%s1614 + $0xd0] sm:$0xff]
    %v1642 = vld [vmem:[%s1614 + $0xd8] sm:$0xff]
    %v1643 = vld [vmem:[%s1614 + $0xe0] sm:$0xff]
    %v1644 = vld [vmem:[%s1614 + $0xe8] sm:$0xff]
    %v1645 = vld [vmem:[%s1614 + $0xf0] sm:$0xff]
    %v1646 = vld [vmem:[%s1614 + $0xf8] sm:$0xff]
    %v1647 = vld [vmem:[%s1614 + $0x100] sm:$0xff]
    %v1648 = vld [vmem:[%s1614 + $0x108] sm:$0xff]
    %v1649 = vld [vmem:[%s1614 + $0x110] sm:$0xff]
    %v1650 = vld [vmem:[%s1614 + $0x118] sm:$0xff]
    %v1651 = vld [vmem:[%s1614 + $0x120] sm:$0xff]
    %v1652 = vld [vmem:[%s1614 + $0x128] sm:$0xff]
    %v1653 = vld [vmem:[%s1614 + $0x130] sm:$0xff]
    %v1654 = vld [vmem:[%s1614 + $0x138] sm:$0xff]
    %v1655 = vld [vmem:[%s1614 + $0x140] sm:$0xff]
    %v1656 = vld [vmem:[%s1614 + $0x148] sm:$0xff]
    %v1657 = vld [vmem:[%s1614 + $0x150] sm:$0xff]
    %v1658 = vld [vmem:[%s1614 + $0x158] sm:$0xff]
    %v1659 = vld [vmem:[%s1614 + $0x160] sm:$0xff]
    %v1660 = vld [vmem:[%s1614 + $0x168] sm:$0xff]
    %v1661 = vld [vmem:[%s1614 + $0x170] sm:$0xff]
    %v1662 = vld [vmem:[%s1614 + $0x178] sm:$0xff]
    %v1664 = vsel %vm346, %v1503, 0
    %v1667 = vsel %vm346, %v1507, 0
    %v1670 = vsel %vm346, %v1511, 0
    %v1673 = vsel %vm346, %v1515, 0
    %v1676 = vsel %vm346, %v1519, 0
    %v1679 = vsel %vm346, %v1523, 0
    %v1682 = vsel %vm346, %v1527, 0
    %v1685 = vsel %vm346, %v1531, 0
    %v1688 = vsel %vm346, %v1535, 0
    %v1691 = vsel %vm346, %v1539, 0
    %v1694 = vsel %vm346, %v1543, 0
    %v1697 = vsel %vm346, %v1547, 0
    %v1700 = vsel %vm346, %v1551, 0
    %v1703 = vsel %vm346, %v1555, 0
    %v1706 = vsel %vm346, %v1559, 0
    %v1709 = vsel %vm346, %v1563, 0
    %1711 = vmatprep.subr.mxu0 %v1646
    %1712 = vmatpush1.msra.mxu0 %v1645
    %1713 = vmatprep.subr.mxu0 %v1644
    %1714 = vmatpush1.msra.mxu0 %v1643
    %1715 = vmatprep.subr.mxu0 %v1642
    %1716 = vmatpush1.msra.mxu0 %v1641
    %1717 = vmatprep.subr.mxu0 %v1640
    %1718 = vmatpush1.msra.mxu0 %v1639
    %1719 = vmatprep.subr.mxu0 %v1638
    %1720 = vmatpush1.msra.mxu0 %v1637
    %1721 = vmatprep.subr.mxu0 %v1636
    %1722 = vmatpush1.msra.mxu0 %v1635
    %1723 = vmatprep.subr.mxu0 %v1634
    %1724 = vmatpush1.msra.mxu0 %v1633
    %1725 = vmatprep.subr.mxu0 %v1632
    %1726 = vmatpush1.msra.mxu0 %v1631
    %1727 = vmatprep.subr.mxu0 %v1630
    %1728 = vmatpush1.msra.mxu0 %v1629
    %1729 = vmatprep.subr.mxu0 %v1628
    %1730 = vmatpush1.msra.mxu0 %v1627
    %1731 = vmatprep.subr.mxu0 %v1626
    %1732 = vmatpush1.msra.mxu0 %v1625
    %1733 = vmatprep.subr.mxu0 %v1624
    %1734 = vmatpush1.msra.mxu0 %v1623
    %1735 = vmatprep.subr.mxu0 %v1622
    %1736 = vmatpush1.msra.mxu0 %v1621
    %1737 = vmatprep.subr.mxu0 %v1620
    %1738 = vmatpush1.msra.mxu0 %v1619
    %1739 = vmatprep.subr.mxu0 %v1618
    %1740 = vmatpush1.msra.mxu0 %v1617
    %1741 = vmatprep.subr.mxu0 %v1616
    %1742 = vmatpush1.msra.mxu0 %v1615
    %1743 = vmatprep.subr.mxu0 0.0
    %1744 = vmatpush2.msra.mxu0 0.0
    %1745 = vmatprep.subr.mxu0 0.0
    %1746 = vmatpush2.msra.mxu0 0.0
    %1747 = vmatprep.subr.mxu0 0.0
    %1748 = vmatpush2.msra.mxu0 0.0
    %1749 = vmatprep.subr.mxu0 0.0
    %1750 = vmatpush2.msra.mxu0 0.0
    %1751 = vmatprep.subr.mxu0 0.0
    %1752 = vmatpush2.msra.mxu0 0.0
    %1753 = vmatprep.subr.mxu0 0.0
    %1754 = vmatpush2.msra.mxu0 0.0
    %1755 = vmatprep.subr.mxu0 0.0
    %1756 = vmatpush2.msra.mxu0 0.0
    %1757 = vmatprep.subr.mxu0 0.0
    %1758 = vmatpush2.msra.mxu0 0.0
    %1759 = vmatprep.subr.mxu0 %v1662
    %1760 = vmatpush2.msra.mxu0 %v1661
    %1761 = vmatprep.subr.mxu0 %v1660
    %1762 = vmatpush2.msra.mxu0 %v1659
    %1763 = vmatprep.subr.mxu0 %v1658
    %1764 = vmatpush2.msra.mxu0 %v1657
    %1765 = vmatprep.subr.mxu0 %v1656
    %1766 = vmatpush2.msra.mxu0 %v1655
    %1767 = vmatprep.subr.mxu0 %v1654
    %1768 = vmatpush2.msra.mxu0 %v1653
    %1769 = vmatprep.subr.mxu0 %v1652
    %1770 = vmatpush2.msra.mxu0 %v1651
    %1771 = vmatprep.subr.mxu0 %v1650
    %1772 = vmatpush2.msra.mxu0 %v1649
    %1773 = vmatprep.subr.mxu0 %v1648
    %1774 = vmatpush2.msra.mxu0 %v1647
    %1775 = vmatprep.mubr.f32.mxu0 %v1664
    %1776 = vmatmul.mubr.f32.gmra.mxu0 %v1502
    %v1777 = vpop.f32.mrf.mxu0
    %v1778 = vadd.f32 0.0, %v1777
    %v1779 = vpop.f32.mrf.mxu0
    %v1780 = vadd.f32 0.0, %v1779
    %1781 = vmatprep.mubr.f32.mxu0 %v1667
    %1782 = vmatmul.mubr.f32.gmra.mxu0 %v1506
    %v1783 = vpop.f32.mrf.mxu0
    %v1784 = vadd.f32 0.0, %v1783
    %v1785 = vpop.f32.mrf.mxu0
    %v1786 = vadd.f32 0.0, %v1785
    %1787 = vmatprep.mubr.f32.mxu0 %v1670
    %1788 = vmatmul.mubr.f32.gmra.mxu0 %v1510
    %v1789 = vpop.f32.mrf.mxu0
    %v1790 = vadd.f32 0.0, %v1789
    %v1791 = vpop.f32.mrf.mxu0
    %v1792 = vadd.f32 0.0, %v1791
    %1793 = vmatprep.mubr.f32.mxu0 %v1673
    %1794 = vmatmul.mubr.f32.gmra.mxu0 %v1514
    %v1795 = vpop.f32.mrf.mxu0
    %v1796 = vadd.f32 0.0, %v1795
    %v1797 = vpop.f32.mrf.mxu0
    %v1798 = vadd.f32 0.0, %v1797
    %1799 = vmatprep.mubr.f32.mxu0 %v1676
    %1800 = vmatmul.mubr.f32.gmra.mxu0 %v1518
    %v1801 = vpop.f32.mrf.mxu0
    %v1802 = vadd.f32 0.0, %v1801
    %v1803 = vpop.f32.mrf.mxu0
    %v1804 = vadd.f32 0.0, %v1803
    %1805 = vmatprep.mubr.f32.mxu0 %v1679
    %1806 = vmatmul.mubr.f32.gmra.mxu0 %v1522
    %v1807 = vpop.f32.mrf.mxu0
    %v1808 = vadd.f32 0.0, %v1807
    %v1809 = vpop.f32.mrf.mxu0
    %v1810 = vadd.f32 0.0, %v1809
    %1811 = vmatprep.mubr.f32.mxu0 %v1682
    %1812 = vmatmul.mubr.f32.gmra.mxu0 %v1526
    %v1813 = vpop.f32.mrf.mxu0
    %v1814 = vadd.f32 0.0, %v1813
    %v1815 = vpop.f32.mrf.mxu0
    %v1816 = vadd.f32 0.0, %v1815
    %1817 = vmatprep.mubr.f32.mxu0 %v1685
    %1818 = vmatmul.mubr.f32.gmra.mxu0 %v1530
    %v1819 = vpop.f32.mrf.mxu0
    %v1820 = vadd.f32 0.0, %v1819
    %v1821 = vpop.f32.mrf.mxu0
    %v1822 = vadd.f32 0.0, %v1821
    %1823 = vmatprep.mubr.f32.mxu0 %v1688
    %1824 = vmatmul.mubr.f32.gmra.mxu0 %v1534
    %v1825 = vpop.f32.mrf.mxu0
    %v1826 = vadd.f32 0.0, %v1825
    %v1827 = vpop.f32.mrf.mxu0
    %v1828 = vadd.f32 0.0, %v1827
    %1829 = vmatprep.mubr.f32.mxu0 %v1691
    %1830 = vmatmul.mubr.f32.gmra.mxu0 %v1538
    %v1831 = vpop.f32.mrf.mxu0
    %v1832 = vadd.f32 0.0, %v1831
    %v1833 = vpop.f32.mrf.mxu0
    %v1834 = vadd.f32 0.0, %v1833
    %1835 = vmatprep.mubr.f32.mxu0 %v1694
    %1836 = vmatmul.mubr.f32.gmra.mxu0 %v1542
    %v1837 = vpop.f32.mrf.mxu0
    %v1838 = vadd.f32 0.0, %v1837
    %v1839 = vpop.f32.mrf.mxu0
    %v1840 = vadd.f32 0.0, %v1839
    %1841 = vmatprep.mubr.f32.mxu0 %v1697
    %1842 = vmatmul.mubr.f32.gmra.mxu0 %v1546
    %v1843 = vpop.f32.mrf.mxu0
    %v1844 = vadd.f32 0.0, %v1843
    %v1845 = vpop.f32.mrf.mxu0
    %v1846 = vadd.f32 0.0, %v1845
    %1847 = vmatprep.mubr.f32.mxu0 %v1700
    %1848 = vmatmul.mubr.f32.gmra.mxu0 %v1550
    %v1849 = vpop.f32.mrf.mxu0
    %v1850 = vadd.f32 0.0, %v1849
    %v1851 = vpop.f32.mrf.mxu0
    %v1852 = vadd.f32 0.0, %v1851
    %1853 = vmatprep.mubr.f32.mxu0 %v1703
    %1854 = vmatmul.mubr.f32.gmra.mxu0 %v1554
    %v1855 = vpop.f32.mrf.mxu0
    %v1856 = vadd.f32 0.0, %v1855
    %v1857 = vpop.f32.mrf.mxu0
    %v1858 = vadd.f32 0.0, %v1857
    %1859 = vmatprep.mubr.f32.mxu0 %v1706
    %1860 = vmatmul.mubr.f32.gmra.mxu0 %v1558
    %v1861 = vpop.f32.mrf.mxu0
    %v1862 = vadd.f32 0.0, %v1861
    %v1863 = vpop.f32.mrf.mxu0
    %v1864 = vadd.f32 0.0, %v1863
    %1865 = vmatprep.mubr.f32.mxu0 %v1709
    %1866 = vmatmul.mubr.f32.gmra.mxu0 %v1562
    %v1867 = vpop.f32.mrf.mxu0
    %v1868 = vadd.f32 0.0, %v1867
    %v1869 = vpop.f32.mrf.mxu0
    %v1870 = vadd.f32 0.0, %v1869
    %1871 = vdwg.mxu0
    %v1873 = vsel %vm346, %v1505, 0
    %v1876 = vsel %vm346, %v1509, 0
    %v1879 = vsel %vm346, %v1513, 0
    %v1882 = vsel %vm346, %v1517, 0
    %v1885 = vsel %vm346, %v1521, 0
    %v1888 = vsel %vm346, %v1525, 0
    %v1891 = vsel %vm346, %v1529, 0
    %v1894 = vsel %vm346, %v1533, 0
    %v1897 = vsel %vm346, %v1537, 0
    %v1900 = vsel %vm346, %v1541, 0
    %v1903 = vsel %vm346, %v1545, 0
    %v1906 = vsel %vm346, %v1549, 0
    %v1909 = vsel %vm346, %v1553, 0
    %v1912 = vsel %vm346, %v1557, 0
    %v1915 = vsel %vm346, %v1561, 0
    %1917 = vmatprep.subr.mxu0 %v1597
    %1918 = vmatpush1.msra.mxu0 %v1596
    %1919 = vmatprep.subr.mxu0 %v1595
    %1920 = vmatpush1.msra.mxu0 %v1594
    %1921 = vmatprep.subr.mxu0 %v1593
    %1922 = vmatpush1.msra.mxu0 %v1592
    %1923 = vmatprep.subr.mxu0 %v1591
    %1924 = vmatpush1.msra.mxu0 %v1590
    %1925 = vmatprep.subr.mxu0 %v1589
    %1926 = vmatpush1.msra.mxu0 %v1588
    %1927 = vmatprep.subr.mxu0 %v1587
    %1928 = vmatpush1.msra.mxu0 %v1586
    %1929 = vmatprep.subr.mxu0 %v1585
    %1930 = vmatpush1.msra.mxu0 %v1584
    %1931 = vmatprep.subr.mxu0 %v1583
    %1932 = vmatpush1.msra.mxu0 %v1582
    %1933 = vmatprep.subr.mxu0 %v1581
    %1934 = vmatpush1.msra.mxu0 %v1580
    %1935 = vmatprep.subr.mxu0 %v1579
    %1936 = vmatpush1.msra.mxu0 %v1578
    %1937 = vmatprep.subr.mxu0 %v1577
    %1938 = vmatpush1.msra.mxu0 %v1576
    %1939 = vmatprep.subr.mxu0 %v1575
    %1940 = vmatpush1.msra.mxu0 %v1574
    %1941 = vmatprep.subr.mxu0 %v1573
    %1942 = vmatpush1.msra.mxu0 %v1572
    %1943 = vmatprep.subr.mxu0 %v1571
    %1944 = vmatpush1.msra.mxu0 %v1570
    %1945 = vmatprep.subr.mxu0 %v1569
    %1946 = vmatpush1.msra.mxu0 %v1568
    %1947 = vmatprep.subr.mxu0 %v1567
    %1948 = vmatpush1.msra.mxu0 %v1566
    %1949 = vmatprep.subr.mxu0 0.0
    %1950 = vmatpush2.msra.mxu0 0.0
    %1951 = vmatprep.subr.mxu0 0.0
    %1952 = vmatpush2.msra.mxu0 0.0
    %1953 = vmatprep.subr.mxu0 0.0
    %1954 = vmatpush2.msra.mxu0 0.0
    %1955 = vmatprep.subr.mxu0 0.0
    %1956 = vmatpush2.msra.mxu0 0.0
    %1957 = vmatprep.subr.mxu0 0.0
    %1958 = vmatpush2.msra.mxu0 0.0
    %1959 = vmatprep.subr.mxu0 0.0
    %1960 = vmatpush2.msra.mxu0 0.0
    %1961 = vmatprep.subr.mxu0 0.0
    %1962 = vmatpush2.msra.mxu0 0.0
    %1963 = vmatprep.subr.mxu0 0.0
    %1964 = vmatpush2.msra.mxu0 0.0
    %1965 = vmatprep.subr.mxu0 %v1613
    %1966 = vmatpush2.msra.mxu0 %v1612
    %1967 = vmatprep.subr.mxu0 %v1611
    %1968 = vmatpush2.msra.mxu0 %v1610
    %1969 = vmatprep.subr.mxu0 %v1609
    %1970 = vmatpush2.msra.mxu0 %v1608
    %1971 = vmatprep.subr.mxu0 %v1607
    %1972 = vmatpush2.msra.mxu0 %v1606
    %1973 = vmatprep.subr.mxu0 %v1605
    %1974 = vmatpush2.msra.mxu0 %v1604
    %1975 = vmatprep.subr.mxu0 %v1603
    %1976 = vmatpush2.msra.mxu0 %v1602
    %1977 = vmatprep.subr.mxu0 %v1601
    %1978 = vmatpush2.msra.mxu0 %v1600
    %1979 = vmatprep.subr.mxu0 %v1599
    %1980 = vmatpush2.msra.mxu0 %v1598
    %1981 = vmatprep.mubr.f32.mxu0 %v701
    %1982 = vmatmul.mubr.f32.gmra.mxu0 0.0
    %v1983 = vpop.f32.mrf.mxu0
    %v1984 = vadd.f32 %v1778, %v1983
    %v1985 = vpop.f32.mrf.mxu0
    %v1986 = vadd.f32 %v1780, %v1985
    %1987 = vmatprep.mubr.f32.mxu0 %v1873
    %1988 = vmatmul.mubr.f32.gmra.mxu0 %v1504
    %v1989 = vpop.f32.mrf.mxu0
    %v1990 = vadd.f32 %v1784, %v1989
    %v1991 = vpop.f32.mrf.mxu0
    %v1992 = vadd.f32 %v1786, %v1991
    %1993 = vmatprep.mubr.f32.mxu0 %v1876
    %1994 = vmatmul.mubr.f32.gmra.mxu0 %v1508
    %v1995 = vpop.f32.mrf.mxu0
    %v1996 = vadd.f32 %v1790, %v1995
    %v1997 = vpop.f32.mrf.mxu0
    %v1998 = vadd.f32 %v1792, %v1997
    %1999 = vmatprep.mubr.f32.mxu0 %v1879
    %2000 = vmatmul.mubr.f32.gmra.mxu0 %v1512
    %v2001 = vpop.f32.mrf.mxu0
    %v2002 = vadd.f32 %v1796, %v2001
    %v2003 = vpop.f32.mrf.mxu0
    %v2004 = vadd.f32 %v1798, %v2003
    %2005 = vmatprep.mubr.f32.mxu0 %v1882
    %2006 = vmatmul.mubr.f32.gmra.mxu0 %v1516
    %v2007 = vpop.f32.mrf.mxu0
    %v2008 = vadd.f32 %v1802, %v2007
    %v2009 = vpop.f32.mrf.mxu0
    %v2010 = vadd.f32 %v1804, %v2009
    %2011 = vmatprep.mubr.f32.mxu0 %v1885
    %2012 = vmatmul.mubr.f32.gmra.mxu0 %v1520
    %v2013 = vpop.f32.mrf.mxu0
    %v2014 = vadd.f32 %v1808, %v2013
    %v2015 = vpop.f32.mrf.mxu0
    %v2016 = vadd.f32 %v1810, %v2015
    %2017 = vmatprep.mubr.f32.mxu0 %v1888
    %2018 = vmatmul.mubr.f32.gmra.mxu0 %v1524
    %v2019 = vpop.f32.mrf.mxu0
    %v2020 = vadd.f32 %v1814, %v2019
    %v2021 = vpop.f32.mrf.mxu0
    %v2022 = vadd.f32 %v1816, %v2021
    %2023 = vmatprep.mubr.f32.mxu0 %v1891
    %2024 = vmatmul.mubr.f32.gmra.mxu0 %v1528
    %v2025 = vpop.f32.mrf.mxu0
    %v2026 = vadd.f32 %v1820, %v2025
    %v2027 = vpop.f32.mrf.mxu0
    %v2028 = vadd.f32 %v1822, %v2027
    %2029 = vmatprep.mubr.f32.mxu0 %v1894
    %2030 = vmatmul.mubr.f32.gmra.mxu0 %v1532
    %v2031 = vpop.f32.mrf.mxu0
    %v2032 = vadd.f32 %v1826, %v2031
    %v2033 = vpop.f32.mrf.mxu0
    %v2034 = vadd.f32 %v1828, %v2033
    %2035 = vmatprep.mubr.f32.mxu0 %v1897
    %2036 = vmatmul.mubr.f32.gmra.mxu0 %v1536
    %v2037 = vpop.f32.mrf.mxu0
    %v2038 = vadd.f32 %v1832, %v2037
    %v2039 = vpop.f32.mrf.mxu0
    %v2040 = vadd.f32 %v1834, %v2039
    %2041 = vmatprep.mubr.f32.mxu0 %v1900
    %2042 = vmatmul.mubr.f32.gmra.mxu0 %v1540
    %v2043 = vpop.f32.mrf.mxu0
    %v2044 = vadd.f32 %v1838, %v2043
    %v2045 = vpop.f32.mrf.mxu0
    %v2046 = vadd.f32 %v1840, %v2045
    %2047 = vmatprep.mubr.f32.mxu0 %v1903
    %2048 = vmatmul.mubr.f32.gmra.mxu0 %v1544
    %v2049 = vpop.f32.mrf.mxu0
    %v2050 = vadd.f32 %v1844, %v2049
    %v2051 = vpop.f32.mrf.mxu0
    %v2052 = vadd.f32 %v1846, %v2051
    %2053 = vmatprep.mubr.f32.mxu0 %v1906
    %2054 = vmatmul.mubr.f32.gmra.mxu0 %v1548
    %v2055 = vpop.f32.mrf.mxu0
    %v2056 = vadd.f32 %v1850, %v2055
    %v2057 = vpop.f32.mrf.mxu0
    %v2058 = vadd.f32 %v1852, %v2057
    %2059 = vmatprep.mubr.f32.mxu0 %v1909
    %2060 = vmatmul.mubr.f32.gmra.mxu0 %v1552
    %v2061 = vpop.f32.mrf.mxu0
    %v2062 = vadd.f32 %v1856, %v2061
    %v2063 = vpop.f32.mrf.mxu0
    %v2064 = vadd.f32 %v1858, %v2063
    %2065 = vmatprep.mubr.f32.mxu0 %v1912
    %2066 = vmatmul.mubr.f32.gmra.mxu0 %v1556
    %v2067 = vpop.f32.mrf.mxu0
    %v2068 = vadd.f32 %v1862, %v2067
    %v2069 = vpop.f32.mrf.mxu0
    %v2070 = vadd.f32 %v1864, %v2069
    %2071 = vmatprep.mubr.f32.mxu0 %v1915
    %2072 = vmatmul.mubr.f32.gmra.mxu0 %v1560
    %v2073 = vpop.f32.mrf.mxu0
    %v2074 = vadd.f32 %v1868, %v2073
    %v2075 = vpop.f32.mrf.mxu0
    %v2076 = vadd.f32 %v1870, %v2075
    %2077 = vdwg.mxu0
    %s2078 = scalar_lea.vmem [#allocation7], 768
    %v2079 = vld [vmem:[%s2078] sm:$0xff]
    %v2080 = vld [vmem:[%s2078 + $0x8] sm:$0xff]
    %v2081 = vld [vmem:[%s2078 + $0x10] sm:$0xff]
    %v2082 = vld [vmem:[%s2078 + $0x18] sm:$0xff]
    %v2083 = vld [vmem:[%s2078 + $0x20] sm:$0xff]
    %v2084 = vld [vmem:[%s2078 + $0x28] sm:$0xff]
    %v2085 = vld [vmem:[%s2078 + $0x30] sm:$0xff]
    %v2086 = vld [vmem:[%s2078 + $0x38] sm:$0xff]
    %v2087 = vld [vmem:[%s2078 + $0x40] sm:$0xff]
    %v2088 = vld [vmem:[%s2078 + $0x48] sm:$0xff]
    %v2089 = vld [vmem:[%s2078 + $0x50] sm:$0xff]
    %v2090 = vld [vmem:[%s2078 + $0x58] sm:$0xff]
    %v2091 = vld [vmem:[%s2078 + $0x60] sm:$0xff]
    %v2092 = vld [vmem:[%s2078 + $0x68] sm:$0xff]
    %v2093 = vld [vmem:[%s2078 + $0x70] sm:$0xff]
    %v2094 = vld [vmem:[%s2078 + $0x78] sm:$0xff]
    %v2095 = vld [vmem:[%s2078 + $0x80] sm:$0xff]
    %v2096 = vld [vmem:[%s2078 + $0x88] sm:$0xff]
    %v2097 = vld [vmem:[%s2078 + $0x90] sm:$0xff]
    %v2098 = vld [vmem:[%s2078 + $0x98] sm:$0xff]
    %v2099 = vld [vmem:[%s2078 + $0xa0] sm:$0xff]
    %v2100 = vld [vmem:[%s2078 + $0xa8] sm:$0xff]
    %v2101 = vld [vmem:[%s2078 + $0xb0] sm:$0xff]
    %v2102 = vld [vmem:[%s2078 + $0xb8] sm:$0xff]
    %v2103 = vld [vmem:[%s2078 + $0xc0] sm:$0xff]
    %v2104 = vld [vmem:[%s2078 + $0xc8] sm:$0xff]
    %v2105 = vld [vmem:[%s2078 + $0xd0] sm:$0xff]
    %v2106 = vld [vmem:[%s2078 + $0xd8] sm:$0xff]
    %v2107 = vld [vmem:[%s2078 + $0xe0] sm:$0xff]
    %v2108 = vld [vmem:[%s2078 + $0xe8] sm:$0xff]
    %v2109 = vld [vmem:[%s2078 + $0xf0] sm:$0xff]
    %v2110 = vld [vmem:[%s2078 + $0xf8] sm:$0xff]
    %v2111 = vld [vmem:[%s2078 + $0x100] sm:$0xff]
    %v2112 = vld [vmem:[%s2078 + $0x108] sm:$0xff]
    %v2113 = vld [vmem:[%s2078 + $0x110] sm:$0xff]
    %v2114 = vld [vmem:[%s2078 + $0x118] sm:$0xff]
    %v2115 = vld [vmem:[%s2078 + $0x120] sm:$0xff]
    %v2116 = vld [vmem:[%s2078 + $0x128] sm:$0xff]
    %v2117 = vld [vmem:[%s2078 + $0x130] sm:$0xff]
    %v2118 = vld [vmem:[%s2078 + $0x138] sm:$0xff]
    %v2119 = vld [vmem:[%s2078 + $0x140] sm:$0xff]
    %v2120 = vld [vmem:[%s2078 + $0x148] sm:$0xff]
    %v2121 = vld [vmem:[%s2078 + $0x150] sm:$0xff]
    %v2122 = vld [vmem:[%s2078 + $0x158] sm:$0xff]
    %v2123 = vld [vmem:[%s2078 + $0x160] sm:$0xff]
    %v2124 = vld [vmem:[%s2078 + $0x168] sm:$0xff]
    %v2125 = vld [vmem:[%s2078 + $0x170] sm:$0xff]
    %v2126 = vld [vmem:[%s2078 + $0x178] sm:$0xff]
    %v2128 = vsel %vm346, %v1565, 0
    %2130 = vmatprep.subr.mxu0 %v2110
    %2131 = vmatpush1.msra.mxu0 %v2109
    %2132 = vmatprep.subr.mxu0 %v2108
    %2133 = vmatpush1.msra.mxu0 %v2107
    %2134 = vmatprep.subr.mxu0 %v2106
    %2135 = vmatpush1.msra.mxu0 %v2105
    %2136 = vmatprep.subr.mxu0 %v2104
    %2137 = vmatpush1.msra.mxu0 %v2103
    %2138 = vmatprep.subr.mxu0 %v2102
    %2139 = vmatpush1.msra.mxu0 %v2101
    %2140 = vmatprep.subr.mxu0 %v2100
    %2141 = vmatpush1.msra.mxu0 %v2099
    %2142 = vmatprep.subr.mxu0 %v2098
    %2143 = vmatpush1.msra.mxu0 %v2097
    %2144 = vmatprep.subr.mxu0 %v2096
    %2145 = vmatpush1.msra.mxu0 %v2095
    %2146 = vmatprep.subr.mxu0 %v2094
    %2147 = vmatpush1.msra.mxu0 %v2093
    %2148 = vmatprep.subr.mxu0 %v2092
    %2149 = vmatpush1.msra.mxu0 %v2091
    %2150 = vmatprep.subr.mxu0 %v2090
    %2151 = vmatpush1.msra.mxu0 %v2089
    %2152 = vmatprep.subr.mxu0 %v2088
    %2153 = vmatpush1.msra.mxu0 %v2087
    %2154 = vmatprep.subr.mxu0 %v2086
    %2155 = vmatpush1.msra.mxu0 %v2085
    %2156 = vmatprep.subr.mxu0 %v2084
    %2157 = vmatpush1.msra.mxu0 %v2083
    %2158 = vmatprep.subr.mxu0 %v2082
    %2159 = vmatpush1.msra.mxu0 %v2081
    %2160 = vmatprep.subr.mxu0 %v2080
    %2161 = vmatpush1.msra.mxu0 %v2079
    %2162 = vmatprep.subr.mxu0 0.0
    %2163 = vmatpush2.msra.mxu0 0.0
    %2164 = vmatprep.subr.mxu0 0.0
    %2165 = vmatpush2.msra.mxu0 0.0
    %2166 = vmatprep.subr.mxu0 0.0
    %2167 = vmatpush2.msra.mxu0 0.0
    %2168 = vmatprep.subr.mxu0 0.0
    %2169 = vmatpush2.msra.mxu0 0.0
    %2170 = vmatprep.subr.mxu0 0.0
    %2171 = vmatpush2.msra.mxu0 0.0
    %2172 = vmatprep.subr.mxu0 0.0
    %2173 = vmatpush2.msra.mxu0 0.0
    %2174 = vmatprep.subr.mxu0 0.0
    %2175 = vmatpush2.msra.mxu0 0.0
    %2176 = vmatprep.subr.mxu0 0.0
    %2177 = vmatpush2.msra.mxu0 0.0
    %2178 = vmatprep.subr.mxu0 %v2126
    %2179 = vmatpush2.msra.mxu0 %v2125
    %2180 = vmatprep.subr.mxu0 %v2124
    %2181 = vmatpush2.msra.mxu0 %v2123
    %2182 = vmatprep.subr.mxu0 %v2122
    %2183 = vmatpush2.msra.mxu0 %v2121
    %2184 = vmatprep.subr.mxu0 %v2120
    %2185 = vmatpush2.msra.mxu0 %v2119
    %2186 = vmatprep.subr.mxu0 %v2118
    %2187 = vmatpush2.msra.mxu0 %v2117
    %2188 = vmatprep.subr.mxu0 %v2116
    %2189 = vmatpush2.msra.mxu0 %v2115
    %2190 = vmatprep.subr.mxu0 %v2114
    %2191 = vmatpush2.msra.mxu0 %v2113
    %2192 = vmatprep.subr.mxu0 %v2112
    %2193 = vmatpush2.msra.mxu0 %v2111
    %2194 = vmatprep.mubr.f32.mxu0 %v1873
    %2195 = vmatmul.mubr.f32.gmra.mxu0 %v1504
    %v2196 = vpop.f32.mrf.mxu0
    %v2197 = vadd.f32 0.0, %v2196
    %v2198 = vpop.f32.mrf.mxu0
    %v2199 = vadd.f32 0.0, %v2198
    %2200 = vmatprep.mubr.f32.mxu0 %v1876
    %2201 = vmatmul.mubr.f32.gmra.mxu0 %v1508
    %v2202 = vpop.f32.mrf.mxu0
    %v2203 = vadd.f32 0.0, %v2202
    %v2204 = vpop.f32.mrf.mxu0
    %v2205 = vadd.f32 0.0, %v2204
    %2206 = vmatprep.mubr.f32.mxu0 %v1879
    %2207 = vmatmul.mubr.f32.gmra.mxu0 %v1512
    %v2208 = vpop.f32.mrf.mxu0
    %v2209 = vadd.f32 0.0, %v2208
    %v2210 = vpop.f32.mrf.mxu0
    %v2211 = vadd.f32 0.0, %v2210
    %2212 = vmatprep.mubr.f32.mxu0 %v1882
    %2213 = vmatmul.mubr.f32.gmra.mxu0 %v1516
    %v2214 = vpop.f32.mrf.mxu0
    %v2215 = vadd.f32 0.0, %v2214
    %v2216 = vpop.f32.mrf.mxu0
    %v2217 = vadd.f32 0.0, %v2216
    %2218 = vmatprep.mubr.f32.mxu0 %v1885
    %2219 = vmatmul.mubr.f32.gmra.mxu0 %v1520
    %v2220 = vpop.f32.mrf.mxu0
    %v2221 = vadd.f32 0.0, %v2220
    %v2222 = vpop.f32.mrf.mxu0
    %v2223 = vadd.f32 0.0, %v2222
    %2224 = vmatprep.mubr.f32.mxu0 %v1888
    %2225 = vmatmul.mubr.f32.gmra.mxu0 %v1524
    %v2226 = vpop.f32.mrf.mxu0
    %v2227 = vadd.f32 0.0, %v2226
    %v2228 = vpop.f32.mrf.mxu0
    %v2229 = vadd.f32 0.0, %v2228
    %2230 = vmatprep.mubr.f32.mxu0 %v1891
    %2231 = vmatmul.mubr.f32.gmra.mxu0 %v1528
    %v2232 = vpop.f32.mrf.mxu0
    %v2233 = vadd.f32 0.0, %v2232
    %v2234 = vpop.f32.mrf.mxu0
    %v2235 = vadd.f32 0.0, %v2234
    %2236 = vmatprep.mubr.f32.mxu0 %v1894
    %2237 = vmatmul.mubr.f32.gmra.mxu0 %v1532
    %v2238 = vpop.f32.mrf.mxu0
    %v2239 = vadd.f32 0.0, %v2238
    %v2240 = vpop.f32.mrf.mxu0
    %v2241 = vadd.f32 0.0, %v2240
    %2242 = vmatprep.mubr.f32.mxu0 %v1897
    %2243 = vmatmul.mubr.f32.gmra.mxu0 %v1536
    %v2244 = vpop.f32.mrf.mxu0
    %v2245 = vadd.f32 0.0, %v2244
    %v2246 = vpop.f32.mrf.mxu0
    %v2247 = vadd.f32 0.0, %v2246
    %2248 = vmatprep.mubr.f32.mxu0 %v1900
    %2249 = vmatmul.mubr.f32.gmra.mxu0 %v1540
    %v2250 = vpop.f32.mrf.mxu0
    %v2251 = vadd.f32 0.0, %v2250
    %v2252 = vpop.f32.mrf.mxu0
    %v2253 = vadd.f32 0.0, %v2252
    %2254 = vmatprep.mubr.f32.mxu0 %v1903
    %2255 = vmatmul.mubr.f32.gmra.mxu0 %v1544
    %v2256 = vpop.f32.mrf.mxu0
    %v2257 = vadd.f32 0.0, %v2256
    %v2258 = vpop.f32.mrf.mxu0
    %v2259 = vadd.f32 0.0, %v2258
    %2260 = vmatprep.mubr.f32.mxu0 %v1906
    %2261 = vmatmul.mubr.f32.gmra.mxu0 %v1548
    %v2262 = vpop.f32.mrf.mxu0
    %v2263 = vadd.f32 0.0, %v2262
    %v2264 = vpop.f32.mrf.mxu0
    %v2265 = vadd.f32 0.0, %v2264
    %2266 = vmatprep.mubr.f32.mxu0 %v1909
    %2267 = vmatmul.mubr.f32.gmra.mxu0 %v1552
    %v2268 = vpop.f32.mrf.mxu0
    %v2269 = vadd.f32 0.0, %v2268
    %v2270 = vpop.f32.mrf.mxu0
    %v2271 = vadd.f32 0.0, %v2270
    %2272 = vmatprep.mubr.f32.mxu0 %v1912
    %2273 = vmatmul.mubr.f32.gmra.mxu0 %v1556
    %v2274 = vpop.f32.mrf.mxu0
    %v2275 = vadd.f32 0.0, %v2274
    %v2276 = vpop.f32.mrf.mxu0
    %v2277 = vadd.f32 0.0, %v2276
    %2278 = vmatprep.mubr.f32.mxu0 %v1915
    %2279 = vmatmul.mubr.f32.gmra.mxu0 %v1560
    %v2280 = vpop.f32.mrf.mxu0
    %v2281 = vadd.f32 0.0, %v2280
    %v2282 = vpop.f32.mrf.mxu0
    %v2283 = vadd.f32 0.0, %v2282
    %2284 = vmatprep.mubr.f32.mxu0 %v2128
    %2285 = vmatmul.mubr.f32.gmra.mxu0 %v1564
    %v2286 = vpop.f32.mrf.mxu0
    %v2287 = vadd.f32 0.0, %v2286
    %v2288 = vpop.f32.mrf.mxu0
    %v2289 = vadd.f32 0.0, %v2288
    %2290 = vdwg.mxu0
    %v2291 = vadd.f32 %v1984, %v2197
    %v2292 = vadd.f32 %v1986, %v2199
    %v2293 = vadd.f32 %v1990, %v2203
    %v2294 = vadd.f32 %v1992, %v2205
    %v2295 = vadd.f32 %v1996, %v2209
    %v2296 = vadd.f32 %v1998, %v2211
    %v2297 = vadd.f32 %v2002, %v2215
    %v2298 = vadd.f32 %v2004, %v2217
    %v2299 = vadd.f32 %v2008, %v2221
    %v2300 = vadd.f32 %v2010, %v2223
    %v2301 = vadd.f32 %v2014, %v2227
    %v2302 = vadd.f32 %v2016, %v2229
    %v2303 = vadd.f32 %v2020, %v2233
    %v2304 = vadd.f32 %v2022, %v2235
    %v2305 = vadd.f32 %v2026, %v2239
    %v2306 = vadd.f32 %v2028, %v2241
    %v2307 = vadd.f32 %v2032, %v2245
    %v2308 = vadd.f32 %v2034, %v2247
    %v2309 = vadd.f32 %v2038, %v2251
    %v2310 = vadd.f32 %v2040, %v2253
    %v2311 = vadd.f32 %v2044, %v2257
    %v2312 = vadd.f32 %v2046, %v2259
    %v2313 = vadd.f32 %v2050, %v2263
    %v2314 = vadd.f32 %v2052, %v2265
    %v2315 = vadd.f32 %v2056, %v2269
    %v2316 = vadd.f32 %v2058, %v2271
    %v2317 = vadd.f32 %v2062, %v2275
    %v2318 = vadd.f32 %v2064, %v2277
    %v2319 = vadd.f32 %v2068, %v2281
    %v2320 = vadd.f32 %v2070, %v2283
    %v2321 = vadd.f32 %v2074, %v2287
    %v2322 = vadd.f32 %v2076, %v2289
    %v2323 = vld [vmem:[%s4] sm:$0x3]
    %v2325 = vlaneseq
    %v2326 = vshrl.u32 %v2325, 7
    %v2327 = vsub.s32 0, %v2326
    %v2328 = vrot.slane %v2323, %v2327
    %v2329 = vlaneseq
    %v2330 = vshrl.u32 %v2329, 7
    %v2331 = vsub.s32 1, %v2330
    %v2332 = vrot.slane %v2323, %v2331
    %v2335 = vadd.f32 %v2291, %v2328
    %v2336 = vadd.f32 %v2292, %v2332
    %v2337 = vadd.f32 %v2293, %v2328
    %v2338 = vadd.f32 %v2294, %v2332
    %v2339 = vadd.f32 %v2295, %v2328
    %v2340 = vadd.f32 %v2296, %v2332
    %v2341 = vadd.f32 %v2297, %v2328
    %v2342 = vadd.f32 %v2298, %v2332
    %v2343 = vadd.f32 %v2299, %v2328
    %v2344 = vadd.f32 %v2300, %v2332
    %v2345 = vadd.f32 %v2301, %v2328
    %v2346 = vadd.f32 %v2302, %v2332
    %v2347 = vadd.f32 %v2303, %v2328
    %v2348 = vadd.f32 %v2304, %v2332
    %v2349 = vadd.f32 %v2305, %v2328
    %v2350 = vadd.f32 %v2306, %v2332
    %v2351 = vadd.f32 %v2307, %v2328
    %v2352 = vadd.f32 %v2308, %v2332
    %v2353 = vadd.f32 %v2309, %v2328
    %v2354 = vadd.f32 %v2310, %v2332
    %v2355 = vadd.f32 %v2311, %v2328
    %v2356 = vadd.f32 %v2312, %v2332
    %v2357 = vadd.f32 %v2313, %v2328
    %v2358 = vadd.f32 %v2314, %v2332
    %v2359 = vadd.f32 %v2315, %v2328
    %v2360 = vadd.f32 %v2316, %v2332
    %v2361 = vadd.f32 %v2317, %v2328
    %v2362 = vadd.f32 %v2318, %v2332
    %v2363 = vadd.f32 %v2319, %v2328
    %v2364 = vadd.f32 %v2320, %v2332
    %v2365 = vadd.f32 %v2321, %v2328
    %v2366 = vadd.f32 %v2322, %v2332
    %v2367 = vmax.f32 %v2335, 0.0
    %v2368 = vmax.f32 %v2336, 0.0
    %v2369 = vmax.f32 %v2337, 0.0
    %v2370 = vmax.f32 %v2338, 0.0
    %v2371 = vmax.f32 %v2339, 0.0
    %v2372 = vmax.f32 %v2340, 0.0
    %v2373 = vmax.f32 %v2341, 0.0
    %v2374 = vmax.f32 %v2342, 0.0
    %v2375 = vmax.f32 %v2343, 0.0
    %v2376 = vmax.f32 %v2344, 0.0
    %v2377 = vmax.f32 %v2345, 0.0
    %v2378 = vmax.f32 %v2346, 0.0
    %v2379 = vmax.f32 %v2347, 0.0
    %v2380 = vmax.f32 %v2348, 0.0
    %v2381 = vmax.f32 %v2349, 0.0
    %v2382 = vmax.f32 %v2350, 0.0
    %v2383 = vmax.f32 %v2351, 0.0
    %v2384 = vmax.f32 %v2352, 0.0
    %v2385 = vmax.f32 %v2353, 0.0
    %v2386 = vmax.f32 %v2354, 0.0
    %v2387 = vmax.f32 %v2355, 0.0
    %v2388 = vmax.f32 %v2356, 0.0
    %v2389 = vmax.f32 %v2357, 0.0
    %v2390 = vmax.f32 %v2358, 0.0
    %v2391 = vmax.f32 %v2359, 0.0
    %v2392 = vmax.f32 %v2360, 0.0
    %v2393 = vmax.f32 %v2361, 0.0
    %v2394 = vmax.f32 %v2362, 0.0
    %v2395 = vmax.f32 %v2363, 0.0
    %v2396 = vmax.f32 %v2364, 0.0
    %v2397 = vmax.f32 %v2365, 0.0
    %v2398 = vmax.f32 %v2366, 0.0
    %v2399 = vld [vmem:[#allocation8] sm:$0xff]
    %v2400 = vld [vmem:[#allocation8 + $0x8] sm:$0xff]
    %v2401 = vld [vmem:[#allocation8 + $0x10] sm:$0xff]
    %v2402 = vld [vmem:[#allocation8 + $0x18] sm:$0xff]
    %v2403 = vld [vmem:[#allocation8 + $0x20] sm:$0xff]
    %v2404 = vld [vmem:[#allocation8 + $0x28] sm:$0xff]
    %v2405 = vld [vmem:[#allocation8 + $0x30] sm:$0xff]
    %v2406 = vld [vmem:[#allocation8 + $0x38] sm:$0xff]
    %v2407 = vld [vmem:[#allocation8 + $0x40] sm:$0xff]
    %v2408 = vld [vmem:[#allocation8 + $0x48] sm:$0xff]
    %v2409 = vld [vmem:[#allocation8 + $0x50] sm:$0xff]
    %v2410 = vld [vmem:[#allocation8 + $0x58] sm:$0xff]
    %v2411 = vld [vmem:[#allocation8 + $0x60] sm:$0xff]
    %v2412 = vld [vmem:[#allocation8 + $0x68] sm:$0xff]
    %v2413 = vld [vmem:[#allocation8 + $0x70] sm:$0xff]
    %v2414 = vld [vmem:[#allocation8 + $0x78] sm:$0xff]
    %v2415 = vld [vmem:[#allocation8 + $0x80] sm:$0xff]
    %v2416 = vld [vmem:[#allocation8 + $0x88] sm:$0xff]
    %v2417 = vld [vmem:[#allocation8 + $0x90] sm:$0xff]
    %v2418 = vld [vmem:[#allocation8 + $0x98] sm:$0xff]
    %v2419 = vld [vmem:[#allocation8 + $0xa0] sm:$0xff]
    %v2420 = vld [vmem:[#allocation8 + $0xa8] sm:$0xff]
    %v2421 = vld [vmem:[#allocation8 + $0xb0] sm:$0xff]
    %v2422 = vld [vmem:[#allocation8 + $0xb8] sm:$0xff]
    %v2423 = vld [vmem:[#allocation8 + $0xc0] sm:$0xff]
    %v2424 = vld [vmem:[#allocation8 + $0xc8] sm:$0xff]
    %v2425 = vld [vmem:[#allocation8 + $0xd0] sm:$0xff]
    %v2426 = vld [vmem:[#allocation8 + $0xd8] sm:$0xff]
    %v2427 = vld [vmem:[#allocation8 + $0xe0] sm:$0xff]
    %v2428 = vld [vmem:[#allocation8 + $0xe8] sm:$0xff]
    %v2429 = vld [vmem:[#allocation8 + $0xf0] sm:$0xff]
    %v2430 = vld [vmem:[#allocation8 + $0xf8] sm:$0xff]
    %v2431 = vld [vmem:[#allocation8 + $0x100] sm:$0xff]
    %v2432 = vld [vmem:[#allocation8 + $0x108] sm:$0xff]
    %v2433 = vld [vmem:[#allocation8 + $0x110] sm:$0xff]
    %v2434 = vld [vmem:[#allocation8 + $0x118] sm:$0xff]
    %v2435 = vld [vmem:[#allocation8 + $0x120] sm:$0xff]
    %v2436 = vld [vmem:[#allocation8 + $0x128] sm:$0xff]
    %v2437 = vld [vmem:[#allocation8 + $0x130] sm:$0xff]
    %v2438 = vld [vmem:[#allocation8 + $0x138] sm:$0xff]
    %v2439 = vld [vmem:[#allocation8 + $0x140] sm:$0xff]
    %v2440 = vld [vmem:[#allocation8 + $0x148] sm:$0xff]
    %v2441 = vld [vmem:[#allocation8 + $0x150] sm:$0xff]
    %v2442 = vld [vmem:[#allocation8 + $0x158] sm:$0xff]
    %v2443 = vld [vmem:[#allocation8 + $0x160] sm:$0xff]
    %v2444 = vld [vmem:[#allocation8 + $0x168] sm:$0xff]
    %v2445 = vld [vmem:[#allocation8 + $0x170] sm:$0xff]
    %v2446 = vld [vmem:[#allocation8 + $0x178] sm:$0xff]
    %s2447 = scalar_lea.vmem [#allocation8], 384
    %v2448 = vld [vmem:[%s2447] sm:$0xff]
    %v2449 = vld [vmem:[%s2447 + $0x8] sm:$0xff]
    %v2450 = vld [vmem:[%s2447 + $0x10] sm:$0xff]
    %v2451 = vld [vmem:[%s2447 + $0x18] sm:$0xff]
    %v2452 = vld [vmem:[%s2447 + $0x20] sm:$0xff]
    %v2453 = vld [vmem:[%s2447 + $0x28] sm:$0xff]
    %v2454 = vld [vmem:[%s2447 + $0x30] sm:$0xff]
    %v2455 = vld [vmem:[%s2447 + $0x38] sm:$0xff]
    %v2456 = vld [vmem:[%s2447 + $0x40] sm:$0xff]
    %v2457 = vld [vmem:[%s2447 + $0x48] sm:$0xff]
    %v2458 = vld [vmem:[%s2447 + $0x50] sm:$0xff]
    %v2459 = vld [vmem:[%s2447 + $0x58] sm:$0xff]
    %v2460 = vld [vmem:[%s2447 + $0x60] sm:$0xff]
    %v2461 = vld [vmem:[%s2447 + $0x68] sm:$0xff]
    %v2462 = vld [vmem:[%s2447 + $0x70] sm:$0xff]
    %v2463 = vld [vmem:[%s2447 + $0x78] sm:$0xff]
    %v2464 = vld [vmem:[%s2447 + $0x80] sm:$0xff]
    %v2465 = vld [vmem:[%s2447 + $0x88] sm:$0xff]
    %v2466 = vld [vmem:[%s2447 + $0x90] sm:$0xff]
    %v2467 = vld [vmem:[%s2447 + $0x98] sm:$0xff]
    %v2468 = vld [vmem:[%s2447 + $0xa0] sm:$0xff]
    %v2469 = vld [vmem:[%s2447 + $0xa8] sm:$0xff]
    %v2470 = vld [vmem:[%s2447 + $0xb0] sm:$0xff]
    %v2471 = vld [vmem:[%s2447 + $0xb8] sm:$0xff]
    %v2472 = vld [vmem:[%s2447 + $0xc0] sm:$0xff]
    %v2473 = vld [vmem:[%s2447 + $0xc8] sm:$0xff]
    %v2474 = vld [vmem:[%s2447 + $0xd0] sm:$0xff]
    %v2475 = vld [vmem:[%s2447 + $0xd8] sm:$0xff]
    %v2476 = vld [vmem:[%s2447 + $0xe0] sm:$0xff]
    %v2477 = vld [vmem:[%s2447 + $0xe8] sm:$0xff]
    %v2478 = vld [vmem:[%s2447 + $0xf0] sm:$0xff]
    %v2479 = vld [vmem:[%s2447 + $0xf8] sm:$0xff]
    %v2480 = vld [vmem:[%s2447 + $0x100] sm:$0xff]
    %v2481 = vld [vmem:[%s2447 + $0x108] sm:$0xff]
    %v2482 = vld [vmem:[%s2447 + $0x110] sm:$0xff]
    %v2483 = vld [vmem:[%s2447 + $0x118] sm:$0xff]
    %v2484 = vld [vmem:[%s2447 + $0x120] sm:$0xff]
    %v2485 = vld [vmem:[%s2447 + $0x128] sm:$0xff]
    %v2486 = vld [vmem:[%s2447 + $0x130] sm:$0xff]
    %v2487 = vld [vmem:[%s2447 + $0x138] sm:$0xff]
    %v2488 = vld [vmem:[%s2447 + $0x140] sm:$0xff]
    %v2489 = vld [vmem:[%s2447 + $0x148] sm:$0xff]
    %v2490 = vld [vmem:[%s2447 + $0x150] sm:$0xff]
    %v2491 = vld [vmem:[%s2447 + $0x158] sm:$0xff]
    %v2492 = vld [vmem:[%s2447 + $0x160] sm:$0xff]
    %v2493 = vld [vmem:[%s2447 + $0x168] sm:$0xff]
    %v2494 = vld [vmem:[%s2447 + $0x170] sm:$0xff]
    %v2495 = vld [vmem:[%s2447 + $0x178] sm:$0xff]
    %v2497 = vsel %vm346, %v2368, 0
    %v2500 = vsel %vm346, %v2372, 0
    %v2503 = vsel %vm346, %v2376, 0
    %v2506 = vsel %vm346, %v2380, 0
    %v2509 = vsel %vm346, %v2384, 0
    %v2512 = vsel %vm346, %v2388, 0
    %v2515 = vsel %vm346, %v2392, 0
    %v2518 = vsel %vm346, %v2396, 0
    %2520 = vmatprep.subr.mxu0 %v2479
    %2521 = vmatpush1.msra.mxu0 %v2478
    %2522 = vmatprep.subr.mxu0 %v2477
    %2523 = vmatpush1.msra.mxu0 %v2476
    %2524 = vmatprep.subr.mxu0 %v2475
    %2525 = vmatpush1.msra.mxu0 %v2474
    %2526 = vmatprep.subr.mxu0 %v2473
    %2527 = vmatpush1.msra.mxu0 %v2472
    %2528 = vmatprep.subr.mxu0 %v2471
    %2529 = vmatpush1.msra.mxu0 %v2470
    %2530 = vmatprep.subr.mxu0 %v2469
    %2531 = vmatpush1.msra.mxu0 %v2468
    %2532 = vmatprep.subr.mxu0 %v2467
    %2533 = vmatpush1.msra.mxu0 %v2466
    %2534 = vmatprep.subr.mxu0 %v2465
    %2535 = vmatpush1.msra.mxu0 %v2464
    %2536 = vmatprep.subr.mxu0 %v2463
    %2537 = vmatpush1.msra.mxu0 %v2462
    %2538 = vmatprep.subr.mxu0 %v2461
    %2539 = vmatpush1.msra.mxu0 %v2460
    %2540 = vmatprep.subr.mxu0 %v2459
    %2541 = vmatpush1.msra.mxu0 %v2458
    %2542 = vmatprep.subr.mxu0 %v2457
    %2543 = vmatpush1.msra.mxu0 %v2456
    %2544 = vmatprep.subr.mxu0 %v2455
    %2545 = vmatpush1.msra.mxu0 %v2454
    %2546 = vmatprep.subr.mxu0 %v2453
    %2547 = vmatpush1.msra.mxu0 %v2452
    %2548 = vmatprep.subr.mxu0 %v2451
    %2549 = vmatpush1.msra.mxu0 %v2450
    %2550 = vmatprep.subr.mxu0 %v2449
    %2551 = vmatpush1.msra.mxu0 %v2448
    %2552 = vmatprep.subr.mxu0 0.0
    %2553 = vmatpush2.msra.mxu0 0.0
    %2554 = vmatprep.subr.mxu0 0.0
    %2555 = vmatpush2.msra.mxu0 0.0
    %2556 = vmatprep.subr.mxu0 0.0
    %2557 = vmatpush2.msra.mxu0 0.0
    %2558 = vmatprep.subr.mxu0 0.0
    %2559 = vmatpush2.msra.mxu0 0.0
    %2560 = vmatprep.subr.mxu0 0.0
    %2561 = vmatpush2.msra.mxu0 0.0
    %2562 = vmatprep.subr.mxu0 0.0
    %2563 = vmatpush2.msra.mxu0 0.0
    %2564 = vmatprep.subr.mxu0 0.0
    %2565 = vmatpush2.msra.mxu0 0.0
    %2566 = vmatprep.subr.mxu0 0.0
    %2567 = vmatpush2.msra.mxu0 0.0
    %2568 = vmatprep.subr.mxu0 %v2495
    %2569 = vmatpush2.msra.mxu0 %v2494
    %2570 = vmatprep.subr.mxu0 %v2493
    %2571 = vmatpush2.msra.mxu0 %v2492
    %2572 = vmatprep.subr.mxu0 %v2491
    %2573 = vmatpush2.msra.mxu0 %v2490
    %2574 = vmatprep.subr.mxu0 %v2489
    %2575 = vmatpush2.msra.mxu0 %v2488
    %2576 = vmatprep.subr.mxu0 %v2487
    %2577 = vmatpush2.msra.mxu0 %v2486
    %2578 = vmatprep.subr.mxu0 %v2485
    %2579 = vmatpush2.msra.mxu0 %v2484
    %2580 = vmatprep.subr.mxu0 %v2483
    %2581 = vmatpush2.msra.mxu0 %v2482
    %2582 = vmatprep.subr.mxu0 %v2481
    %2583 = vmatpush2.msra.mxu0 %v2480
    %2584 = vmatprep.mubr.f32.mxu0 %v2497
    %2585 = vmatmul.mubr.f32.gmra.mxu0 %v2367
    %v2586 = vpop.f32.mrf.mxu0
    %v2587 = vadd.f32 0.0, %v2586
    %v2588 = vpop.f32.mrf.mxu0
    %v2589 = vadd.f32 0.0, %v2588
    %2590 = vmatprep.mubr.f32.mxu0 %v2500
    %2591 = vmatmul.mubr.f32.gmra.mxu0 %v2371
    %v2592 = vpop.f32.mrf.mxu0
    %v2593 = vadd.f32 0.0, %v2592
    %v2594 = vpop.f32.mrf.mxu0
    %v2595 = vadd.f32 0.0, %v2594
    %2596 = vmatprep.mubr.f32.mxu0 %v2503
    %2597 = vmatmul.mubr.f32.gmra.mxu0 %v2375
    %v2598 = vpop.f32.mrf.mxu0
    %v2599 = vadd.f32 0.0, %v2598
    %v2600 = vpop.f32.mrf.mxu0
    %v2601 = vadd.f32 0.0, %v2600
    %2602 = vmatprep.mubr.f32.mxu0 %v2506
    %2603 = vmatmul.mubr.f32.gmra.mxu0 %v2379
    %v2604 = vpop.f32.mrf.mxu0
    %v2605 = vadd.f32 0.0, %v2604
    %v2606 = vpop.f32.mrf.mxu0
    %v2607 = vadd.f32 0.0, %v2606
    %2608 = vmatprep.mubr.f32.mxu0 %v2509
    %2609 = vmatmul.mubr.f32.gmra.mxu0 %v2383
    %v2610 = vpop.f32.mrf.mxu0
    %v2611 = vadd.f32 0.0, %v2610
    %v2612 = vpop.f32.mrf.mxu0
    %v2613 = vadd.f32 0.0, %v2612
    %2614 = vmatprep.mubr.f32.mxu0 %v2512
    %2615 = vmatmul.mubr.f32.gmra.mxu0 %v2387
    %v2616 = vpop.f32.mrf.mxu0
    %v2617 = vadd.f32 0.0, %v2616
    %v2618 = vpop.f32.mrf.mxu0
    %v2619 = vadd.f32 0.0, %v2618
    %2620 = vmatprep.mubr.f32.mxu0 %v2515
    %2621 = vmatmul.mubr.f32.gmra.mxu0 %v2391
    %v2622 = vpop.f32.mrf.mxu0
    %v2623 = vadd.f32 0.0, %v2622
    %v2624 = vpop.f32.mrf.mxu0
    %v2625 = vadd.f32 0.0, %v2624
    %2626 = vmatprep.mubr.f32.mxu0 %v2518
    %2627 = vmatmul.mubr.f32.gmra.mxu0 %v2395
    %v2628 = vpop.f32.mrf.mxu0
    %v2629 = vadd.f32 0.0, %v2628
    %v2630 = vpop.f32.mrf.mxu0
    %v2631 = vadd.f32 0.0, %v2630
    %2632 = vdwg.mxu0
    %v2634 = vsel %vm346, %v2370, 0
    %v2637 = vsel %vm346, %v2374, 0
    %v2640 = vsel %vm346, %v2378, 0
    %v2643 = vsel %vm346, %v2382, 0
    %v2646 = vsel %vm346, %v2386, 0
    %v2649 = vsel %vm346, %v2390, 0
    %v2652 = vsel %vm346, %v2394, 0
    %2654 = vmatprep.subr.mxu0 %v2430
    %2655 = vmatpush1.msra.mxu0 %v2429
    %2656 = vmatprep.subr.mxu0 %v2428
    %2657 = vmatpush1.msra.mxu0 %v2427
    %2658 = vmatprep.subr.mxu0 %v2426
    %2659 = vmatpush1.msra.mxu0 %v2425
    %2660 = vmatprep.subr.mxu0 %v2424
    %2661 = vmatpush1.msra.mxu0 %v2423
    %2662 = vmatprep.subr.mxu0 %v2422
    %2663 = vmatpush1.msra.mxu0 %v2421
    %2664 = vmatprep.subr.mxu0 %v2420
    %2665 = vmatpush1.msra.mxu0 %v2419
    %2666 = vmatprep.subr.mxu0 %v2418
    %2667 = vmatpush1.msra.mxu0 %v2417
    %2668 = vmatprep.subr.mxu0 %v2416
    %2669 = vmatpush1.msra.mxu0 %v2415
    %2670 = vmatprep.subr.mxu0 %v2414
    %2671 = vmatpush1.msra.mxu0 %v2413
    %2672 = vmatprep.subr.mxu0 %v2412
    %2673 = vmatpush1.msra.mxu0 %v2411
    %2674 = vmatprep.subr.mxu0 %v2410
    %2675 = vmatpush1.msra.mxu0 %v2409
    %2676 = vmatprep.subr.mxu0 %v2408
    %2677 = vmatpush1.msra.mxu0 %v2407
    %2678 = vmatprep.subr.mxu0 %v2406
    %2679 = vmatpush1.msra.mxu0 %v2405
    %2680 = vmatprep.subr.mxu0 %v2404
    %2681 = vmatpush1.msra.mxu0 %v2403
    %2682 = vmatprep.subr.mxu0 %v2402
    %2683 = vmatpush1.msra.mxu0 %v2401
    %2684 = vmatprep.subr.mxu0 %v2400
    %2685 = vmatpush1.msra.mxu0 %v2399
    %2686 = vmatprep.subr.mxu0 0.0
    %2687 = vmatpush2.msra.mxu0 0.0
    %2688 = vmatprep.subr.mxu0 0.0
    %2689 = vmatpush2.msra.mxu0 0.0
    %2690 = vmatprep.subr.mxu0 0.0
    %2691 = vmatpush2.msra.mxu0 0.0
    %2692 = vmatprep.subr.mxu0 0.0
    %2693 = vmatpush2.msra.mxu0 0.0
    %2694 = vmatprep.subr.mxu0 0.0
    %2695 = vmatpush2.msra.mxu0 0.0
    %2696 = vmatprep.subr.mxu0 0.0
    %2697 = vmatpush2.msra.mxu0 0.0
    %2698 = vmatprep.subr.mxu0 0.0
    %2699 = vmatpush2.msra.mxu0 0.0
    %2700 = vmatprep.subr.mxu0 0.0
    %2701 = vmatpush2.msra.mxu0 0.0
    %2702 = vmatprep.subr.mxu0 %v2446
    %2703 = vmatpush2.msra.mxu0 %v2445
    %2704 = vmatprep.subr.mxu0 %v2444
    %2705 = vmatpush2.msra.mxu0 %v2443
    %2706 = vmatprep.subr.mxu0 %v2442
    %2707 = vmatpush2.msra.mxu0 %v2441
    %2708 = vmatprep.subr.mxu0 %v2440
    %2709 = vmatpush2.msra.mxu0 %v2439
    %2710 = vmatprep.subr.mxu0 %v2438
    %2711 = vmatpush2.msra.mxu0 %v2437
    %2712 = vmatprep.subr.mxu0 %v2436
    %2713 = vmatpush2.msra.mxu0 %v2435
    %2714 = vmatprep.subr.mxu0 %v2434
    %2715 = vmatpush2.msra.mxu0 %v2433
    %2716 = vmatprep.subr.mxu0 %v2432
    %2717 = vmatpush2.msra.mxu0 %v2431
    %2718 = vmatprep.mubr.f32.mxu0 %v701
    %2719 = vmatmul.mubr.f32.gmra.mxu0 0.0
    %v2720 = vpop.f32.mrf.mxu0
    %v2721 = vadd.f32 %v2587, %v2720
    %v2722 = vpop.f32.mrf.mxu0
    %v2723 = vadd.f32 %v2589, %v2722
    %2724 = vmatprep.mubr.f32.mxu0 %v2634
    %2725 = vmatmul.mubr.f32.gmra.mxu0 %v2369
    %v2726 = vpop.f32.mrf.mxu0
    %v2727 = vadd.f32 %v2593, %v2726
    %v2728 = vpop.f32.mrf.mxu0
    %v2729 = vadd.f32 %v2595, %v2728
    %2730 = vmatprep.mubr.f32.mxu0 %v2637
    %2731 = vmatmul.mubr.f32.gmra.mxu0 %v2373
    %v2732 = vpop.f32.mrf.mxu0
    %v2733 = vadd.f32 %v2599, %v2732
    %v2734 = vpop.f32.mrf.mxu0
    %v2735 = vadd.f32 %v2601, %v2734
    %2736 = vmatprep.mubr.f32.mxu0 %v2640
    %2737 = vmatmul.mubr.f32.gmra.mxu0 %v2377
    %v2738 = vpop.f32.mrf.mxu0
    %v2739 = vadd.f32 %v2605, %v2738
    %v2740 = vpop.f32.mrf.mxu0
    %v2741 = vadd.f32 %v2607, %v2740
    %2742 = vmatprep.mubr.f32.mxu0 %v2643
    %2743 = vmatmul.mubr.f32.gmra.mxu0 %v2381
    %v2744 = vpop.f32.mrf.mxu0
    %v2745 = vadd.f32 %v2611, %v2744
    %v2746 = vpop.f32.mrf.mxu0
    %v2747 = vadd.f32 %v2613, %v2746
    %2748 = vmatprep.mubr.f32.mxu0 %v2646
    %2749 = vmatmul.mubr.f32.gmra.mxu0 %v2385
    %v2750 = vpop.f32.mrf.mxu0
    %v2751 = vadd.f32 %v2617, %v2750
    %v2752 = vpop.f32.mrf.mxu0
    %v2753 = vadd.f32 %v2619, %v2752
    %2754 = vmatprep.mubr.f32.mxu0 %v2649
    %2755 = vmatmul.mubr.f32.gmra.mxu0 %v2389
    %v2756 = vpop.f32.mrf.mxu0
    %v2757 = vadd.f32 %v2623, %v2756
    %v2758 = vpop.f32.mrf.mxu0
    %v2759 = vadd.f32 %v2625, %v2758
    %2760 = vmatprep.mubr.f32.mxu0 %v2652
    %2761 = vmatmul.mubr.f32.gmra.mxu0 %v2393
    %v2762 = vpop.f32.mrf.mxu0
    %v2763 = vadd.f32 %v2629, %v2762
    %v2764 = vpop.f32.mrf.mxu0
    %v2765 = vadd.f32 %v2631, %v2764
    %2766 = vdwg.mxu0
    %s2767 = scalar_lea.vmem [#allocation8], 768
    %v2768 = vld [vmem:[%s2767] sm:$0xff]
    %v2769 = vld [vmem:[%s2767 + $0x8] sm:$0xff]
    %v2770 = vld [vmem:[%s2767 + $0x10] sm:$0xff]
    %v2771 = vld [vmem:[%s2767 + $0x18] sm:$0xff]
    %v2772 = vld [vmem:[%s2767 + $0x20] sm:$0xff]
    %v2773 = vld [vmem:[%s2767 + $0x28] sm:$0xff]
    %v2774 = vld [vmem:[%s2767 + $0x30] sm:$0xff]
    %v2775 = vld [vmem:[%s2767 + $0x38] sm:$0xff]
    %v2776 = vld [vmem:[%s2767 + $0x40] sm:$0xff]
    %v2777 = vld [vmem:[%s2767 + $0x48] sm:$0xff]
    %v2778 = vld [vmem:[%s2767 + $0x50] sm:$0xff]
    %v2779 = vld [vmem:[%s2767 + $0x58] sm:$0xff]
    %v2780 = vld [vmem:[%s2767 + $0x60] sm:$0xff]
    %v2781 = vld [vmem:[%s2767 + $0x68] sm:$0xff]
    %v2782 = vld [vmem:[%s2767 + $0x70] sm:$0xff]
    %v2783 = vld [vmem:[%s2767 + $0x78] sm:$0xff]
    %v2784 = vld [vmem:[%s2767 + $0x80] sm:$0xff]
    %v2785 = vld [vmem:[%s2767 + $0x88] sm:$0xff]
    %v2786 = vld [vmem:[%s2767 + $0x90] sm:$0xff]
    %v2787 = vld [vmem:[%s2767 + $0x98] sm:$0xff]
    %v2788 = vld [vmem:[%s2767 + $0xa0] sm:$0xff]
    %v2789 = vld [vmem:[%s2767 + $0xa8] sm:$0xff]
    %v2790 = vld [vmem:[%s2767 + $0xb0] sm:$0xff]
    %v2791 = vld [vmem:[%s2767 + $0xb8] sm:$0xff]
    %v2792 = vld [vmem:[%s2767 + $0xc0] sm:$0xff]
    %v2793 = vld [vmem:[%s2767 + $0xc8] sm:$0xff]
    %v2794 = vld [vmem:[%s2767 + $0xd0] sm:$0xff]
    %v2795 = vld [vmem:[%s2767 + $0xd8] sm:$0xff]
    %v2796 = vld [vmem:[%s2767 + $0xe0] sm:$0xff]
    %v2797 = vld [vmem:[%s2767 + $0xe8] sm:$0xff]
    %v2798 = vld [vmem:[%s2767 + $0xf0] sm:$0xff]
    %v2799 = vld [vmem:[%s2767 + $0xf8] sm:$0xff]
    %v2800 = vld [vmem:[%s2767 + $0x100] sm:$0xff]
    %v2801 = vld [vmem:[%s2767 + $0x108] sm:$0xff]
    %v2802 = vld [vmem:[%s2767 + $0x110] sm:$0xff]
    %v2803 = vld [vmem:[%s2767 + $0x118] sm:$0xff]
    %v2804 = vld [vmem:[%s2767 + $0x120] sm:$0xff]
    %v2805 = vld [vmem:[%s2767 + $0x128] sm:$0xff]
    %v2806 = vld [vmem:[%s2767 + $0x130] sm:$0xff]
    %v2807 = vld [vmem:[%s2767 + $0x138] sm:$0xff]
    %v2808 = vld [vmem:[%s2767 + $0x140] sm:$0xff]
    %v2809 = vld [vmem:[%s2767 + $0x148] sm:$0xff]
    %v2810 = vld [vmem:[%s2767 + $0x150] sm:$0xff]
    %v2811 = vld [vmem:[%s2767 + $0x158] sm:$0xff]
    %v2812 = vld [vmem:[%s2767 + $0x160] sm:$0xff]
    %v2813 = vld [vmem:[%s2767 + $0x168] sm:$0xff]
    %v2814 = vld [vmem:[%s2767 + $0x170] sm:$0xff]
    %v2815 = vld [vmem:[%s2767 + $0x178] sm:$0xff]
    %v2817 = vsel %vm346, %v2398, 0
    %2819 = vmatprep.subr.mxu0 %v2799
    %2820 = vmatpush1.msra.mxu0 %v2798
    %2821 = vmatprep.subr.mxu0 %v2797
    %2822 = vmatpush1.msra.mxu0 %v2796
    %2823 = vmatprep.subr.mxu0 %v2795
    %2824 = vmatpush1.msra.mxu0 %v2794
    %2825 = vmatprep.subr.mxu0 %v2793
    %2826 = vmatpush1.msra.mxu0 %v2792
    %2827 = vmatprep.subr.mxu0 %v2791
    %2828 = vmatpush1.msra.mxu0 %v2790
    %2829 = vmatprep.subr.mxu0 %v2789
    %2830 = vmatpush1.msra.mxu0 %v2788
    %2831 = vmatprep.subr.mxu0 %v2787
    %2832 = vmatpush1.msra.mxu0 %v2786
    %2833 = vmatprep.subr.mxu0 %v2785
    %2834 = vmatpush1.msra.mxu0 %v2784
    %2835 = vmatprep.subr.mxu0 %v2783
    %2836 = vmatpush1.msra.mxu0 %v2782
    %2837 = vmatprep.subr.mxu0 %v2781
    %2838 = vmatpush1.msra.mxu0 %v2780
    %2839 = vmatprep.subr.mxu0 %v2779
    %2840 = vmatpush1.msra.mxu0 %v2778
    %2841 = vmatprep.subr.mxu0 %v2777
    %2842 = vmatpush1.msra.mxu0 %v2776
    %2843 = vmatprep.subr.mxu0 %v2775
    %2844 = vmatpush1.msra.mxu0 %v2774
    %2845 = vmatprep.subr.mxu0 %v2773
    %2846 = vmatpush1.msra.mxu0 %v2772
    %2847 = vmatprep.subr.mxu0 %v2771
    %2848 = vmatpush1.msra.mxu0 %v2770
    %2849 = vmatprep.subr.mxu0 %v2769
    %2850 = vmatpush1.msra.mxu0 %v2768
    %2851 = vmatprep.subr.mxu0 0.0
    %2852 = vmatpush2.msra.mxu0 0.0
    %2853 = vmatprep.subr.mxu0 0.0
    %2854 = vmatpush2.msra.mxu0 0.0
    %2855 = vmatprep.subr.mxu0 0.0
    %2856 = vmatpush2.msra.mxu0 0.0
    %2857 = vmatprep.subr.mxu0 0.0
    %2858 = vmatpush2.msra.mxu0 0.0
    %2859 = vmatprep.subr.mxu0 0.0
    %2860 = vmatpush2.msra.mxu0 0.0
    %2861 = vmatprep.subr.mxu0 0.0
    %2862 = vmatpush2.msra.mxu0 0.0
    %2863 = vmatprep.subr.mxu0 0.0
    %2864 = vmatpush2.msra.mxu0 0.0
    %2865 = vmatprep.subr.mxu0 0.0
    %2866 = vmatpush2.msra.mxu0 0.0
    %2867 = vmatprep.subr.mxu0 %v2815
    %2868 = vmatpush2.msra.mxu0 %v2814
    %2869 = vmatprep.subr.mxu0 %v2813
    %2870 = vmatpush2.msra.mxu0 %v2812
    %2871 = vmatprep.subr.mxu0 %v2811
    %2872 = vmatpush2.msra.mxu0 %v2810
    %2873 = vmatprep.subr.mxu0 %v2809
    %2874 = vmatpush2.msra.mxu0 %v2808
    %2875 = vmatprep.subr.mxu0 %v2807
    %2876 = vmatpush2.msra.mxu0 %v2806
    %2877 = vmatprep.subr.mxu0 %v2805
    %2878 = vmatpush2.msra.mxu0 %v2804
    %2879 = vmatprep.subr.mxu0 %v2803
    %2880 = vmatpush2.msra.mxu0 %v2802
    %2881 = vmatprep.subr.mxu0 %v2801
    %2882 = vmatpush2.msra.mxu0 %v2800
    %2883 = vmatprep.mubr.f32.mxu0 %v2634
    %2884 = vmatmul.mubr.f32.gmra.mxu0 %v2369
    %v2885 = vpop.f32.mrf.mxu0
    %v2886 = vadd.f32 0.0, %v2885
    %v2887 = vpop.f32.mrf.mxu0
    %v2888 = vadd.f32 0.0, %v2887
    %2889 = vmatprep.mubr.f32.mxu0 %v2637
    %2890 = vmatmul.mubr.f32.gmra.mxu0 %v2373
    %v2891 = vpop.f32.mrf.mxu0
    %v2892 = vadd.f32 0.0, %v2891
    %v2893 = vpop.f32.mrf.mxu0
    %v2894 = vadd.f32 0.0, %v2893
    %2895 = vmatprep.mubr.f32.mxu0 %v2640
    %2896 = vmatmul.mubr.f32.gmra.mxu0 %v2377
    %v2897 = vpop.f32.mrf.mxu0
    %v2898 = vadd.f32 0.0, %v2897
    %v2899 = vpop.f32.mrf.mxu0
    %v2900 = vadd.f32 0.0, %v2899
    %2901 = vmatprep.mubr.f32.mxu0 %v2643
    %2902 = vmatmul.mubr.f32.gmra.mxu0 %v2381
    %v2903 = vpop.f32.mrf.mxu0
    %v2904 = vadd.f32 0.0, %v2903
    %v2905 = vpop.f32.mrf.mxu0
    %v2906 = vadd.f32 0.0, %v2905
    %2907 = vmatprep.mubr.f32.mxu0 %v2646
    %2908 = vmatmul.mubr.f32.gmra.mxu0 %v2385
    %v2909 = vpop.f32.mrf.mxu0
    %v2910 = vadd.f32 0.0, %v2909
    %v2911 = vpop.f32.mrf.mxu0
    %v2912 = vadd.f32 0.0, %v2911
    %2913 = vmatprep.mubr.f32.mxu0 %v2649
    %2914 = vmatmul.mubr.f32.gmra.mxu0 %v2389
    %v2915 = vpop.f32.mrf.mxu0
    %v2916 = vadd.f32 0.0, %v2915
    %v2917 = vpop.f32.mrf.mxu0
    %v2918 = vadd.f32 0.0, %v2917
    %2919 = vmatprep.mubr.f32.mxu0 %v2652
    %2920 = vmatmul.mubr.f32.gmra.mxu0 %v2393
    %v2921 = vpop.f32.mrf.mxu0
    %v2922 = vadd.f32 0.0, %v2921
    %v2923 = vpop.f32.mrf.mxu0
    %v2924 = vadd.f32 0.0, %v2923
    %2925 = vmatprep.mubr.f32.mxu0 %v2817
    %2926 = vmatmul.mubr.f32.gmra.mxu0 %v2397
    %v2927 = vpop.f32.mrf.mxu0
    %v2928 = vadd.f32 0.0, %v2927
    %v2929 = vpop.f32.mrf.mxu0
    %v2930 = vadd.f32 0.0, %v2929
    %2931 = vdwg.mxu0
    %v2932 = vadd.f32 %v2721, %v2886
    %v2933 = vadd.f32 %v2723, %v2888
    %v2934 = vadd.f32 %v2727, %v2892
    %v2935 = vadd.f32 %v2729, %v2894
    %v2936 = vadd.f32 %v2733, %v2898
    %v2937 = vadd.f32 %v2735, %v2900
    %v2938 = vadd.f32 %v2739, %v2904
    %v2939 = vadd.f32 %v2741, %v2906
    %v2940 = vadd.f32 %v2745, %v2910
    %v2941 = vadd.f32 %v2747, %v2912
    %v2942 = vadd.f32 %v2751, %v2916
    %v2943 = vadd.f32 %v2753, %v2918
    %v2944 = vadd.f32 %v2757, %v2922
    %v2945 = vadd.f32 %v2759, %v2924
    %v2946 = vadd.f32 %v2763, %v2928
    %v2947 = vadd.f32 %v2765, %v2930
    %v2948 = vld [vmem:[%s6] sm:$0x3]
    %v2950 = vlaneseq
    %v2951 = vshrl.u32 %v2950, 7
    %v2952 = vsub.s32 0, %v2951
    %v2953 = vrot.slane %v2948, %v2952
    %v2954 = vlaneseq
    %v2955 = vshrl.u32 %v2954, 7
    %v2956 = vsub.s32 1, %v2955
    %v2957 = vrot.slane %v2948, %v2956
    %v2960 = vadd.f32 %v2932, %v2953
    %v2961 = vadd.f32 %v2933, %v2957
    %v2962 = vadd.f32 %v2934, %v2953
    %v2963 = vadd.f32 %v2935, %v2957
    %v2964 = vadd.f32 %v2936, %v2953
    %v2965 = vadd.f32 %v2937, %v2957
    %v2966 = vadd.f32 %v2938, %v2953
    %v2967 = vadd.f32 %v2939, %v2957
    %v2968 = vadd.f32 %v2940, %v2953
    %v2969 = vadd.f32 %v2941, %v2957
    %v2970 = vadd.f32 %v2942, %v2953
    %v2971 = vadd.f32 %v2943, %v2957
    %v2972 = vadd.f32 %v2944, %v2953
    %v2973 = vadd.f32 %v2945, %v2957
    %v2974 = vadd.f32 %v2946, %v2953
    %v2975 = vadd.f32 %v2947, %v2957
    %v2976 = vmax.f32 %v2960, 0.0
    %v2977 = vmax.f32 %v2961, 0.0
    %v2978 = vmax.f32 %v2962, 0.0
    %v2979 = vmax.f32 %v2963, 0.0
    %v2980 = vmax.f32 %v2964, 0.0
    %v2981 = vmax.f32 %v2965, 0.0
    %v2982 = vmax.f32 %v2966, 0.0
    %v2983 = vmax.f32 %v2967, 0.0
    %v2984 = vmax.f32 %v2968, 0.0
    %v2985 = vmax.f32 %v2969, 0.0
    %v2986 = vmax.f32 %v2970, 0.0
    %v2987 = vmax.f32 %v2971, 0.0
    %v2988 = vmax.f32 %v2972, 0.0
    %v2989 = vmax.f32 %v2973, 0.0
    %v2990 = vmax.f32 %v2974, 0.0
    %v2991 = vmax.f32 %v2975, 0.0
    %v2992 = vld [vmem:[#allocation10] sm:$0xff]
    %v2993 = vld [vmem:[#allocation10 + $0x8] sm:$0xff]
    %v2994 = vld [vmem:[#allocation10 + $0x10] sm:$0xff]
    %v2995 = vld [vmem:[#allocation10 + $0x18] sm:$0xff]
    %v2996 = vld [vmem:[#allocation10 + $0x20] sm:$0xff]
    %v2997 = vld [vmem:[#allocation10 + $0x28] sm:$0xff]
    %v2998 = vld [vmem:[#allocation10 + $0x30] sm:$0xff]
    %v2999 = vld [vmem:[#allocation10 + $0x38] sm:$0xff]
    %v3000 = vld [vmem:[#allocation10 + $0x40] sm:$0xff]
    %v3001 = vld [vmem:[#allocation10 + $0x48] sm:$0xff]
    %v3002 = vld [vmem:[#allocation10 + $0x50] sm:$0xff]
    %v3003 = vld [vmem:[#allocation10 + $0x58] sm:$0xff]
    %v3004 = vld [vmem:[#allocation10 + $0x60] sm:$0xff]
    %v3005 = vld [vmem:[#allocation10 + $0x68] sm:$0xff]
    %v3006 = vld [vmem:[#allocation10 + $0x70] sm:$0xff]
    %v3007 = vld [vmem:[#allocation10 + $0x78] sm:$0xff]
    %v3008 = vld [vmem:[#allocation10 + $0x80] sm:$0xff]
    %v3009 = vld [vmem:[#allocation10 + $0x88] sm:$0xff]
    %v3010 = vld [vmem:[#allocation10 + $0x90] sm:$0xff]
    %v3011 = vld [vmem:[#allocation10 + $0x98] sm:$0xff]
    %v3012 = vld [vmem:[#allocation10 + $0xa0] sm:$0xff]
    %v3013 = vld [vmem:[#allocation10 + $0xa8] sm:$0xff]
    %v3014 = vld [vmem:[#allocation10 + $0xb0] sm:$0xff]
    %v3015 = vld [vmem:[#allocation10 + $0xb8] sm:$0xff]
    %s3016 = scalar_lea.vmem [#allocation10], 192
    %v3017 = vld [vmem:[%s3016] sm:$0xff]
    %v3018 = vld [vmem:[%s3016 + $0x8] sm:$0xff]
    %v3019 = vld [vmem:[%s3016 + $0x10] sm:$0xff]
    %v3020 = vld [vmem:[%s3016 + $0x18] sm:$0xff]
    %v3021 = vld [vmem:[%s3016 + $0x20] sm:$0xff]
    %v3022 = vld [vmem:[%s3016 + $0x28] sm:$0xff]
    %v3023 = vld [vmem:[%s3016 + $0x30] sm:$0xff]
    %v3024 = vld [vmem:[%s3016 + $0x38] sm:$0xff]
    %v3025 = vld [vmem:[%s3016 + $0x40] sm:$0xff]
    %v3026 = vld [vmem:[%s3016 + $0x48] sm:$0xff]
    %v3027 = vld [vmem:[%s3016 + $0x50] sm:$0xff]
    %v3028 = vld [vmem:[%s3016 + $0x58] sm:$0xff]
    %v3029 = vld [vmem:[%s3016 + $0x60] sm:$0xff]
    %v3030 = vld [vmem:[%s3016 + $0x68] sm:$0xff]
    %v3031 = vld [vmem:[%s3016 + $0x70] sm:$0xff]
    %v3032 = vld [vmem:[%s3016 + $0x78] sm:$0xff]
    %v3033 = vld [vmem:[%s3016 + $0x80] sm:$0xff]
    %v3034 = vld [vmem:[%s3016 + $0x88] sm:$0xff]
    %v3035 = vld [vmem:[%s3016 + $0x90] sm:$0xff]
    %v3036 = vld [vmem:[%s3016 + $0x98] sm:$0xff]
    %v3037 = vld [vmem:[%s3016 + $0xa0] sm:$0xff]
    %v3038 = vld [vmem:[%s3016 + $0xa8] sm:$0xff]
    %v3039 = vld [vmem:[%s3016 + $0xb0] sm:$0xff]
    %v3040 = vld [vmem:[%s3016 + $0xb8] sm:$0xff]
    %v3042 = vsel %vm346, %v2979, 0
    %3044 = vmatprep.subr.mxu0 0.0
    %3045 = vmatpush1.msra.mxu0 %v3032
    %3046 = vmatprep.subr.mxu0 0.0
    %3047 = vmatpush1.msra.mxu0 %v3031
    %3048 = vmatprep.subr.mxu0 0.0
    %3049 = vmatpush1.msra.mxu0 %v3030
    %3050 = vmatprep.subr.mxu0 0.0
    %3051 = vmatpush1.msra.mxu0 %v3029
    %3052 = vmatprep.subr.mxu0 0.0
    %3053 = vmatpush1.msra.mxu0 %v3028
    %3054 = vmatprep.subr.mxu0 0.0
    %3055 = vmatpush1.msra.mxu0 %v3027
    %3056 = vmatprep.subr.mxu0 0.0
    %3057 = vmatpush1.msra.mxu0 %v3026
    %3058 = vmatprep.subr.mxu0 0.0
    %3059 = vmatpush1.msra.mxu0 %v3025
    %3060 = vmatprep.subr.mxu0 0.0
    %3061 = vmatpush1.msra.mxu0 %v3024
    %3062 = vmatprep.subr.mxu0 0.0
    %3063 = vmatpush1.msra.mxu0 %v3023
    %3064 = vmatprep.subr.mxu0 0.0
    %3065 = vmatpush1.msra.mxu0 %v3022
    %3066 = vmatprep.subr.mxu0 0.0
    %3067 = vmatpush1.msra.mxu0 %v3021
    %3068 = vmatprep.subr.mxu0 0.0
    %3069 = vmatpush1.msra.mxu0 %v3020
    %3070 = vmatprep.subr.mxu0 0.0
    %3071 = vmatpush1.msra.mxu0 %v3019
    %3072 = vmatprep.subr.mxu0 0.0
    %3073 = vmatpush1.msra.mxu0 %v3018
    %3074 = vmatprep.subr.mxu0 0.0
    %3075 = vmatpush1.msra.mxu0 %v3017
    %3076 = vmatprep.subr.mxu0 0.0
    %3077 = vmatpush2.msra.mxu0 0.0
    %3078 = vmatprep.subr.mxu0 0.0
    %3079 = vmatpush2.msra.mxu0 0.0
    %3080 = vmatprep.subr.mxu0 0.0
    %3081 = vmatpush2.msra.mxu0 0.0
    %3082 = vmatprep.subr.mxu0 0.0
    %3083 = vmatpush2.msra.mxu0 0.0
    %3084 = vmatprep.subr.mxu0 0.0
    %3085 = vmatpush2.msra.mxu0 0.0
    %3086 = vmatprep.subr.mxu0 0.0
    %3087 = vmatpush2.msra.mxu0 0.0
    %3088 = vmatprep.subr.mxu0 0.0
    %3089 = vmatpush2.msra.mxu0 0.0
    %3090 = vmatprep.subr.mxu0 0.0
    %3091 = vmatpush2.msra.mxu0 0.0
    %3092 = vmatprep.subr.mxu0 0.0
    %3093 = vmatpush2.msra.mxu0 %v3040
    %3094 = vmatprep.subr.mxu0 0.0
    %3095 = vmatpush2.msra.mxu0 %v3039
    %3096 = vmatprep.subr.mxu0 0.0
    %3097 = vmatpush2.msra.mxu0 %v3038
    %3098 = vmatprep.subr.mxu0 0.0
    %3099 = vmatpush2.msra.mxu0 %v3037
    %3100 = vmatprep.subr.mxu0 0.0
    %3101 = vmatpush2.msra.mxu0 %v3036
    %3102 = vmatprep.subr.mxu0 0.0
    %3103 = vmatpush2.msra.mxu0 %v3035
    %3104 = vmatprep.subr.mxu0 0.0
    %3105 = vmatpush2.msra.mxu0 %v3034
    %3106 = vmatprep.subr.mxu0 0.0
    %3107 = vmatpush2.msra.mxu0 %v3033
    %3108 = vmatprep.mubr.f32.mxu0 %v3042
    %3109 = vmatmul.mubr.f32.gmra.mxu0 %v2978
    %v3110 = vpop.f32.mrf.mxu0
    %v3111 = vadd.f32 0.0, %v3110
    %v3112 = vpop.f32.mrf.mxu0
    %3113 = vdwg.mxu0
    %v3115 = vsel %vm346, %v2977, 0
    %3117 = vmatprep.subr.mxu0 0.0
    %3118 = vmatpush1.msra.mxu0 %v3007
    %3119 = vmatprep.subr.mxu0 0.0
    %3120 = vmatpush1.msra.mxu0 %v3006
    %3121 = vmatprep.subr.mxu0 0.0
    %3122 = vmatpush1.msra.mxu0 %v3005
    %3123 = vmatprep.subr.mxu0 0.0
    %3124 = vmatpush1.msra.mxu0 %v3004
    %3125 = vmatprep.subr.mxu0 0.0
    %3126 = vmatpush1.msra.mxu0 %v3003
    %3127 = vmatprep.subr.mxu0 0.0
    %3128 = vmatpush1.msra.mxu0 %v3002
    %3129 = vmatprep.subr.mxu0 0.0
    %3130 = vmatpush1.msra.mxu0 %v3001
    %3131 = vmatprep.subr.mxu0 0.0
    %3132 = vmatpush1.msra.mxu0 %v3000
    %3133 = vmatprep.subr.mxu0 0.0
    %3134 = vmatpush1.msra.mxu0 %v2999
    %3135 = vmatprep.subr.mxu0 0.0
    %3136 = vmatpush1.msra.mxu0 %v2998
    %3137 = vmatprep.subr.mxu0 0.0
    %3138 = vmatpush1.msra.mxu0 %v2997
    %3139 = vmatprep.subr.mxu0 0.0
    %3140 = vmatpush1.msra.mxu0 %v2996
    %3141 = vmatprep.subr.mxu0 0.0
    %3142 = vmatpush1.msra.mxu0 %v2995
    %3143 = vmatprep.subr.mxu0 0.0
    %3144 = vmatpush1.msra.mxu0 %v2994
    %3145 = vmatprep.subr.mxu0 0.0
    %3146 = vmatpush1.msra.mxu0 %v2993
    %3147 = vmatprep.subr.mxu0 0.0
    %3148 = vmatpush1.msra.mxu0 %v2992
    %3149 = vmatprep.subr.mxu0 0.0
    %3150 = vmatpush2.msra.mxu0 0.0
    %3151 = vmatprep.subr.mxu0 0.0
    %3152 = vmatpush2.msra.mxu0 0.0
    %3153 = vmatprep.subr.mxu0 0.0
    %3154 = vmatpush2.msra.mxu0 0.0
    %3155 = vmatprep.subr.mxu0 0.0
    %3156 = vmatpush2.msra.mxu0 0.0
    %3157 = vmatprep.subr.mxu0 0.0
    %3158 = vmatpush2.msra.mxu0 0.0
    %3159 = vmatprep.subr.mxu0 0.0
    %3160 = vmatpush2.msra.mxu0 0.0
    %3161 = vmatprep.subr.mxu0 0.0
    %3162 = vmatpush2.msra.mxu0 0.0
    %3163 = vmatprep.subr.mxu0 0.0
    %3164 = vmatpush2.msra.mxu0 0.0
    %3165 = vmatprep.subr.mxu0 0.0
    %3166 = vmatpush2.msra.mxu0 %v3015
    %3167 = vmatprep.subr.mxu0 0.0
    %3168 = vmatpush2.msra.mxu0 %v3014
    %3169 = vmatprep.subr.mxu0 0.0
    %3170 = vmatpush2.msra.mxu0 %v3013
    %3171 = vmatprep.subr.mxu0 0.0
    %3172 = vmatpush2.msra.mxu0 %v3012
    %3173 = vmatprep.subr.mxu0 0.0
    %3174 = vmatpush2.msra.mxu0 %v3011
    %3175 = vmatprep.subr.mxu0 0.0
    %3176 = vmatpush2.msra.mxu0 %v3010
    %3177 = vmatprep.subr.mxu0 0.0
    %3178 = vmatpush2.msra.mxu0 %v3009
    %3179 = vmatprep.subr.mxu0 0.0
    %3180 = vmatpush2.msra.mxu0 %v3008
    %3181 = vmatprep.mubr.f32.mxu0 %v3115
    %3182 = vmatmul.mubr.f32.gmra.mxu0 %v2976
    %v3183 = vpop.f32.mrf.mxu0
    %v3184 = vadd.f32 %v3111, %v3183
    %v3185 = vpop.f32.mrf.mxu0
    %3186 = vdwg.mxu0
    %s3187 = scalar_lea.vmem [#allocation10], 384
    %v3188 = vld [vmem:[%s3187] sm:$0xff]
    %v3189 = vld [vmem:[%s3187 + $0x8] sm:$0xff]
    %v3190 = vld [vmem:[%s3187 + $0x10] sm:$0xff]
    %v3191 = vld [vmem:[%s3187 + $0x18] sm:$0xff]
    %v3192 = vld [vmem:[%s3187 + $0x20] sm:$0xff]
    %v3193 = vld [vmem:[%s3187 + $0x28] sm:$0xff]
    %v3194 = vld [vmem:[%s3187 + $0x30] sm:$0xff]
    %v3195 = vld [vmem:[%s3187 + $0x38] sm:$0xff]
    %v3196 = vld [vmem:[%s3187 + $0x40] sm:$0xff]
    %v3197 = vld [vmem:[%s3187 + $0x48] sm:$0xff]
    %v3198 = vld [vmem:[%s3187 + $0x50] sm:$0xff]
    %v3199 = vld [vmem:[%s3187 + $0x58] sm:$0xff]
    %v3200 = vld [vmem:[%s3187 + $0x60] sm:$0xff]
    %v3201 = vld [vmem:[%s3187 + $0x68] sm:$0xff]
    %v3202 = vld [vmem:[%s3187 + $0x70] sm:$0xff]
    %v3203 = vld [vmem:[%s3187 + $0x78] sm:$0xff]
    %v3204 = vld [vmem:[%s3187 + $0x80] sm:$0xff]
    %v3205 = vld [vmem:[%s3187 + $0x88] sm:$0xff]
    %v3206 = vld [vmem:[%s3187 + $0x90] sm:$0xff]
    %v3207 = vld [vmem:[%s3187 + $0x98] sm:$0xff]
    %v3208 = vld [vmem:[%s3187 + $0xa0] sm:$0xff]
    %v3209 = vld [vmem:[%s3187 + $0xa8] sm:$0xff]
    %v3210 = vld [vmem:[%s3187 + $0xb0] sm:$0xff]
    %v3211 = vld [vmem:[%s3187 + $0xb8] sm:$0xff]
    %v3213 = vsel %vm346, %v2981, 0
    %3215 = vmatprep.subr.mxu0 0.0
    %3216 = vmatpush1.msra.mxu0 %v3203
    %3217 = vmatprep.subr.mxu0 0.0
    %3218 = vmatpush1.msra.mxu0 %v3202
    %3219 = vmatprep.subr.mxu0 0.0
    %3220 = vmatpush1.msra.mxu0 %v3201
    %3221 = vmatprep.subr.mxu0 0.0
    %3222 = vmatpush1.msra.mxu0 %v3200
    %3223 = vmatprep.subr.mxu0 0.0
    %3224 = vmatpush1.msra.mxu0 %v3199
    %3225 = vmatprep.subr.mxu0 0.0
    %3226 = vmatpush1.msra.mxu0 %v3198
    %3227 = vmatprep.subr.mxu0 0.0
    %3228 = vmatpush1.msra.mxu0 %v3197
    %3229 = vmatprep.subr.mxu0 0.0
    %3230 = vmatpush1.msra.mxu0 %v3196
    %3231 = vmatprep.subr.mxu0 0.0
    %3232 = vmatpush1.msra.mxu0 %v3195
    %3233 = vmatprep.subr.mxu0 0.0
    %3234 = vmatpush1.msra.mxu0 %v3194
    %3235 = vmatprep.subr.mxu0 0.0
    %3236 = vmatpush1.msra.mxu0 %v3193
    %3237 = vmatprep.subr.mxu0 0.0
    %3238 = vmatpush1.msra.mxu0 %v3192
    %3239 = vmatprep.subr.mxu0 0.0
    %3240 = vmatpush1.msra.mxu0 %v3191
    %3241 = vmatprep.subr.mxu0 0.0
    %3242 = vmatpush1.msra.mxu0 %v3190
    %3243 = vmatprep.subr.mxu0 0.0
    %3244 = vmatpush1.msra.mxu0 %v3189
    %3245 = vmatprep.subr.mxu0 0.0
    %3246 = vmatpush1.msra.mxu0 %v3188
    %3247 = vmatprep.subr.mxu0 0.0
    %3248 = vmatpush2.msra.mxu0 0.0
    %3249 = vmatprep.subr.mxu0 0.0
    %3250 = vmatpush2.msra.mxu0 0.0
    %3251 = vmatprep.subr.mxu0 0.0
    %3252 = vmatpush2.msra.mxu0 0.0
    %3253 = vmatprep.subr.mxu0 0.0
    %3254 = vmatpush2.msra.mxu0 0.0
    %3255 = vmatprep.subr.mxu0 0.0
    %3256 = vmatpush2.msra.mxu0 0.0
    %3257 = vmatprep.subr.mxu0 0.0
    %3258 = vmatpush2.msra.mxu0 0.0
    %3259 = vmatprep.subr.mxu0 0.0
    %3260 = vmatpush2.msra.mxu0 0.0
    %3261 = vmatprep.subr.mxu0 0.0
    %3262 = vmatpush2.msra.mxu0 0.0
    %3263 = vmatprep.subr.mxu0 0.0
    %3264 = vmatpush2.msra.mxu0 %v3211
    %3265 = vmatprep.subr.mxu0 0.0
    %3266 = vmatpush2.msra.mxu0 %v3210
    %3267 = vmatprep.subr.mxu0 0.0
    %3268 = vmatpush2.msra.mxu0 %v3209
    %3269 = vmatprep.subr.mxu0 0.0
    %3270 = vmatpush2.msra.mxu0 %v3208
    %3271 = vmatprep.subr.mxu0 0.0
    %3272 = vmatpush2.msra.mxu0 %v3207
    %3273 = vmatprep.subr.mxu0 0.0
    %3274 = vmatpush2.msra.mxu0 %v3206
    %3275 = vmatprep.subr.mxu0 0.0
    %3276 = vmatpush2.msra.mxu0 %v3205
    %3277 = vmatprep.subr.mxu0 0.0
    %3278 = vmatpush2.msra.mxu0 %v3204
    %3279 = vmatprep.mubr.f32.mxu0 %v3213
    %3280 = vmatmul.mubr.f32.gmra.mxu0 %v2980
    %v3281 = vpop.f32.mrf.mxu0
    %v3282 = vadd.f32 0.0, %v3281
    %v3283 = vpop.f32.mrf.mxu0
    %3284 = vdwg.mxu0
    %v3285 = vadd.f32 %v3184, %v3282
    %s3286 = scalar_lea.vmem [#allocation10], 576
    %v3287 = vld [vmem:[%s3286] sm:$0xff]
    %v3288 = vld [vmem:[%s3286 + $0x8] sm:$0xff]
    %v3289 = vld [vmem:[%s3286 + $0x10] sm:$0xff]
    %v3290 = vld [vmem:[%s3286 + $0x18] sm:$0xff]
    %v3291 = vld [vmem:[%s3286 + $0x20] sm:$0xff]
    %v3292 = vld [vmem:[%s3286 + $0x28] sm:$0xff]
    %v3293 = vld [vmem:[%s3286 + $0x30] sm:$0xff]
    %v3294 = vld [vmem:[%s3286 + $0x38] sm:$0xff]
    %v3295 = vld [vmem:[%s3286 + $0x40] sm:$0xff]
    %v3296 = vld [vmem:[%s3286 + $0x48] sm:$0xff]
    %v3297 = vld [vmem:[%s3286 + $0x50] sm:$0xff]
    %v3298 = vld [vmem:[%s3286 + $0x58] sm:$0xff]
    %v3299 = vld [vmem:[%s3286 + $0x60] sm:$0xff]
    %v3300 = vld [vmem:[%s3286 + $0x68] sm:$0xff]
    %v3301 = vld [vmem:[%s3286 + $0x70] sm:$0xff]
    %v3302 = vld [vmem:[%s3286 + $0x78] sm:$0xff]
    %v3303 = vld [vmem:[%s3286 + $0x80] sm:$0xff]
    %v3304 = vld [vmem:[%s3286 + $0x88] sm:$0xff]
    %v3305 = vld [vmem:[%s3286 + $0x90] sm:$0xff]
    %v3306 = vld [vmem:[%s3286 + $0x98] sm:$0xff]
    %v3307 = vld [vmem:[%s3286 + $0xa0] sm:$0xff]
    %v3308 = vld [vmem:[%s3286 + $0xa8] sm:$0xff]
    %v3309 = vld [vmem:[%s3286 + $0xb0] sm:$0xff]
    %v3310 = vld [vmem:[%s3286 + $0xb8] sm:$0xff]
    %v3312 = vsel %vm346, %v2983, 0
    %3314 = vmatprep.subr.mxu0 0.0
    %3315 = vmatpush1.msra.mxu0 %v3302
    %3316 = vmatprep.subr.mxu0 0.0
    %3317 = vmatpush1.msra.mxu0 %v3301
    %3318 = vmatprep.subr.mxu0 0.0
    %3319 = vmatpush1.msra.mxu0 %v3300
    %3320 = vmatprep.subr.mxu0 0.0
    %3321 = vmatpush1.msra.mxu0 %v3299
    %3322 = vmatprep.subr.mxu0 0.0
    %3323 = vmatpush1.msra.mxu0 %v3298
    %3324 = vmatprep.subr.mxu0 0.0
    %3325 = vmatpush1.msra.mxu0 %v3297
    %3326 = vmatprep.subr.mxu0 0.0
    %3327 = vmatpush1.msra.mxu0 %v3296
    %3328 = vmatprep.subr.mxu0 0.0
    %3329 = vmatpush1.msra.mxu0 %v3295
    %3330 = vmatprep.subr.mxu0 0.0
    %3331 = vmatpush1.msra.mxu0 %v3294
    %3332 = vmatprep.subr.mxu0 0.0
    %3333 = vmatpush1.msra.mxu0 %v3293
    %3334 = vmatprep.subr.mxu0 0.0
    %3335 = vmatpush1.msra.mxu0 %v3292
    %3336 = vmatprep.subr.mxu0 0.0
    %3337 = vmatpush1.msra.mxu0 %v3291
    %3338 = vmatprep.subr.mxu0 0.0
    %3339 = vmatpush1.msra.mxu0 %v3290
    %3340 = vmatprep.subr.mxu0 0.0
    %3341 = vmatpush1.msra.mxu0 %v3289
    %3342 = vmatprep.subr.mxu0 0.0
    %3343 = vmatpush1.msra.mxu0 %v3288
    %3344 = vmatprep.subr.mxu0 0.0
    %3345 = vmatpush1.msra.mxu0 %v3287
    %3346 = vmatprep.subr.mxu0 0.0
    %3347 = vmatpush2.msra.mxu0 0.0
    %3348 = vmatprep.subr.mxu0 0.0
    %3349 = vmatpush2.msra.mxu0 0.0
    %3350 = vmatprep.subr.mxu0 0.0
    %3351 = vmatpush2.msra.mxu0 0.0
    %3352 = vmatprep.subr.mxu0 0.0
    %3353 = vmatpush2.msra.mxu0 0.0
    %3354 = vmatprep.subr.mxu0 0.0
    %3355 = vmatpush2.msra.mxu0 0.0
    %3356 = vmatprep.subr.mxu0 0.0
    %3357 = vmatpush2.msra.mxu0 0.0
    %3358 = vmatprep.subr.mxu0 0.0
    %3359 = vmatpush2.msra.mxu0 0.0
    %3360 = vmatprep.subr.mxu0 0.0
    %3361 = vmatpush2.msra.mxu0 0.0
    %3362 = vmatprep.subr.mxu0 0.0
    %3363 = vmatpush2.msra.mxu0 %v3310
    %3364 = vmatprep.subr.mxu0 0.0
    %3365 = vmatpush2.msra.mxu0 %v3309
    %3366 = vmatprep.subr.mxu0 0.0
    %3367 = vmatpush2.msra.mxu0 %v3308
    %3368 = vmatprep.subr.mxu0 0.0
    %3369 = vmatpush2.msra.mxu0 %v3307
    %3370 = vmatprep.subr.mxu0 0.0
    %3371 = vmatpush2.msra.mxu0 %v3306
    %3372 = vmatprep.subr.mxu0 0.0
    %3373 = vmatpush2.msra.mxu0 %v3305
    %3374 = vmatprep.subr.mxu0 0.0
    %3375 = vmatpush2.msra.mxu0 %v3304
    %3376 = vmatprep.subr.mxu0 0.0
    %3377 = vmatpush2.msra.mxu0 %v3303
    %3378 = vmatprep.mubr.f32.mxu0 %v3312
    %3379 = vmatmul.mubr.f32.gmra.mxu0 %v2982
    %v3380 = vpop.f32.mrf.mxu0
    %v3381 = vadd.f32 0.0, %v3380
    %v3382 = vpop.f32.mrf.mxu0
    %3383 = vdwg.mxu0
    %v3384 = vadd.f32 %v3285, %v3381
    %s3385 = scalar_lea.vmem [#allocation10], 768
    %v3386 = vld [vmem:[%s3385] sm:$0xff]
    %v3387 = vld [vmem:[%s3385 + $0x8] sm:$0xff]
    %v3388 = vld [vmem:[%s3385 + $0x10] sm:$0xff]
    %v3389 = vld [vmem:[%s3385 + $0x18] sm:$0xff]
    %v3390 = vld [vmem:[%s3385 + $0x20] sm:$0xff]
    %v3391 = vld [vmem:[%s3385 + $0x28] sm:$0xff]
    %v3392 = vld [vmem:[%s3385 + $0x30] sm:$0xff]
    %v3393 = vld [vmem:[%s3385 + $0x38] sm:$0xff]
    %v3394 = vld [vmem:[%s3385 + $0x40] sm:$0xff]
    %v3395 = vld [vmem:[%s3385 + $0x48] sm:$0xff]
    %v3396 = vld [vmem:[%s3385 + $0x50] sm:$0xff]
    %v3397 = vld [vmem:[%s3385 + $0x58] sm:$0xff]
    %v3398 = vld [vmem:[%s3385 + $0x60] sm:$0xff]
    %v3399 = vld [vmem:[%s3385 + $0x68] sm:$0xff]
    %v3400 = vld [vmem:[%s3385 + $0x70] sm:$0xff]
    %v3401 = vld [vmem:[%s3385 + $0x78] sm:$0xff]
    %v3402 = vld [vmem:[%s3385 + $0x80] sm:$0xff]
    %v3403 = vld [vmem:[%s3385 + $0x88] sm:$0xff]
    %v3404 = vld [vmem:[%s3385 + $0x90] sm:$0xff]
    %v3405 = vld [vmem:[%s3385 + $0x98] sm:$0xff]
    %v3406 = vld [vmem:[%s3385 + $0xa0] sm:$0xff]
    %v3407 = vld [vmem:[%s3385 + $0xa8] sm:$0xff]
    %v3408 = vld [vmem:[%s3385 + $0xb0] sm:$0xff]
    %v3409 = vld [vmem:[%s3385 + $0xb8] sm:$0xff]
    %v3411 = vsel %vm346, %v2985, 0
    %3413 = vmatprep.subr.mxu0 0.0
    %3414 = vmatpush1.msra.mxu0 %v3401
    %3415 = vmatprep.subr.mxu0 0.0
    %3416 = vmatpush1.msra.mxu0 %v3400
    %3417 = vmatprep.subr.mxu0 0.0
    %3418 = vmatpush1.msra.mxu0 %v3399
    %3419 = vmatprep.subr.mxu0 0.0
    %3420 = vmatpush1.msra.mxu0 %v3398
    %3421 = vmatprep.subr.mxu0 0.0
    %3422 = vmatpush1.msra.mxu0 %v3397
    %3423 = vmatprep.subr.mxu0 0.0
    %3424 = vmatpush1.msra.mxu0 %v3396
    %3425 = vmatprep.subr.mxu0 0.0
    %3426 = vmatpush1.msra.mxu0 %v3395
    %3427 = vmatprep.subr.mxu0 0.0
    %3428 = vmatpush1.msra.mxu0 %v3394
    %3429 = vmatprep.subr.mxu0 0.0
    %3430 = vmatpush1.msra.mxu0 %v3393
    %3431 = vmatprep.subr.mxu0 0.0
    %3432 = vmatpush1.msra.mxu0 %v3392
    %3433 = vmatprep.subr.mxu0 0.0
    %3434 = vmatpush1.msra.mxu0 %v3391
    %3435 = vmatprep.subr.mxu0 0.0
    %3436 = vmatpush1.msra.mxu0 %v3390
    %3437 = vmatprep.subr.mxu0 0.0
    %3438 = vmatpush1.msra.mxu0 %v3389
    %3439 = vmatprep.subr.mxu0 0.0
    %3440 = vmatpush1.msra.mxu0 %v3388
    %3441 = vmatprep.subr.mxu0 0.0
    %3442 = vmatpush1.msra.mxu0 %v3387
    %3443 = vmatprep.subr.mxu0 0.0
    %3444 = vmatpush1.msra.mxu0 %v3386
    %3445 = vmatprep.subr.mxu0 0.0
    %3446 = vmatpush2.msra.mxu0 0.0
    %3447 = vmatprep.subr.mxu0 0.0
    %3448 = vmatpush2.msra.mxu0 0.0
    %3449 = vmatprep.subr.mxu0 0.0
    %3450 = vmatpush2.msra.mxu0 0.0
    %3451 = vmatprep.subr.mxu0 0.0
    %3452 = vmatpush2.msra.mxu0 0.0
    %3453 = vmatprep.subr.mxu0 0.0
    %3454 = vmatpush2.msra.mxu0 0.0
    %3455 = vmatprep.subr.mxu0 0.0
    %3456 = vmatpush2.msra.mxu0 0.0
    %3457 = vmatprep.subr.mxu0 0.0
    %3458 = vmatpush2.msra.mxu0 0.0
    %3459 = vmatprep.subr.mxu0 0.0
    %3460 = vmatpush2.msra.mxu0 0.0
    %3461 = vmatprep.subr.mxu0 0.0
    %3462 = vmatpush2.msra.mxu0 %v3409
    %3463 = vmatprep.subr.mxu0 0.0
    %3464 = vmatpush2.msra.mxu0 %v3408
    %3465 = vmatprep.subr.mxu0 0.0
    %3466 = vmatpush2.msra.mxu0 %v3407
    %3467 = vmatprep.subr.mxu0 0.0
    %3468 = vmatpush2.msra.mxu0 %v3406
    %3469 = vmatprep.subr.mxu0 0.0
    %3470 = vmatpush2.msra.mxu0 %v3405
    %3471 = vmatprep.subr.mxu0 0.0
    %3472 = vmatpush2.msra.mxu0 %v3404
    %3473 = vmatprep.subr.mxu0 0.0
    %3474 = vmatpush2.msra.mxu0 %v3403
    %3475 = vmatprep.subr.mxu0 0.0
    %3476 = vmatpush2.msra.mxu0 %v3402
    %3477 = vmatprep.mubr.f32.mxu0 %v3411
    %3478 = vmatmul.mubr.f32.gmra.mxu0 %v2984
    %v3479 = vpop.f32.mrf.mxu0
    %v3480 = vadd.f32 0.0, %v3479
    %v3481 = vpop.f32.mrf.mxu0
    %3482 = vdwg.mxu0
    %v3483 = vadd.f32 %v3384, %v3480
    %s3484 = scalar_lea.vmem [#allocation10], 960
    %v3485 = vld [vmem:[%s3484] sm:$0xff]
    %v3486 = vld [vmem:[%s3484 + $0x8] sm:$0xff]
    %v3487 = vld [vmem:[%s3484 + $0x10] sm:$0xff]
    %v3488 = vld [vmem:[%s3484 + $0x18] sm:$0xff]
    %v3489 = vld [vmem:[%s3484 + $0x20] sm:$0xff]
    %v3490 = vld [vmem:[%s3484 + $0x28] sm:$0xff]
    %v3491 = vld [vmem:[%s3484 + $0x30] sm:$0xff]
    %v3492 = vld [vmem:[%s3484 + $0x38] sm:$0xff]
    %v3493 = vld [vmem:[%s3484 + $0x40] sm:$0xff]
    %v3494 = vld [vmem:[%s3484 + $0x48] sm:$0xff]
    %v3495 = vld [vmem:[%s3484 + $0x50] sm:$0xff]
    %v3496 = vld [vmem:[%s3484 + $0x58] sm:$0xff]
    %v3497 = vld [vmem:[%s3484 + $0x60] sm:$0xff]
    %v3498 = vld [vmem:[%s3484 + $0x68] sm:$0xff]
    %v3499 = vld [vmem:[%s3484 + $0x70] sm:$0xff]
    %v3500 = vld [vmem:[%s3484 + $0x78] sm:$0xff]
    %v3501 = vld [vmem:[%s3484 + $0x80] sm:$0xff]
    %v3502 = vld [vmem:[%s3484 + $0x88] sm:$0xff]
    %v3503 = vld [vmem:[%s3484 + $0x90] sm:$0xff]
    %v3504 = vld [vmem:[%s3484 + $0x98] sm:$0xff]
    %v3505 = vld [vmem:[%s3484 + $0xa0] sm:$0xff]
    %v3506 = vld [vmem:[%s3484 + $0xa8] sm:$0xff]
    %v3507 = vld [vmem:[%s3484 + $0xb0] sm:$0xff]
    %v3508 = vld [vmem:[%s3484 + $0xb8] sm:$0xff]
    %v3510 = vsel %vm346, %v2987, 0
    %3512 = vmatprep.subr.mxu0 0.0
    %3513 = vmatpush1.msra.mxu0 %v3500
    %3514 = vmatprep.subr.mxu0 0.0
    %3515 = vmatpush1.msra.mxu0 %v3499
    %3516 = vmatprep.subr.mxu0 0.0
    %3517 = vmatpush1.msra.mxu0 %v3498
    %3518 = vmatprep.subr.mxu0 0.0
    %3519 = vmatpush1.msra.mxu0 %v3497
    %3520 = vmatprep.subr.mxu0 0.0
    %3521 = vmatpush1.msra.mxu0 %v3496
    %3522 = vmatprep.subr.mxu0 0.0
    %3523 = vmatpush1.msra.mxu0 %v3495
    %3524 = vmatprep.subr.mxu0 0.0
    %3525 = vmatpush1.msra.mxu0 %v3494
    %3526 = vmatprep.subr.mxu0 0.0
    %3527 = vmatpush1.msra.mxu0 %v3493
    %3528 = vmatprep.subr.mxu0 0.0
    %3529 = vmatpush1.msra.mxu0 %v3492
    %3530 = vmatprep.subr.mxu0 0.0
    %3531 = vmatpush1.msra.mxu0 %v3491
    %3532 = vmatprep.subr.mxu0 0.0
    %3533 = vmatpush1.msra.mxu0 %v3490
    %3534 = vmatprep.subr.mxu0 0.0
    %3535 = vmatpush1.msra.mxu0 %v3489
    %3536 = vmatprep.subr.mxu0 0.0
    %3537 = vmatpush1.msra.mxu0 %v3488
    %3538 = vmatprep.subr.mxu0 0.0
    %3539 = vmatpush1.msra.mxu0 %v3487
    %3540 = vmatprep.subr.mxu0 0.0
    %3541 = vmatpush1.msra.mxu0 %v3486
    %3542 = vmatprep.subr.mxu0 0.0
    %3543 = vmatpush1.msra.mxu0 %v3485
    %3544 = vmatprep.subr.mxu0 0.0
    %3545 = vmatpush2.msra.mxu0 0.0
    %3546 = vmatprep.subr.mxu0 0.0
    %3547 = vmatpush2.msra.mxu0 0.0
    %3548 = vmatprep.subr.mxu0 0.0
    %3549 = vmatpush2.msra.mxu0 0.0
    %3550 = vmatprep.subr.mxu0 0.0
    %3551 = vmatpush2.msra.mxu0 0.0
    %3552 = vmatprep.subr.mxu0 0.0
    %3553 = vmatpush2.msra.mxu0 0.0
    %3554 = vmatprep.subr.mxu0 0.0
    %3555 = vmatpush2.msra.mxu0 0.0
    %3556 = vmatprep.subr.mxu0 0.0
    %3557 = vmatpush2.msra.mxu0 0.0
    %3558 = vmatprep.subr.mxu0 0.0
    %3559 = vmatpush2.msra.mxu0 0.0
    %3560 = vmatprep.subr.mxu0 0.0
    %3561 = vmatpush2.msra.mxu0 %v3508
    %3562 = vmatprep.subr.mxu0 0.0
    %3563 = vmatpush2.msra.mxu0 %v3507
    %3564 = vmatprep.subr.mxu0 0.0
    %3565 = vmatpush2.msra.mxu0 %v3506
    %3566 = vmatprep.subr.mxu0 0.0
    %3567 = vmatpush2.msra.mxu0 %v3505
    %3568 = vmatprep.subr.mxu0 0.0
    %3569 = vmatpush2.msra.mxu0 %v3504
    %3570 = vmatprep.subr.mxu0 0.0
    %3571 = vmatpush2.msra.mxu0 %v3503
    %3572 = vmatprep.subr.mxu0 0.0
    %3573 = vmatpush2.msra.mxu0 %v3502
    %3574 = vmatprep.subr.mxu0 0.0
    %3575 = vmatpush2.msra.mxu0 %v3501
    %3576 = vmatprep.mubr.f32.mxu0 %v3510
    %3577 = vmatmul.mubr.f32.gmra.mxu0 %v2986
    %v3578 = vpop.f32.mrf.mxu0
    %v3579 = vadd.f32 0.0, %v3578
    %v3580 = vpop.f32.mrf.mxu0
    %3581 = vdwg.mxu0
    %v3582 = vadd.f32 %v3483, %v3579
    %s3583 = scalar_lea.vmem [#allocation10], 1152
    %v3584 = vld [vmem:[%s3583] sm:$0xff]
    %v3585 = vld [vmem:[%s3583 + $0x8] sm:$0xff]
    %v3586 = vld [vmem:[%s3583 + $0x10] sm:$0xff]
    %v3587 = vld [vmem:[%s3583 + $0x18] sm:$0xff]
    %v3588 = vld [vmem:[%s3583 + $0x20] sm:$0xff]
    %v3589 = vld [vmem:[%s3583 + $0x28] sm:$0xff]
    %v3590 = vld [vmem:[%s3583 + $0x30] sm:$0xff]
    %v3591 = vld [vmem:[%s3583 + $0x38] sm:$0xff]
    %v3592 = vld [vmem:[%s3583 + $0x40] sm:$0xff]
    %v3593 = vld [vmem:[%s3583 + $0x48] sm:$0xff]
    %v3594 = vld [vmem:[%s3583 + $0x50] sm:$0xff]
    %v3595 = vld [vmem:[%s3583 + $0x58] sm:$0xff]
    %v3596 = vld [vmem:[%s3583 + $0x60] sm:$0xff]
    %v3597 = vld [vmem:[%s3583 + $0x68] sm:$0xff]
    %v3598 = vld [vmem:[%s3583 + $0x70] sm:$0xff]
    %v3599 = vld [vmem:[%s3583 + $0x78] sm:$0xff]
    %v3600 = vld [vmem:[%s3583 + $0x80] sm:$0xff]
    %v3601 = vld [vmem:[%s3583 + $0x88] sm:$0xff]
    %v3602 = vld [vmem:[%s3583 + $0x90] sm:$0xff]
    %v3603 = vld [vmem:[%s3583 + $0x98] sm:$0xff]
    %v3604 = vld [vmem:[%s3583 + $0xa0] sm:$0xff]
    %v3605 = vld [vmem:[%s3583 + $0xa8] sm:$0xff]
    %v3606 = vld [vmem:[%s3583 + $0xb0] sm:$0xff]
    %v3607 = vld [vmem:[%s3583 + $0xb8] sm:$0xff]
    %v3609 = vsel %vm346, %v2989, 0
    %3611 = vmatprep.subr.mxu0 0.0
    %3612 = vmatpush1.msra.mxu0 %v3599
    %3613 = vmatprep.subr.mxu0 0.0
    %3614 = vmatpush1.msra.mxu0 %v3598
    %3615 = vmatprep.subr.mxu0 0.0
    %3616 = vmatpush1.msra.mxu0 %v3597
    %3617 = vmatprep.subr.mxu0 0.0
    %3618 = vmatpush1.msra.mxu0 %v3596
    %3619 = vmatprep.subr.mxu0 0.0
    %3620 = vmatpush1.msra.mxu0 %v3595
    %3621 = vmatprep.subr.mxu0 0.0
    %3622 = vmatpush1.msra.mxu0 %v3594
    %3623 = vmatprep.subr.mxu0 0.0
    %3624 = vmatpush1.msra.mxu0 %v3593
    %3625 = vmatprep.subr.mxu0 0.0
    %3626 = vmatpush1.msra.mxu0 %v3592
    %3627 = vmatprep.subr.mxu0 0.0
    %3628 = vmatpush1.msra.mxu0 %v3591
    %3629 = vmatprep.subr.mxu0 0.0
    %3630 = vmatpush1.msra.mxu0 %v3590
    %3631 = vmatprep.subr.mxu0 0.0
    %3632 = vmatpush1.msra.mxu0 %v3589
    %3633 = vmatprep.subr.mxu0 0.0
    %3634 = vmatpush1.msra.mxu0 %v3588
    %3635 = vmatprep.subr.mxu0 0.0
    %3636 = vmatpush1.msra.mxu0 %v3587
    %3637 = vmatprep.subr.mxu0 0.0
    %3638 = vmatpush1.msra.mxu0 %v3586
    %3639 = vmatprep.subr.mxu0 0.0
    %3640 = vmatpush1.msra.mxu0 %v3585
    %3641 = vmatprep.subr.mxu0 0.0
    %3642 = vmatpush1.msra.mxu0 %v3584
    %3643 = vmatprep.subr.mxu0 0.0
    %3644 = vmatpush2.msra.mxu0 0.0
    %3645 = vmatprep.subr.mxu0 0.0
    %3646 = vmatpush2.msra.mxu0 0.0
    %3647 = vmatprep.subr.mxu0 0.0
    %3648 = vmatpush2.msra.mxu0 0.0
    %3649 = vmatprep.subr.mxu0 0.0
    %3650 = vmatpush2.msra.mxu0 0.0
    %3651 = vmatprep.subr.mxu0 0.0
    %3652 = vmatpush2.msra.mxu0 0.0
    %3653 = vmatprep.subr.mxu0 0.0
    %3654 = vmatpush2.msra.mxu0 0.0
    %3655 = vmatprep.subr.mxu0 0.0
    %3656 = vmatpush2.msra.mxu0 0.0
    %3657 = vmatprep.subr.mxu0 0.0
    %3658 = vmatpush2.msra.mxu0 0.0
    %3659 = vmatprep.subr.mxu0 0.0
    %3660 = vmatpush2.msra.mxu0 %v3607
    %3661 = vmatprep.subr.mxu0 0.0
    %3662 = vmatpush2.msra.mxu0 %v3606
    %3663 = vmatprep.subr.mxu0 0.0
    %3664 = vmatpush2.msra.mxu0 %v3605
    %3665 = vmatprep.subr.mxu0 0.0
    %3666 = vmatpush2.msra.mxu0 %v3604
    %3667 = vmatprep.subr.mxu0 0.0
    %3668 = vmatpush2.msra.mxu0 %v3603
    %3669 = vmatprep.subr.mxu0 0.0
    %3670 = vmatpush2.msra.mxu0 %v3602
    %3671 = vmatprep.subr.mxu0 0.0
    %3672 = vmatpush2.msra.mxu0 %v3601
    %3673 = vmatprep.subr.mxu0 0.0
    %3674 = vmatpush2.msra.mxu0 %v3600
    %3675 = vmatprep.mubr.f32.mxu0 %v3609
    %3676 = vmatmul.mubr.f32.gmra.mxu0 %v2988
    %v3677 = vpop.f32.mrf.mxu0
    %v3678 = vadd.f32 0.0, %v3677
    %v3679 = vpop.f32.mrf.mxu0
    %3680 = vdwg.mxu0
    %v3681 = vadd.f32 %v3582, %v3678
    %s3682 = scalar_lea.vmem [#allocation10], 1344
    %v3683 = vld [vmem:[%s3682] sm:$0xff]
    %v3684 = vld [vmem:[%s3682 + $0x8] sm:$0xff]
    %v3685 = vld [vmem:[%s3682 + $0x10] sm:$0xff]
    %v3686 = vld [vmem:[%s3682 + $0x18] sm:$0xff]
    %v3687 = vld [vmem:[%s3682 + $0x20] sm:$0xff]
    %v3688 = vld [vmem:[%s3682 + $0x28] sm:$0xff]
    %v3689 = vld [vmem:[%s3682 + $0x30] sm:$0xff]
    %v3690 = vld [vmem:[%s3682 + $0x38] sm:$0xff]
    %v3691 = vld [vmem:[%s3682 + $0x40] sm:$0xff]
    %v3692 = vld [vmem:[%s3682 + $0x48] sm:$0xff]
    %v3693 = vld [vmem:[%s3682 + $0x50] sm:$0xff]
    %v3694 = vld [vmem:[%s3682 + $0x58] sm:$0xff]
    %v3695 = vld [vmem:[%s3682 + $0x60] sm:$0xff]
    %v3696 = vld [vmem:[%s3682 + $0x68] sm:$0xff]
    %v3697 = vld [vmem:[%s3682 + $0x70] sm:$0xff]
    %v3698 = vld [vmem:[%s3682 + $0x78] sm:$0xff]
    %v3699 = vld [vmem:[%s3682 + $0x80] sm:$0xff]
    %v3700 = vld [vmem:[%s3682 + $0x88] sm:$0xff]
    %v3701 = vld [vmem:[%s3682 + $0x90] sm:$0xff]
    %v3702 = vld [vmem:[%s3682 + $0x98] sm:$0xff]
    %v3703 = vld [vmem:[%s3682 + $0xa0] sm:$0xff]
    %v3704 = vld [vmem:[%s3682 + $0xa8] sm:$0xff]
    %v3705 = vld [vmem:[%s3682 + $0xb0] sm:$0xff]
    %v3706 = vld [vmem:[%s3682 + $0xb8] sm:$0xff]
    %v3708 = vsel %vm346, %v2991, 0
    %3710 = vmatprep.subr.mxu0 0.0
    %3711 = vmatpush1.msra.mxu0 %v3698
    %3712 = vmatprep.subr.mxu0 0.0
    %3713 = vmatpush1.msra.mxu0 %v3697
    %3714 = vmatprep.subr.mxu0 0.0
    %3715 = vmatpush1.msra.mxu0 %v3696
    %3716 = vmatprep.subr.mxu0 0.0
    %3717 = vmatpush1.msra.mxu0 %v3695
    %3718 = vmatprep.subr.mxu0 0.0
    %3719 = vmatpush1.msra.mxu0 %v3694
    %3720 = vmatprep.subr.mxu0 0.0
    %3721 = vmatpush1.msra.mxu0 %v3693
    %3722 = vmatprep.subr.mxu0 0.0
    %3723 = vmatpush1.msra.mxu0 %v3692
    %3724 = vmatprep.subr.mxu0 0.0
    %3725 = vmatpush1.msra.mxu0 %v3691
    %3726 = vmatprep.subr.mxu0 0.0
    %3727 = vmatpush1.msra.mxu0 %v3690
    %3728 = vmatprep.subr.mxu0 0.0
    %3729 = vmatpush1.msra.mxu0 %v3689
    %3730 = vmatprep.subr.mxu0 0.0
    %3731 = vmatpush1.msra.mxu0 %v3688
    %3732 = vmatprep.subr.mxu0 0.0
    %3733 = vmatpush1.msra.mxu0 %v3687
    %3734 = vmatprep.subr.mxu0 0.0
    %3735 = vmatpush1.msra.mxu0 %v3686
    %3736 = vmatprep.subr.mxu0 0.0
    %3737 = vmatpush1.msra.mxu0 %v3685
    %3738 = vmatprep.subr.mxu0 0.0
    %3739 = vmatpush1.msra.mxu0 %v3684
    %3740 = vmatprep.subr.mxu0 0.0
    %3741 = vmatpush1.msra.mxu0 %v3683
    %3742 = vmatprep.subr.mxu0 0.0
    %3743 = vmatpush2.msra.mxu0 0.0
    %3744 = vmatprep.subr.mxu0 0.0
    %3745 = vmatpush2.msra.mxu0 0.0
    %3746 = vmatprep.subr.mxu0 0.0
    %3747 = vmatpush2.msra.mxu0 0.0
    %3748 = vmatprep.subr.mxu0 0.0
    %3749 = vmatpush2.msra.mxu0 0.0
    %3750 = vmatprep.subr.mxu0 0.0
    %3751 = vmatpush2.msra.mxu0 0.0
    %3752 = vmatprep.subr.mxu0 0.0
    %3753 = vmatpush2.msra.mxu0 0.0
    %3754 = vmatprep.subr.mxu0 0.0
    %3755 = vmatpush2.msra.mxu0 0.0
    %3756 = vmatprep.subr.mxu0 0.0
    %3757 = vmatpush2.msra.mxu0 0.0
    %3758 = vmatprep.subr.mxu0 0.0
    %3759 = vmatpush2.msra.mxu0 %v3706
    %3760 = vmatprep.subr.mxu0 0.0
    %3761 = vmatpush2.msra.mxu0 %v3705
    %3762 = vmatprep.subr.mxu0 0.0
    %3763 = vmatpush2.msra.mxu0 %v3704
    %3764 = vmatprep.subr.mxu0 0.0
    %3765 = vmatpush2.msra.mxu0 %v3703
    %3766 = vmatprep.subr.mxu0 0.0
    %3767 = vmatpush2.msra.mxu0 %v3702
    %3768 = vmatprep.subr.mxu0 0.0
    %3769 = vmatpush2.msra.mxu0 %v3701
    %3770 = vmatprep.subr.mxu0 0.0
    %3771 = vmatpush2.msra.mxu0 %v3700
    %3772 = vmatprep.subr.mxu0 0.0
    %3773 = vmatpush2.msra.mxu0 %v3699
    %3774 = vmatprep.mubr.f32.mxu0 %v3708
    %3775 = vmatmul.mubr.f32.gmra.mxu0 %v2990
    %v3776 = vpop.f32.mrf.mxu0
    %v3777 = vadd.f32 0.0, %v3776
    %v3778 = vpop.f32.mrf.mxu0
    %3779 = vdwg.mxu0
    %v3780 = vadd.f32 %v3681, %v3777
    %v3781 = vld [vmem:[%s8] sm:$0x1]
    %v3783 = vlaneseq
    %v3784 = vshrl.u32 %v3783, 7
    %v3785 = vsub.s32 0, %v3784
    %v3786 = vrot.slane %v3781, %v3785
    %v3788 = vadd.f32 %v3780, %v3786
    %v3789 = vmax.f32 %v3788, 0.0
    %v3790 = vld [vmem:[#allocation11] sm:$0xff]
    %v3791 = vld [vmem:[#allocation11 + $0x8] sm:$0xff]
    %v3792 = vld [vmem:[#allocation11 + $0x10] sm:$0xff]
    %v3793 = vld [vmem:[#allocation11 + $0x18] sm:$0xff]
    %v3794 = vld [vmem:[#allocation11 + $0x20] sm:$0xff]
    %v3795 = vld [vmem:[#allocation11 + $0x28] sm:$0xff]
    %v3796 = vld [vmem:[#allocation11 + $0x30] sm:$0xff]
    %v3797 = vld [vmem:[#allocation11 + $0x38] sm:$0xff]
    %v3798 = vld [vmem:[#allocation11 + $0x40] sm:$0xff]
    %v3799 = vld [vmem:[#allocation11 + $0x48] sm:$0xff]
    %v3800 = vld [vmem:[#allocation11 + $0x50] sm:$0xff]
    %v3801 = vld [vmem:[#allocation11 + $0x58] sm:$0xff]
    %v3802 = vld [vmem:[#allocation11 + $0x60] sm:$0xff]
    %v3803 = vld [vmem:[#allocation11 + $0x68] sm:$0xff]
    %v3804 = vld [vmem:[#allocation11 + $0x70] sm:$0xff]
    %v3805 = vld [vmem:[#allocation11 + $0x78] sm:$0xff]
    %v3806 = vld [vmem:[%s10] sm:$0x1]
    %v3808 = vlaneseq
    %v3809 = vshrl.u32 %v3808, 7
    %v3810 = vsub.s32 0, %v3809
    %v3811 = vrot.slane %v3806, %v3810
    %3813 = vmatprep.subr.mxu0 0.0
    %3814 = vmatpush1.msra.mxu0 %v3805
    %3815 = vmatprep.subr.mxu0 0.0
    %3816 = vmatpush1.msra.mxu0 %v3804
    %3817 = vmatprep.subr.mxu0 0.0
    %3818 = vmatpush1.msra.mxu0 %v3803
    %3819 = vmatprep.subr.mxu0 0.0
    %3820 = vmatpush1.msra.mxu0 %v3802
    %3821 = vmatprep.subr.mxu0 0.0
    %3822 = vmatpush1.msra.mxu0 %v3801
    %3823 = vmatprep.subr.mxu0 0.0
    %3824 = vmatpush1.msra.mxu0 %v3800
    %3825 = vmatprep.subr.mxu0 0.0
    %3826 = vmatpush1.msra.mxu0 %v3799
    %3827 = vmatprep.subr.mxu0 0.0
    %3828 = vmatpush1.msra.mxu0 %v3798
    %3829 = vmatprep.subr.mxu0 0.0
    %3830 = vmatpush1.msra.mxu0 %v3797
    %3831 = vmatprep.subr.mxu0 0.0
    %3832 = vmatpush1.msra.mxu0 %v3796
    %3833 = vmatprep.subr.mxu0 0.0
    %3834 = vmatpush1.msra.mxu0 %v3795
    %3835 = vmatprep.subr.mxu0 0.0
    %3836 = vmatpush1.msra.mxu0 %v3794
    %3837 = vmatprep.subr.mxu0 0.0
    %3838 = vmatpush1.msra.mxu0 %v3793
    %3839 = vmatprep.subr.mxu0 0.0
    %3840 = vmatpush1.msra.mxu0 %v3792
    %3841 = vmatprep.subr.mxu0 0.0
    %3842 = vmatpush1.msra.mxu0 %v3791
    %3843 = vmatprep.subr.mxu0 0.0
    %3844 = vmatpush1.msra.mxu0 %v3790
    %3845 = vmatprep.subr.mxu0 0.0
    %3846 = vmatpush2.msra.mxu0 0.0
    %3847 = vmatprep.subr.mxu0 0.0
    %3848 = vmatpush2.msra.mxu0 0.0
    %3849 = vmatprep.subr.mxu0 0.0
    %3850 = vmatpush2.msra.mxu0 0.0
    %3851 = vmatprep.subr.mxu0 0.0
    %3852 = vmatpush2.msra.mxu0 0.0
    %3853 = vmatprep.subr.mxu0 0.0
    %3854 = vmatpush2.msra.mxu0 0.0
    %3855 = vmatprep.subr.mxu0 0.0
    %3856 = vmatpush2.msra.mxu0 0.0
    %3857 = vmatprep.subr.mxu0 0.0
    %3858 = vmatpush2.msra.mxu0 0.0
    %3859 = vmatprep.subr.mxu0 0.0
    %3860 = vmatpush2.msra.mxu0 0.0
    %3861 = vmatprep.subr.mxu0 0.0
    %3862 = vmatpush2.msra.mxu0 0.0
    %3863 = vmatprep.subr.mxu0 0.0
    %3864 = vmatpush2.msra.mxu0 0.0
    %3865 = vmatprep.subr.mxu0 0.0
    %3866 = vmatpush2.msra.mxu0 0.0
    %3867 = vmatprep.subr.mxu0 0.0
    %3868 = vmatpush2.msra.mxu0 0.0
    %3869 = vmatprep.subr.mxu0 0.0
    %3870 = vmatpush2.msra.mxu0 0.0
    %3871 = vmatprep.subr.mxu0 0.0
    %3872 = vmatpush2.msra.mxu0 0.0
    %3873 = vmatprep.subr.mxu0 0.0
    %3874 = vmatpush2.msra.mxu0 0.0
    %3875 = vmatprep.subr.mxu0 0.0
    %3876 = vmatpush2.msra.mxu0 0.0
    %3877 = vmatprep.mubr.f32.mxu0 0.0
    %3878 = vmatmul.mubr.f32.gmra.mxu0 %v3789
    %v3879 = vpop.f32.mrf.mxu0
    %v3880 = vadd.f32 %v3811, %v3879
    %v3881 = vpop.f32.mrf.mxu0
    %3882 = vdwg.mxu0
    %3883 = vst [vmem:[#allocation13] sm:$0xff] %v3880
    // Predicated region
    $region70: #{tpu_custom_call.1} parent=1 // pred_check
      _
    $region71: #{tpu_custom_call.1} parent=1 // pred_check_branch
      %3885 = sbr.rel (0) target = $region73
    $region72: #{tpu_custom_call.1} parent=1 // pred_region
      %s3887 = ssub.s32 128, 128
      %3888 = vsyncadd [#allocation4], %s3887
      %s3890 = sshll.u32 [#allocation13], 4
      %s3891 = int_to_ptr.vmem [resolvable:$true] %s3890
      %3893 = dma.vmem_to_hbm [thread:$0]  %s3891, 128, %s11, [#allocation4]
    $region73: #{tpu_custom_call.1} parent=1 // pred_fallthru
      _
    // Predicated region
    $region74: #{tpu_custom_call.1} parent=1 // pred_check
      _
    $region75: #{tpu_custom_call.1} parent=1 // pred_check_branch
      %3895 = sbr.rel (0) target = $region77
    $region76: #{tpu_custom_call.1} parent=1 // pred_region
      %3896 = dma.done [#allocation4], 128
    $region77: #{tpu_custom_call.1} parent=1 // pred_fallthru
      _
    %3897 = vsyncpa [#allocation3], 1
    %3898 = vsyncpa [#allocation6], 1
    %3899 = vsyncpa [#allocation9], 1
    %3900 = vsyncpa [#allocation12], 1
    %3901 = vsyncpa [#allocation4], 1

</llo_original>
